<compile_context>
chip_gen: v7x
topology: tpu7x:2x2x1
jax: 0.10.0
libtpu: 0.0.40
codegen_flags: <defaults>
</compile_context>

<pallas_src>
import jax
import jax.numpy as jnp
import numpy as np
from jax import lax
from jax.experimental import pallas as pl
from jax.experimental.pallas import tpu as pltpu

NUM_CLASSES = 2


# ------------------------------ fused kernel -------------------------------- #

def _make_generator_kernel(h: int, w: int):
    hw = h * w
    # Centre-aligned 3x3 tap offsets on the flattened (h*w) lane axis.
    # We need shifted[p] = act[(p + off) % hw]; pltpu.roll follows jnp.roll
    # semantics (out[i] = in[(i - shift) % n]), so shift = (-off) % hw.
    shifts = [(-((dy - 1) * w + (dx - 1))) % hw
              for dy in range(3) for dx in range(3)]

    def kernel(x_ref, w1_ref, b1_ref, w2_ref, b2_ref, w3_ref, b3_ref,
               w4_ref, b4_ref, mA_ref, mB_ref, o_ref):
        f32 = jnp.float32

        def shift(a, s):
            # lane rotate on the XLU; identity tap skips the roll entirely
            return pltpu.roll(a, s, axis=1) if s else a

        def conv3x3_mxu(act, w_ref, b_ref):
            # act: (Cin, HW) f32 ; w_ref: (9, Cout, Cin) bf16 ; b_ref: (Cout,1) f32
            acc = None
            for t, s in enumerate(shifts):
                part = jnp.dot(w_ref[t],
                               shift(act, s).astype(w_ref.dtype),
                               preferred_element_type=f32)
                acc = part if acc is None else acc + part
            return jnp.maximum(acc + b_ref[...], 0.0)

        # ---- conv1: Cin=1 -> 9 broadcast FMAs on the VPU (K=1 matmul would
        # ---- waste the MXU).  x0 is the flattened 16x16 canvas.
        x0 = x_ref[0]                                     # (1, HW) f32
        acc1 = None
        for t, s in enumerate(shifts):
            part = w1_ref[t] * shift(x0, s)               # (32,1)*(1,HW)->(32,HW)
            acc1 = part if acc1 is None else acc1 + part
        h1 = jnp.maximum(acc1 + b1_ref[...], 0.0) * mA_ref[...]   # valid 14x14

        # ---- conv2 (valid 12x12), dconv1 (full 14x14), dconv2 (full 16x16) ----
        h2 = conv3x3_mxu(h1, w2_ref, b2_ref) * mB_ref[...]
        h3 = conv3x3_mxu(h2, w3_ref, b3_ref) * mA_ref[...]
        h4 = conv3x3_mxu(h3, w4_ref, b4_ref)              # (2, HW), whole canvas

        # ---- 2-way softmax over channels: stable sigmoid form (VPU + EUP) ----
        a0 = h4[0:1, :]
        a1 = h4[1:2, :]
        d = a1 - a0
        e = jnp.exp(-jnp.abs(d))                          # in (0, 1], no overflow
        r = pl.reciprocal(1.0 + e, approx=True)           # ~2^-12 rel err, OK here
        p1 = jnp.where(d >= 0.0, r, e * r)
        p0 = 1.0 - p1                                     # sums to 1 exactly
        o_ref[0] = jnp.concatenate([p0, p1], axis=0).astype(o_ref.dtype)

    return kernel


# ------------------------------ pallas_call glue ----------------------------- #

def _generator_pallas(prep, x_flat, h, w):
    n = x_flat.shape[0]
    hw = h * w

    # Valid-region masks: keeping each activation's support away from the
    # canvas border makes every rolled wrap-read hit a zero, i.e. exactly the
    # zero padding of the valid / full convolutions.
    def region_mask(lo, hi_r, hi_c):
        m = np.zeros((h, w), np.float32)
        m[lo:hi_r + 1, lo:hi_c + 1] = 1.0
        return jnp.asarray(m.reshape(1, hw))

    mask_a = region_mask(1, h - 2, w - 2)   # conv1 / dconv1 valid region (14x14)
    mask_b = region_mask(2, h - 3, w - 3)   # conv2 valid region (12x12)

    def full(a):
        return pl.BlockSpec(a.shape, lambda i, _nd=a.ndim: (0,) * _nd)

    kernel = _make_generator_kernel(h, w)
    return pl.pallas_call(
        kernel,
        out_shape=jax.ShapeDtypeStruct((n, NUM_CLASSES, hw), jnp.float32),
        grid=(n,),
        in_specs=[
            pl.BlockSpec((1, 1, hw), lambda i: (i, 0, 0)),   # lane-dense input
            full(prep["w1"]), full(prep["b1"]),
            full(prep["w2"]), full(prep["b2"]),
            full(prep["w3"]), full(prep["b3"]),
            full(prep["w4"]), full(prep["b4"]),
            full(mask_a), full(mask_b),
        ],
        out_specs=pl.BlockSpec((1, NUM_CLASSES, hw), lambda i: (i, 0, 0)),
        compiler_params=pltpu.CompilerParams(
            dimension_semantics=("parallel",)),              # batch across v7x TCs
    )(x_flat, prep["w1"], prep["b1"], prep["w2"], prep["b2"],
      prep["w3"], prep["b3"], prep["w4"], prep["b4"], mask_a, mask_b)


# --------------------------------- params ----------------------------------- #

def init_params(key):
    """Deterministic parameter init in module-faithful layouts."""
    ks = jax.random.split(key, 8)

    def w_init(k, shape, fan_in):
        return jax.random.normal(k, shape, jnp.float32) / np.sqrt(fan_in)

    return {
        # conv weights in HWIO (KH, KW, Cin, Cout)
        "conv1_w": w_init(ks[0], (3, 3, 1, 32), 1 * 9),
        "conv1_b": 0.01 * jax.random.normal(ks[1], (32,), jnp.float32),
        "conv2_w": w_init(ks[2], (3, 3, 32, 64), 32 * 9),
        "conv2_b": 0.01 * jax.random.normal(ks[3], (64,), jnp.float32),
        # transpose-conv weights in PyTorch layout (Cin, Cout, KH, KW)
        "dconv1_w": w_init(ks[4], (64, 32, 3, 3), 64 * 9),
        "dconv1_b": 0.01 * jax.random.normal(ks[5], (32,), jnp.float32),
        "dconv2_w": w_init(ks[6], (32, NUM_CLASSES, 3, 3), 32 * 9),
        "dconv2_b": 0.01 * jax.random.normal(ks[7], (NUM_CLASSES,), jnp.float32),
    }


def prepare_params(params):
    """One-time conversion of module weights into kernel-ready tap matrices.

    * conv weights (HWIO)            -> (9, Cout, Cin) per-tap matrices.
    * ConvTranspose2d (Cin,Cout,3,3) -> spatially flipped + (in,out)-transposed
      "full convolution" kernels     -> (9, Cout, Cin).
    * MXU-bound weights cast to bf16 (f32 accumulation in-kernel); conv1 stays
      f32 (VPU path).  Biases reshaped once to (Cout, 1) for lane broadcast.
    """
    bf16 = jnp.bfloat16

    def conv_taps(k_hwio, dtype):
        co, ci = k_hwio.shape[3], k_hwio.shape[2]
        return jnp.transpose(k_hwio, (0, 1, 3, 2)).reshape(9, co, ci).astype(dtype)

    def convT_taps(k_pt, dtype):                       # (Cin, Cout, 3, 3)
        ci, co = k_pt.shape[0], k_pt.shape[1]
        w_eff = jnp.transpose(k_pt[:, :, ::-1, ::-1], (2, 3, 1, 0))  # (3,3,Cout,Cin)
        return w_eff.reshape(9, co, ci).astype(dtype)

    return {
        "w1": conv_taps(params["conv1_w"], jnp.float32),   # (9, 32, 1)  VPU
        "b1": params["conv1_b"].reshape(-1, 1),
        "w2": conv_taps(params["conv2_w"], bf16),          # (9, 64, 32) MXU
        "b2": params["conv2_b"].reshape(-1, 1),
        "w3": convT_taps(params["dconv1_w"], bf16),        # (9, 32, 64) MXU
        "b3": params["dconv1_b"].reshape(-1, 1),
        "w4": convT_taps(params["dconv2_w"], bf16),        # (9, 2, 32)  MXU (tiny)
        "b4": params["dconv2_b"].reshape(-1, 1),
    }


@jax.jit
def generator_forward(prep, x_nchw):
    """x_nchw: (N, 1, H, W) f32 -> (N, NUM_CLASSES, H, W) f32."""
    n, c, h, w = x_nchw.shape
    assert c == 1
    x_flat = x_nchw.reshape(n, 1, h * w)            # lane-dense input, free reshape
    y = _generator_pallas(prep, x_flat, h, w)       # (N, 2, H*W) channel-major
    return y.reshape(n, NUM_CLASSES, h, w)          # free reshape, no transpose


# ------------------------------ reference (XLA) ------------------------------ #

def _ref_forward(params, x_nchw):
    """Pure-JAX f32 reference (lax convs) for correctness checking."""
    x = jnp.transpose(x_nchw, (0, 2, 3, 1))

    def conv(x, w, b, pad):
        dn = lax.conv_dimension_numbers(x.shape, w.shape, ("NHWC", "HWIO", "NHWC"))
        y = lax.conv_general_dilated(x, w, (1, 1), [(pad, pad), (pad, pad)],
                                     dimension_numbers=dn)
        return jax.nn.relu(y + b)

    x = conv(x, params["conv1_w"], params["conv1_b"], 0)
    x = conv(x, params["conv2_w"], params["conv2_b"], 0)
    w3 = jnp.transpose(params["dconv1_w"][:, :, ::-1, ::-1], (2, 3, 0, 1))
    x = conv(x, w3, params["dconv1_b"], 2)
    w4 = jnp.transpose(params["dconv2_w"][:, :, ::-1, ::-1], (2, 3, 0, 1))
    x = conv(x, w4, params["dconv2_b"], 2)
    x = jax.nn.softmax(x, axis=-1)
    return jnp.transpose(x, (0, 3, 1, 2))


# ----------------------------------- main ------------------------------------ #

if __name__ == "__main__":
    key = jax.random.PRNGKey(0)
    k_param, k_x = jax.random.split(key)

    params = init_params(k_param)
    prep = prepare_params(params)             # one-time weight flip/reshape/bf16
    x = jax.random.normal(k_x, (2, 1, 16, 16), jnp.float32)   # NCHW, like PyTorch

    out = jax.block_until_ready(generator_forward(prep, x))
    assert out.shape == (2, NUM_CLASSES, 16, 16), out.shape

    # softmax over channels must sum to 1
    ch_sum = np.asarray(jnp.sum(out, axis=1))
    np.testing.assert_allclose(ch_sum, np.ones_like(ch_sum), rtol=1e-4, atol=1e-4)

    # cross-check against the pure-f32 XLA reference.  The kernel uses bf16 MXU
    # operands (f32 accumulation), so compare with a bf16-level tolerance.
    ref = np.asarray(_ref_forward(params, x))
    np.testing.assert_allclose(np.asarray(out), ref, rtol=2e-2, atol=2e-2)

    print("KERNEL_OK")
</pallas_src>

<mosaic_0001>
module attributes {stable_mosaic.version = 11 : i64} {
  func.func @kernel(%arg0: i32, %arg1: memref<1x1x256xf32, #tpu.memory_space<vmem>>, %arg2: memref<9x32x1xf32, #tpu.memory_space<vmem>>, %arg3: memref<32x1xf32, #tpu.memory_space<vmem>>, %arg4: memref<9x64x32xbf16, #tpu.memory_space<vmem>>, %arg5: memref<64x1xf32, #tpu.memory_space<vmem>>, %arg6: memref<9x32x64xbf16, #tpu.memory_space<vmem>>, %arg7: memref<32x1xf32, #tpu.memory_space<vmem>>, %arg8: memref<9x2x32xbf16, #tpu.memory_space<vmem>>, %arg9: memref<2x1xf32, #tpu.memory_space<vmem>>, %arg10: memref<1x256xf32, #tpu.memory_space<vmem>>, %arg11: memref<1x256xf32, #tpu.memory_space<vmem>>, %arg12: memref<1x2x256xf32, #tpu.memory_space<vmem>>) attributes {dimension_semantics = [#tpu.dimension_semantics<parallel>], iteration_bounds = array<i64: 2>, scalar_prefetch = 0 : i64, scratch_operands = 0 : i64, tpu.core_type = #tpu.core_type<tc>, window_params = [{transform_indices = @transform_0, window_bounds = array<i64: 1, 1, 256>}, {pipeline_mode = #tpu.pipeline_mode<synchronous>, transform_indices = @transform_1, window_bounds = array<i64: 9, 32, 1>}, {pipeline_mode = #tpu.pipeline_mode<synchronous>, transform_indices = @transform_2, window_bounds = array<i64: 32, 1>}, {pipeline_mode = #tpu.pipeline_mode<synchronous>, transform_indices = @transform_3, window_bounds = array<i64: 9, 64, 32>}, {pipeline_mode = #tpu.pipeline_mode<synchronous>, transform_indices = @transform_4, window_bounds = array<i64: 64, 1>}, {pipeline_mode = #tpu.pipeline_mode<synchronous>, transform_indices = @transform_5, window_bounds = array<i64: 9, 32, 64>}, {pipeline_mode = #tpu.pipeline_mode<synchronous>, transform_indices = @transform_6, window_bounds = array<i64: 32, 1>}, {pipeline_mode = #tpu.pipeline_mode<synchronous>, transform_indices = @transform_7, window_bounds = array<i64: 9, 2, 32>}, {pipeline_mode = #tpu.pipeline_mode<synchronous>, transform_indices = @transform_8, window_bounds = array<i64: 2, 1>}, {pipeline_mode = #tpu.pipeline_mode<synchronous>, transform_indices = @transform_9, window_bounds = array<i64: 1, 256>}, {pipeline_mode = #tpu.pipeline_mode<synchronous>, transform_indices = @transform_10, window_bounds = array<i64: 1, 256>}, {transform_indices = @transform_11, window_bounds = array<i64: 1, 2, 256>}]} {
    %c0 = arith.constant 0 : index
    %c0_0 = arith.constant 0 : index
    %c0_1 = arith.constant 0 : index
    %0 = vector.load %arg1[%c0, %c0_0, %c0_1] : memref<1x1x256xf32, #tpu.memory_space<vmem>>, vector<1x1x256xf32>
    %1 = vector.shape_cast %0 : vector<1x1x256xf32> to vector<1x256xf32>
    %c0_2 = arith.constant 0 : index
    %c0_3 = arith.constant 0 : index
    %c0_4 = arith.constant 0 : index
    %2 = vector.load %arg2[%c0_2, %c0_3, %c0_4] : memref<9x32x1xf32, #tpu.memory_space<vmem>>, vector<1x32x1xf32>
    %3 = vector.shape_cast %2 : vector<1x32x1xf32> to vector<32x1xf32>
    %c17_i32 = arith.constant 17 : i32
    %4 = tpu.dynamic_rotate %1 by %c17_i32 dim 1 : vector<1x256xf32>, i32 -> vector<1x256xf32>
    %5 = vector.broadcast %3 : vector<32x1xf32> to vector<32x256xf32>
    %6 = vector.broadcast %4 : vector<1x256xf32> to vector<32x256xf32>
    %7 = arith.mulf %5, %6 : vector<32x256xf32>
    %c1 = arith.constant 1 : index
    %c0_5 = arith.constant 0 : index
    %c0_6 = arith.constant 0 : index
    %8 = vector.load %arg2[%c1, %c0_5, %c0_6] : memref<9x32x1xf32, #tpu.memory_space<vmem>>, vector<1x32x1xf32>
    %9 = vector.shape_cast %8 : vector<1x32x1xf32> to vector<32x1xf32>
    %c16_i32 = arith.constant 16 : i32
    %10 = tpu.dynamic_rotate %1 by %c16_i32 dim 1 : vector<1x256xf32>, i32 -> vector<1x256xf32>
    %11 = vector.broadcast %9 : vector<32x1xf32> to vector<32x256xf32>
    %12 = vector.broadcast %10 : vector<1x256xf32> to vector<32x256xf32>
    %13 = arith.mulf %11, %12 : vector<32x256xf32>
    %14 = arith.addf %7, %13 : vector<32x256xf32>
    %c2 = arith.constant 2 : index
    %c0_7 = arith.constant 0 : index
    %c0_8 = arith.constant 0 : index
    %15 = vector.load %arg2[%c2, %c0_7, %c0_8] : memref<9x32x1xf32, #tpu.memory_space<vmem>>, vector<1x32x1xf32>
    %16 = vector.shape_cast %15 : vector<1x32x1xf32> to vector<32x1xf32>
    %c15_i32 = arith.constant 15 : i32
    %17 = tpu.dynamic_rotate %1 by %c15_i32 dim 1 : vector<1x256xf32>, i32 -> vector<1x256xf32>
    %18 = vector.broadcast %16 : vector<32x1xf32> to vector<32x256xf32>
    %19 = vector.broadcast %17 : vector<1x256xf32> to vector<32x256xf32>
    %20 = arith.mulf %18, %19 : vector<32x256xf32>
    %21 = arith.addf %14, %20 : vector<32x256xf32>
    %c3 = arith.constant 3 : index
    %c0_9 = arith.constant 0 : index
    %c0_10 = arith.constant 0 : index
    %22 = vector.load %arg2[%c3, %c0_9, %c0_10] : memref<9x32x1xf32, #tpu.memory_space<vmem>>, vector<1x32x1xf32>
    %23 = vector.shape_cast %22 : vector<1x32x1xf32> to vector<32x1xf32>
    %c1_i32 = arith.constant 1 : i32
    %24 = tpu.dynamic_rotate %1 by %c1_i32 dim 1 : vector<1x256xf32>, i32 -> vector<1x256xf32>
    %25 = vector.broadcast %23 : vector<32x1xf32> to vector<32x256xf32>
    %26 = vector.broadcast %24 : vector<1x256xf32> to vector<32x256xf32>
    %27 = arith.mulf %25, %26 : vector<32x256xf32>
    %28 = arith.addf %21, %27 : vector<32x256xf32>
    %c4 = arith.constant 4 : index
    %c0_11 = arith.constant 0 : index
    %c0_12 = arith.constant 0 : index
    %29 = vector.load %arg2[%c4, %c0_11, %c0_12] : memref<9x32x1xf32, #tpu.memory_space<vmem>>, vector<1x32x1xf32>
    %30 = vector.shape_cast %29 : vector<1x32x1xf32> to vector<32x1xf32>
    %31 = vector.broadcast %30 : vector<32x1xf32> to vector<32x256xf32>
    %32 = vector.broadcast %1 : vector<1x256xf32> to vector<32x256xf32>
    %33 = arith.mulf %31, %32 : vector<32x256xf32>
    %34 = arith.addf %28, %33 : vector<32x256xf32>
    %c5 = arith.constant 5 : index
    %c0_13 = arith.constant 0 : index
    %c0_14 = arith.constant 0 : index
    %35 = vector.load %arg2[%c5, %c0_13, %c0_14] : memref<9x32x1xf32, #tpu.memory_space<vmem>>, vector<1x32x1xf32>
    %36 = vector.shape_cast %35 : vector<1x32x1xf32> to vector<32x1xf32>
    %c255_i32 = arith.constant 255 : i32
    %37 = tpu.dynamic_rotate %1 by %c255_i32 dim 1 : vector<1x256xf32>, i32 -> vector<1x256xf32>
    %38 = vector.broadcast %36 : vector<32x1xf32> to vector<32x256xf32>
    %39 = vector.broadcast %37 : vector<1x256xf32> to vector<32x256xf32>
    %40 = arith.mulf %38, %39 : vector<32x256xf32>
    %41 = arith.addf %34, %40 : vector<32x256xf32>
    %c6 = arith.constant 6 : index
    %c0_15 = arith.constant 0 : index
    %c0_16 = arith.constant 0 : index
    %42 = vector.load %arg2[%c6, %c0_15, %c0_16] : memref<9x32x1xf32, #tpu.memory_space<vmem>>, vector<1x32x1xf32>
    %43 = vector.shape_cast %42 : vector<1x32x1xf32> to vector<32x1xf32>
    %c241_i32 = arith.constant 241 : i32
    %44 = tpu.dynamic_rotate %1 by %c241_i32 dim 1 : vector<1x256xf32>, i32 -> vector<1x256xf32>
    %45 = vector.broadcast %43 : vector<32x1xf32> to vector<32x256xf32>
    %46 = vector.broadcast %44 : vector<1x256xf32> to vector<32x256xf32>
    %47 = arith.mulf %45, %46 : vector<32x256xf32>
    %48 = arith.addf %41, %47 : vector<32x256xf32>
    %c7 = arith.constant 7 : index
    %c0_17 = arith.constant 0 : index
    %c0_18 = arith.constant 0 : index
    %49 = vector.load %arg2[%c7, %c0_17, %c0_18] : memref<9x32x1xf32, #tpu.memory_space<vmem>>, vector<1x32x1xf32>
    %50 = vector.shape_cast %49 : vector<1x32x1xf32> to vector<32x1xf32>
    %c240_i32 = arith.constant 240 : i32
    %51 = tpu.dynamic_rotate %1 by %c240_i32 dim 1 : vector<1x256xf32>, i32 -> vector<1x256xf32>
    %52 = vector.broadcast %50 : vector<32x1xf32> to vector<32x256xf32>
    %53 = vector.broadcast %51 : vector<1x256xf32> to vector<32x256xf32>
    %54 = arith.mulf %52, %53 : vector<32x256xf32>
    %55 = arith.addf %48, %54 : vector<32x256xf32>
    %c8 = arith.constant 8 : index
    %c0_19 = arith.constant 0 : index
    %c0_20 = arith.constant 0 : index
    %56 = vector.load %arg2[%c8, %c0_19, %c0_20] : memref<9x32x1xf32, #tpu.memory_space<vmem>>, vector<1x32x1xf32>
    %57 = vector.shape_cast %56 : vector<1x32x1xf32> to vector<32x1xf32>
    %c239_i32 = arith.constant 239 : i32
    %58 = tpu.dynamic_rotate %1 by %c239_i32 dim 1 : vector<1x256xf32>, i32 -> vector<1x256xf32>
    %59 = vector.broadcast %57 : vector<32x1xf32> to vector<32x256xf32>
    %60 = vector.broadcast %58 : vector<1x256xf32> to vector<32x256xf32>
    %61 = arith.mulf %59, %60 : vector<32x256xf32>
    %62 = arith.addf %55, %61 : vector<32x256xf32>
    %c0_21 = arith.constant 0 : index
    %c0_22 = arith.constant 0 : index
    %63 = vector.load %arg3[%c0_21, %c0_22] : memref<32x1xf32, #tpu.memory_space<vmem>>, vector<32x1xf32>
    %64 = vector.broadcast %63 : vector<32x1xf32> to vector<32x256xf32>
    %65 = arith.addf %62, %64 : vector<32x256xf32>
    %cst = arith.constant 0.000000e+00 : f32
    %66 = vector.broadcast %cst : f32 to vector<32x256xf32>
    %67 = arith.maximumf %65, %66 : vector<32x256xf32>
    %c0_23 = arith.constant 0 : index
    %c0_24 = arith.constant 0 : index
    %68 = vector.load %arg10[%c0_23, %c0_24] : memref<1x256xf32, #tpu.memory_space<vmem>>, vector<1x256xf32>
    %69 = vector.broadcast %68 : vector<1x256xf32> to vector<32x256xf32>
    %70 = arith.mulf %67, %69 : vector<32x256xf32>
    %c0_25 = arith.constant 0 : index
    %c0_26 = arith.constant 0 : index
    %c0_27 = arith.constant 0 : index
    %71 = vector.load %arg4[%c0_25, %c0_26, %c0_27] : memref<9x64x32xbf16, #tpu.memory_space<vmem>>, vector<1x64x32xbf16>
    %72 = vector.shape_cast %71 : vector<1x64x32xbf16> to vector<64x32xbf16>
    %c17_i32_28 = arith.constant 17 : i32
    %73 = tpu.dynamic_rotate %70 by %c17_i32_28 dim 1 : vector<32x256xf32>, i32 -> vector<32x256xf32>
    %74 = arith.truncf %73 : vector<32x256xf32> to vector<32x256xbf16>
    %cst_29 = arith.constant dense<0.000000e+00> : vector<64x256xf32>
    %75 = tpu.matmul %72, %74, %cst_29 {dimension_numbers = #tpu.dot_dimension_numbers<[1], [0], [0], [1], [0, 0, 1, 1], [], []>} : vector<64x32xbf16>, vector<32x256xbf16>, vector<64x256xf32> -> vector<64x256xf32>
    %c1_30 = arith.constant 1 : index
    %c0_31 = arith.constant 0 : index
    %c0_32 = arith.constant 0 : index
    %76 = vector.load %arg4[%c1_30, %c0_31, %c0_32] : memref<9x64x32xbf16, #tpu.memory_space<vmem>>, vector<1x64x32xbf16>
    %77 = vector.shape_cast %76 : vector<1x64x32xbf16> to vector<64x32xbf16>
    %c16_i32_33 = arith.constant 16 : i32
    %78 = tpu.dynamic_rotate %70 by %c16_i32_33 dim 1 : vector<32x256xf32>, i32 -> vector<32x256xf32>
    %79 = arith.truncf %78 : vector<32x256xf32> to vector<32x256xbf16>
    %cst_34 = arith.constant dense<0.000000e+00> : vector<64x256xf32>
    %80 = tpu.matmul %77, %79, %cst_34 {dimension_numbers = #tpu.dot_dimension_numbers<[1], [0], [0], [1], [0, 0, 1, 1], [], []>} : vector<64x32xbf16>, vector<32x256xbf16>, vector<64x256xf32> -> vector<64x256xf32>
    %81 = arith.addf %75, %80 : vector<64x256xf32>
    %c2_35 = arith.constant 2 : index
    %c0_36 = arith.constant 0 : index
    %c0_37 = arith.constant 0 : index
    %82 = vector.load %arg4[%c2_35, %c0_36, %c0_37] : memref<9x64x32xbf16, #tpu.memory_space<vmem>>, vector<1x64x32xbf16>
    %83 = vector.shape_cast %82 : vector<1x64x32xbf16> to vector<64x32xbf16>
    %c15_i32_38 = arith.constant 15 : i32
    %84 = tpu.dynamic_rotate %70 by %c15_i32_38 dim 1 : vector<32x256xf32>, i32 -> vector<32x256xf32>
    %85 = arith.truncf %84 : vector<32x256xf32> to vector<32x256xbf16>
    %cst_39 = arith.constant dense<0.000000e+00> : vector<64x256xf32>
    %86 = tpu.matmul %83, %85, %cst_39 {dimension_numbers = #tpu.dot_dimension_numbers<[1], [0], [0], [1], [0, 0, 1, 1], [], []>} : vector<64x32xbf16>, vector<32x256xbf16>, vector<64x256xf32> -> vector<64x256xf32>
    %87 = arith.addf %81, %86 : vector<64x256xf32>
    %c3_40 = arith.constant 3 : index
    %c0_41 = arith.constant 0 : index
    %c0_42 = arith.constant 0 : index
    %88 = vector.load %arg4[%c3_40, %c0_41, %c0_42] : memref<9x64x32xbf16, #tpu.memory_space<vmem>>, vector<1x64x32xbf16>
    %89 = vector.shape_cast %88 : vector<1x64x32xbf16> to vector<64x32xbf16>
    %c1_i32_43 = arith.constant 1 : i32
    %90 = tpu.dynamic_rotate %70 by %c1_i32_43 dim 1 : vector<32x256xf32>, i32 -> vector<32x256xf32>
    %91 = arith.truncf %90 : vector<32x256xf32> to vector<32x256xbf16>
    %cst_44 = arith.constant dense<0.000000e+00> : vector<64x256xf32>
    %92 = tpu.matmul %89, %91, %cst_44 {dimension_numbers = #tpu.dot_dimension_numbers<[1], [0], [0], [1], [0, 0, 1, 1], [], []>} : vector<64x32xbf16>, vector<32x256xbf16>, vector<64x256xf32> -> vector<64x256xf32>
    %93 = arith.addf %87, %92 : vector<64x256xf32>
    %c4_45 = arith.constant 4 : index
    %c0_46 = arith.constant 0 : index
    %c0_47 = arith.constant 0 : index
    %94 = vector.load %arg4[%c4_45, %c0_46, %c0_47] : memref<9x64x32xbf16, #tpu.memory_space<vmem>>, vector<1x64x32xbf16>
    %95 = vector.shape_cast %94 : vector<1x64x32xbf16> to vector<64x32xbf16>
    %96 = arith.truncf %70 : vector<32x256xf32> to vector<32x256xbf16>
    %cst_48 = arith.constant dense<0.000000e+00> : vector<64x256xf32>
    %97 = tpu.matmul %95, %96, %cst_48 {dimension_numbers = #tpu.dot_dimension_numbers<[1], [0], [0], [1], [0, 0, 1, 1], [], []>} : vector<64x32xbf16>, vector<32x256xbf16>, vector<64x256xf32> -> vector<64x256xf32>
    %98 = arith.addf %93, %97 : vector<64x256xf32>
    %c5_49 = arith.constant 5 : index
    %c0_50 = arith.constant 0 : index
    %c0_51 = arith.constant 0 : index
    %99 = vector.load %arg4[%c5_49, %c0_50, %c0_51] : memref<9x64x32xbf16, #tpu.memory_space<vmem>>, vector<1x64x32xbf16>
    %100 = vector.shape_cast %99 : vector<1x64x32xbf16> to vector<64x32xbf16>
    %c255_i32_52 = arith.constant 255 : i32
    %101 = tpu.dynamic_rotate %70 by %c255_i32_52 dim 1 : vector<32x256xf32>, i32 -> vector<32x256xf32>
    %102 = arith.truncf %101 : vector<32x256xf32> to vector<32x256xbf16>
    %cst_53 = arith.constant dense<0.000000e+00> : vector<64x256xf32>
    %103 = tpu.matmul %100, %102, %cst_53 {dimension_numbers = #tpu.dot_dimension_numbers<[1], [0], [0], [1], [0, 0, 1, 1], [], []>} : vector<64x32xbf16>, vector<32x256xbf16>, vector<64x256xf32> -> vector<64x256xf32>
    %104 = arith.addf %98, %103 : vector<64x256xf32>
    %c6_54 = arith.constant 6 : index
    %c0_55 = arith.constant 0 : index
    %c0_56 = arith.constant 0 : index
    %105 = vector.load %arg4[%c6_54, %c0_55, %c0_56] : memref<9x64x32xbf16, #tpu.memory_space<vmem>>, vector<1x64x32xbf16>
    %106 = vector.shape_cast %105 : vector<1x64x32xbf16> to vector<64x32xbf16>
    %c241_i32_57 = arith.constant 241 : i32
    %107 = tpu.dynamic_rotate %70 by %c241_i32_57 dim 1 : vector<32x256xf32>, i32 -> vector<32x256xf32>
    %108 = arith.truncf %107 : vector<32x256xf32> to vector<32x256xbf16>
    %cst_58 = arith.constant dense<0.000000e+00> : vector<64x256xf32>
    %109 = tpu.matmul %106, %108, %cst_58 {dimension_numbers = #tpu.dot_dimension_numbers<[1], [0], [0], [1], [0, 0, 1, 1], [], []>} : vector<64x32xbf16>, vector<32x256xbf16>, vector<64x256xf32> -> vector<64x256xf32>
    %110 = arith.addf %104, %109 : vector<64x256xf32>
    %c7_59 = arith.constant 7 : index
    %c0_60 = arith.constant 0 : index
    %c0_61 = arith.constant 0 : index
    %111 = vector.load %arg4[%c7_59, %c0_60, %c0_61] : memref<9x64x32xbf16, #tpu.memory_space<vmem>>, vector<1x64x32xbf16>
    %112 = vector.shape_cast %111 : vector<1x64x32xbf16> to vector<64x32xbf16>
    %c240_i32_62 = arith.constant 240 : i32
    %113 = tpu.dynamic_rotate %70 by %c240_i32_62 dim 1 : vector<32x256xf32>, i32 -> vector<32x256xf32>
    %114 = arith.truncf %113 : vector<32x256xf32> to vector<32x256xbf16>
    %cst_63 = arith.constant dense<0.000000e+00> : vector<64x256xf32>
    %115 = tpu.matmul %112, %114, %cst_63 {dimension_numbers = #tpu.dot_dimension_numbers<[1], [0], [0], [1], [0, 0, 1, 1], [], []>} : vector<64x32xbf16>, vector<32x256xbf16>, vector<64x256xf32> -> vector<64x256xf32>
    %116 = arith.addf %110, %115 : vector<64x256xf32>
    %c8_64 = arith.constant 8 : index
    %c0_65 = arith.constant 0 : index
    %c0_66 = arith.constant 0 : index
    %117 = vector.load %arg4[%c8_64, %c0_65, %c0_66] : memref<9x64x32xbf16, #tpu.memory_space<vmem>>, vector<1x64x32xbf16>
    %118 = vector.shape_cast %117 : vector<1x64x32xbf16> to vector<64x32xbf16>
    %c239_i32_67 = arith.constant 239 : i32
    %119 = tpu.dynamic_rotate %70 by %c239_i32_67 dim 1 : vector<32x256xf32>, i32 -> vector<32x256xf32>
    %120 = arith.truncf %119 : vector<32x256xf32> to vector<32x256xbf16>
    %cst_68 = arith.constant dense<0.000000e+00> : vector<64x256xf32>
    %121 = tpu.matmul %118, %120, %cst_68 {dimension_numbers = #tpu.dot_dimension_numbers<[1], [0], [0], [1], [0, 0, 1, 1], [], []>} : vector<64x32xbf16>, vector<32x256xbf16>, vector<64x256xf32> -> vector<64x256xf32>
    %122 = arith.addf %116, %121 : vector<64x256xf32>
    %c0_69 = arith.constant 0 : index
    %c0_70 = arith.constant 0 : index
    %123 = vector.load %arg5[%c0_69, %c0_70] : memref<64x1xf32, #tpu.memory_space<vmem>>, vector<64x1xf32>
    %124 = vector.broadcast %123 : vector<64x1xf32> to vector<64x256xf32>
    %125 = arith.addf %122, %124 : vector<64x256xf32>
    %cst_71 = arith.constant 0.000000e+00 : f32
    %126 = vector.broadcast %cst_71 : f32 to vector<64x256xf32>
    %127 = arith.maximumf %125, %126 : vector<64x256xf32>
    %c0_72 = arith.constant 0 : index
    %c0_73 = arith.constant 0 : index
    %128 = vector.load %arg11[%c0_72, %c0_73] : memref<1x256xf32, #tpu.memory_space<vmem>>, vector<1x256xf32>
    %129 = vector.broadcast %128 : vector<1x256xf32> to vector<64x256xf32>
    %130 = arith.mulf %127, %129 : vector<64x256xf32>
    %c0_74 = arith.constant 0 : index
    %c0_75 = arith.constant 0 : index
    %c0_76 = arith.constant 0 : index
    %131 = vector.load %arg6[%c0_74, %c0_75, %c0_76] : memref<9x32x64xbf16, #tpu.memory_space<vmem>>, vector<1x32x64xbf16>
    %132 = vector.shape_cast %131 : vector<1x32x64xbf16> to vector<32x64xbf16>
    %c17_i32_77 = arith.constant 17 : i32
    %133 = tpu.dynamic_rotate %130 by %c17_i32_77 dim 1 : vector<64x256xf32>, i32 -> vector<64x256xf32>
    %134 = arith.truncf %133 : vector<64x256xf32> to vector<64x256xbf16>
    %cst_78 = arith.constant dense<0.000000e+00> : vector<32x256xf32>
    %135 = tpu.matmul %132, %134, %cst_78 {dimension_numbers = #tpu.dot_dimension_numbers<[1], [0], [0], [1], [0, 0, 1, 1], [], []>} : vector<32x64xbf16>, vector<64x256xbf16>, vector<32x256xf32> -> vector<32x256xf32>
    %c1_79 = arith.constant 1 : index
    %c0_80 = arith.constant 0 : index
    %c0_81 = arith.constant 0 : index
    %136 = vector.load %arg6[%c1_79, %c0_80, %c0_81] : memref<9x32x64xbf16, #tpu.memory_space<vmem>>, vector<1x32x64xbf16>
    %137 = vector.shape_cast %136 : vector<1x32x64xbf16> to vector<32x64xbf16>
    %c16_i32_82 = arith.constant 16 : i32
    %138 = tpu.dynamic_rotate %130 by %c16_i32_82 dim 1 : vector<64x256xf32>, i32 -> vector<64x256xf32>
    %139 = arith.truncf %138 : vector<64x256xf32> to vector<64x256xbf16>
    %cst_83 = arith.constant dense<0.000000e+00> : vector<32x256xf32>
    %140 = tpu.matmul %137, %139, %cst_83 {dimension_numbers = #tpu.dot_dimension_numbers<[1], [0], [0], [1], [0, 0, 1, 1], [], []>} : vector<32x64xbf16>, vector<64x256xbf16>, vector<32x256xf32> -> vector<32x256xf32>
    %141 = arith.addf %135, %140 : vector<32x256xf32>
    %c2_84 = arith.constant 2 : index
    %c0_85 = arith.constant 0 : index
    %c0_86 = arith.constant 0 : index
    %142 = vector.load %arg6[%c2_84, %c0_85, %c0_86] : memref<9x32x64xbf16, #tpu.memory_space<vmem>>, vector<1x32x64xbf16>
    %143 = vector.shape_cast %142 : vector<1x32x64xbf16> to vector<32x64xbf16>
    %c15_i32_87 = arith.constant 15 : i32
    %144 = tpu.dynamic_rotate %130 by %c15_i32_87 dim 1 : vector<64x256xf32>, i32 -> vector<64x256xf32>
    %145 = arith.truncf %144 : vector<64x256xf32> to vector<64x256xbf16>
    %cst_88 = arith.constant dense<0.000000e+00> : vector<32x256xf32>
    %146 = tpu.matmul %143, %145, %cst_88 {dimension_numbers = #tpu.dot_dimension_numbers<[1], [0], [0], [1], [0, 0, 1, 1], [], []>} : vector<32x64xbf16>, vector<64x256xbf16>, vector<32x256xf32> -> vector<32x256xf32>
    %147 = arith.addf %141, %146 : vector<32x256xf32>
    %c3_89 = arith.constant 3 : index
    %c0_90 = arith.constant 0 : index
    %c0_91 = arith.constant 0 : index
    %148 = vector.load %arg6[%c3_89, %c0_90, %c0_91] : memref<9x32x64xbf16, #tpu.memory_space<vmem>>, vector<1x32x64xbf16>
    %149 = vector.shape_cast %148 : vector<1x32x64xbf16> to vector<32x64xbf16>
    %c1_i32_92 = arith.constant 1 : i32
    %150 = tpu.dynamic_rotate %130 by %c1_i32_92 dim 1 : vector<64x256xf32>, i32 -> vector<64x256xf32>
    %151 = arith.truncf %150 : vector<64x256xf32> to vector<64x256xbf16>
    %cst_93 = arith.constant dense<0.000000e+00> : vector<32x256xf32>
    %152 = tpu.matmul %149, %151, %cst_93 {dimension_numbers = #tpu.dot_dimension_numbers<[1], [0], [0], [1], [0, 0, 1, 1], [], []>} : vector<32x64xbf16>, vector<64x256xbf16>, vector<32x256xf32> -> vector<32x256xf32>
    %153 = arith.addf %147, %152 : vector<32x256xf32>
    %c4_94 = arith.constant 4 : index
    %c0_95 = arith.constant 0 : index
    %c0_96 = arith.constant 0 : index
    %154 = vector.load %arg6[%c4_94, %c0_95, %c0_96] : memref<9x32x64xbf16, #tpu.memory_space<vmem>>, vector<1x32x64xbf16>
    %155 = vector.shape_cast %154 : vector<1x32x64xbf16> to vector<32x64xbf16>
    %156 = arith.truncf %130 : vector<64x256xf32> to vector<64x256xbf16>
    %cst_97 = arith.constant dense<0.000000e+00> : vector<32x256xf32>
    %157 = tpu.matmul %155, %156, %cst_97 {dimension_numbers = #tpu.dot_dimension_numbers<[1], [0], [0], [1], [0, 0, 1, 1], [], []>} : vector<32x64xbf16>, vector<64x256xbf16>, vector<32x256xf32> -> vector<32x256xf32>
    %158 = arith.addf %153, %157 : vector<32x256xf32>
    %c5_98 = arith.constant 5 : index
    %c0_99 = arith.constant 0 : index
    %c0_100 = arith.constant 0 : index
    %159 = vector.load %arg6[%c5_98, %c0_99, %c0_100] : memref<9x32x64xbf16, #tpu.memory_space<vmem>>, vector<1x32x64xbf16>
    %160 = vector.shape_cast %159 : vector<1x32x64xbf16> to vector<32x64xbf16>
    %c255_i32_101 = arith.constant 255 : i32
    %161 = tpu.dynamic_rotate %130 by %c255_i32_101 dim 1 : vector<64x256xf32>, i32 -> vector<64x256xf32>
    %162 = arith.truncf %161 : vector<64x256xf32> to vector<64x256xbf16>
    %cst_102 = arith.constant dense<0.000000e+00> : vector<32x256xf32>
    %163 = tpu.matmul %160, %162, %cst_102 {dimension_numbers = #tpu.dot_dimension_numbers<[1], [0], [0], [1], [0, 0, 1, 1], [], []>} : vector<32x64xbf16>, vector<64x256xbf16>, vector<32x256xf32> -> vector<32x256xf32>
    %164 = arith.addf %158, %163 : vector<32x256xf32>
    %c6_103 = arith.constant 6 : index
    %c0_104 = arith.constant 0 : index
    %c0_105 = arith.constant 0 : index
    %165 = vector.load %arg6[%c6_103, %c0_104, %c0_105] : memref<9x32x64xbf16, #tpu.memory_space<vmem>>, vector<1x32x64xbf16>
    %166 = vector.shape_cast %165 : vector<1x32x64xbf16> to vector<32x64xbf16>
    %c241_i32_106 = arith.constant 241 : i32
    %167 = tpu.dynamic_rotate %130 by %c241_i32_106 dim 1 : vector<64x256xf32>, i32 -> vector<64x256xf32>
    %168 = arith.truncf %167 : vector<64x256xf32> to vector<64x256xbf16>
    %cst_107 = arith.constant dense<0.000000e+00> : vector<32x256xf32>
    %169 = tpu.matmul %166, %168, %cst_107 {dimension_numbers = #tpu.dot_dimension_numbers<[1], [0], [0], [1], [0, 0, 1, 1], [], []>} : vector<32x64xbf16>, vector<64x256xbf16>, vector<32x256xf32> -> vector<32x256xf32>
    %170 = arith.addf %164, %169 : vector<32x256xf32>
    %c7_108 = arith.constant 7 : index
    %c0_109 = arith.constant 0 : index
    %c0_110 = arith.constant 0 : index
    %171 = vector.load %arg6[%c7_108, %c0_109, %c0_110] : memref<9x32x64xbf16, #tpu.memory_space<vmem>>, vector<1x32x64xbf16>
    %172 = vector.shape_cast %171 : vector<1x32x64xbf16> to vector<32x64xbf16>
    %c240_i32_111 = arith.constant 240 : i32
    %173 = tpu.dynamic_rotate %130 by %c240_i32_111 dim 1 : vector<64x256xf32>, i32 -> vector<64x256xf32>
    %174 = arith.truncf %173 : vector<64x256xf32> to vector<64x256xbf16>
    %cst_112 = arith.constant dense<0.000000e+00> : vector<32x256xf32>
    %175 = tpu.matmul %172, %174, %cst_112 {dimension_numbers = #tpu.dot_dimension_numbers<[1], [0], [0], [1], [0, 0, 1, 1], [], []>} : vector<32x64xbf16>, vector<64x256xbf16>, vector<32x256xf32> -> vector<32x256xf32>
    %176 = arith.addf %170, %175 : vector<32x256xf32>
    %c8_113 = arith.constant 8 : index
    %c0_114 = arith.constant 0 : index
    %c0_115 = arith.constant 0 : index
    %177 = vector.load %arg6[%c8_113, %c0_114, %c0_115] : memref<9x32x64xbf16, #tpu.memory_space<vmem>>, vector<1x32x64xbf16>
    %178 = vector.shape_cast %177 : vector<1x32x64xbf16> to vector<32x64xbf16>
    %c239_i32_116 = arith.constant 239 : i32
    %179 = tpu.dynamic_rotate %130 by %c239_i32_116 dim 1 : vector<64x256xf32>, i32 -> vector<64x256xf32>
    %180 = arith.truncf %179 : vector<64x256xf32> to vector<64x256xbf16>
    %cst_117 = arith.constant dense<0.000000e+00> : vector<32x256xf32>
    %181 = tpu.matmul %178, %180, %cst_117 {dimension_numbers = #tpu.dot_dimension_numbers<[1], [0], [0], [1], [0, 0, 1, 1], [], []>} : vector<32x64xbf16>, vector<64x256xbf16>, vector<32x256xf32> -> vector<32x256xf32>
    %182 = arith.addf %176, %181 : vector<32x256xf32>
    %c0_118 = arith.constant 0 : index
    %c0_119 = arith.constant 0 : index
    %183 = vector.load %arg7[%c0_118, %c0_119] : memref<32x1xf32, #tpu.memory_space<vmem>>, vector<32x1xf32>
    %184 = vector.broadcast %183 : vector<32x1xf32> to vector<32x256xf32>
    %185 = arith.addf %182, %184 : vector<32x256xf32>
    %cst_120 = arith.constant 0.000000e+00 : f32
    %186 = vector.broadcast %cst_120 : f32 to vector<32x256xf32>
    %187 = arith.maximumf %185, %186 : vector<32x256xf32>
    %c0_121 = arith.constant 0 : index
    %c0_122 = arith.constant 0 : index
    %188 = vector.load %arg10[%c0_121, %c0_122] : memref<1x256xf32, #tpu.memory_space<vmem>>, vector<1x256xf32>
    %189 = vector.broadcast %188 : vector<1x256xf32> to vector<32x256xf32>
    %190 = arith.mulf %187, %189 : vector<32x256xf32>
    %c0_123 = arith.constant 0 : index
    %c0_124 = arith.constant 0 : index
    %c0_125 = arith.constant 0 : index
    %191 = vector.load %arg8[%c0_123, %c0_124, %c0_125] : memref<9x2x32xbf16, #tpu.memory_space<vmem>>, vector<1x2x32xbf16>
    %192 = vector.shape_cast %191 : vector<1x2x32xbf16> to vector<2x32xbf16>
    %c17_i32_126 = arith.constant 17 : i32
    %193 = tpu.dynamic_rotate %190 by %c17_i32_126 dim 1 : vector<32x256xf32>, i32 -> vector<32x256xf32>
    %194 = arith.truncf %193 : vector<32x256xf32> to vector<32x256xbf16>
    %cst_127 = arith.constant dense<0.000000e+00> : vector<2x256xf32>
    %195 = tpu.matmul %192, %194, %cst_127 {dimension_numbers = #tpu.dot_dimension_numbers<[1], [0], [0], [1], [0, 0, 1, 1], [], []>} : vector<2x32xbf16>, vector<32x256xbf16>, vector<2x256xf32> -> vector<2x256xf32>
    %c1_128 = arith.constant 1 : index
    %c0_129 = arith.constant 0 : index
    %c0_130 = arith.constant 0 : index
    %196 = vector.load %arg8[%c1_128, %c0_129, %c0_130] : memref<9x2x32xbf16, #tpu.memory_space<vmem>>, vector<1x2x32xbf16>
    %197 = vector.shape_cast %196 : vector<1x2x32xbf16> to vector<2x32xbf16>
    %c16_i32_131 = arith.constant 16 : i32
    %198 = tpu.dynamic_rotate %190 by %c16_i32_131 dim 1 : vector<32x256xf32>, i32 -> vector<32x256xf32>
    %199 = arith.truncf %198 : vector<32x256xf32> to vector<32x256xbf16>
    %cst_132 = arith.constant dense<0.000000e+00> : vector<2x256xf32>
    %200 = tpu.matmul %197, %199, %cst_132 {dimension_numbers = #tpu.dot_dimension_numbers<[1], [0], [0], [1], [0, 0, 1, 1], [], []>} : vector<2x32xbf16>, vector<32x256xbf16>, vector<2x256xf32> -> vector<2x256xf32>
    %201 = arith.addf %195, %200 : vector<2x256xf32>
    %c2_133 = arith.constant 2 : index
    %c0_134 = arith.constant 0 : index
    %c0_135 = arith.constant 0 : index
    %202 = vector.load %arg8[%c2_133, %c0_134, %c0_135] : memref<9x2x32xbf16, #tpu.memory_space<vmem>>, vector<1x2x32xbf16>
    %203 = vector.shape_cast %202 : vector<1x2x32xbf16> to vector<2x32xbf16>
    %c15_i32_136 = arith.constant 15 : i32
    %204 = tpu.dynamic_rotate %190 by %c15_i32_136 dim 1 : vector<32x256xf32>, i32 -> vector<32x256xf32>
    %205 = arith.truncf %204 : vector<32x256xf32> to vector<32x256xbf16>
    %cst_137 = arith.constant dense<0.000000e+00> : vector<2x256xf32>
    %206 = tpu.matmul %203, %205, %cst_137 {dimension_numbers = #tpu.dot_dimension_numbers<[1], [0], [0], [1], [0, 0, 1, 1], [], []>} : vector<2x32xbf16>, vector<32x256xbf16>, vector<2x256xf32> -> vector<2x256xf32>
    %207 = arith.addf %201, %206 : vector<2x256xf32>
    %c3_138 = arith.constant 3 : index
    %c0_139 = arith.constant 0 : index
    %c0_140 = arith.constant 0 : index
    %208 = vector.load %arg8[%c3_138, %c0_139, %c0_140] : memref<9x2x32xbf16, #tpu.memory_space<vmem>>, vector<1x2x32xbf16>
    %209 = vector.shape_cast %208 : vector<1x2x32xbf16> to vector<2x32xbf16>
    %c1_i32_141 = arith.constant 1 : i32
    %210 = tpu.dynamic_rotate %190 by %c1_i32_141 dim 1 : vector<32x256xf32>, i32 -> vector<32x256xf32>
    %211 = arith.truncf %210 : vector<32x256xf32> to vector<32x256xbf16>
    %cst_142 = arith.constant dense<0.000000e+00> : vector<2x256xf32>
    %212 = tpu.matmul %209, %211, %cst_142 {dimension_numbers = #tpu.dot_dimension_numbers<[1], [0], [0], [1], [0, 0, 1, 1], [], []>} : vector<2x32xbf16>, vector<32x256xbf16>, vector<2x256xf32> -> vector<2x256xf32>
    %213 = arith.addf %207, %212 : vector<2x256xf32>
    %c4_143 = arith.constant 4 : index
    %c0_144 = arith.constant 0 : index
    %c0_145 = arith.constant 0 : index
    %214 = vector.load %arg8[%c4_143, %c0_144, %c0_145] : memref<9x2x32xbf16, #tpu.memory_space<vmem>>, vector<1x2x32xbf16>
    %215 = vector.shape_cast %214 : vector<1x2x32xbf16> to vector<2x32xbf16>
    %216 = arith.truncf %190 : vector<32x256xf32> to vector<32x256xbf16>
    %cst_146 = arith.constant dense<0.000000e+00> : vector<2x256xf32>
    %217 = tpu.matmul %215, %216, %cst_146 {dimension_numbers = #tpu.dot_dimension_numbers<[1], [0], [0], [1], [0, 0, 1, 1], [], []>} : vector<2x32xbf16>, vector<32x256xbf16>, vector<2x256xf32> -> vector<2x256xf32>
    %218 = arith.addf %213, %217 : vector<2x256xf32>
    %c5_147 = arith.constant 5 : index
    %c0_148 = arith.constant 0 : index
    %c0_149 = arith.constant 0 : index
    %219 = vector.load %arg8[%c5_147, %c0_148, %c0_149] : memref<9x2x32xbf16, #tpu.memory_space<vmem>>, vector<1x2x32xbf16>
    %220 = vector.shape_cast %219 : vector<1x2x32xbf16> to vector<2x32xbf16>
    %c255_i32_150 = arith.constant 255 : i32
    %221 = tpu.dynamic_rotate %190 by %c255_i32_150 dim 1 : vector<32x256xf32>, i32 -> vector<32x256xf32>
    %222 = arith.truncf %221 : vector<32x256xf32> to vector<32x256xbf16>
    %cst_151 = arith.constant dense<0.000000e+00> : vector<2x256xf32>
    %223 = tpu.matmul %220, %222, %cst_151 {dimension_numbers = #tpu.dot_dimension_numbers<[1], [0], [0], [1], [0, 0, 1, 1], [], []>} : vector<2x32xbf16>, vector<32x256xbf16>, vector<2x256xf32> -> vector<2x256xf32>
    %224 = arith.addf %218, %223 : vector<2x256xf32>
    %c6_152 = arith.constant 6 : index
    %c0_153 = arith.constant 0 : index
    %c0_154 = arith.constant 0 : index
    %225 = vector.load %arg8[%c6_152, %c0_153, %c0_154] : memref<9x2x32xbf16, #tpu.memory_space<vmem>>, vector<1x2x32xbf16>
    %226 = vector.shape_cast %225 : vector<1x2x32xbf16> to vector<2x32xbf16>
    %c241_i32_155 = arith.constant 241 : i32
    %227 = tpu.dynamic_rotate %190 by %c241_i32_155 dim 1 : vector<32x256xf32>, i32 -> vector<32x256xf32>
    %228 = arith.truncf %227 : vector<32x256xf32> to vector<32x256xbf16>
    %cst_156 = arith.constant dense<0.000000e+00> : vector<2x256xf32>
    %229 = tpu.matmul %226, %228, %cst_156 {dimension_numbers = #tpu.dot_dimension_numbers<[1], [0], [0], [1], [0, 0, 1, 1], [], []>} : vector<2x32xbf16>, vector<32x256xbf16>, vector<2x256xf32> -> vector<2x256xf32>
    %230 = arith.addf %224, %229 : vector<2x256xf32>
    %c7_157 = arith.constant 7 : index
    %c0_158 = arith.constant 0 : index
    %c0_159 = arith.constant 0 : index
    %231 = vector.load %arg8[%c7_157, %c0_158, %c0_159] : memref<9x2x32xbf16, #tpu.memory_space<vmem>>, vector<1x2x32xbf16>
    %232 = vector.shape_cast %231 : vector<1x2x32xbf16> to vector<2x32xbf16>
    %c240_i32_160 = arith.constant 240 : i32
    %233 = tpu.dynamic_rotate %190 by %c240_i32_160 dim 1 : vector<32x256xf32>, i32 -> vector<32x256xf32>
    %234 = arith.truncf %233 : vector<32x256xf32> to vector<32x256xbf16>
    %cst_161 = arith.constant dense<0.000000e+00> : vector<2x256xf32>
    %235 = tpu.matmul %232, %234, %cst_161 {dimension_numbers = #tpu.dot_dimension_numbers<[1], [0], [0], [1], [0, 0, 1, 1], [], []>} : vector<2x32xbf16>, vector<32x256xbf16>, vector<2x256xf32> -> vector<2x256xf32>
    %236 = arith.addf %230, %235 : vector<2x256xf32>
    %c8_162 = arith.constant 8 : index
    %c0_163 = arith.constant 0 : index
    %c0_164 = arith.constant 0 : index
    %237 = vector.load %arg8[%c8_162, %c0_163, %c0_164] : memref<9x2x32xbf16, #tpu.memory_space<vmem>>, vector<1x2x32xbf16>
    %238 = vector.shape_cast %237 : vector<1x2x32xbf16> to vector<2x32xbf16>
    %c239_i32_165 = arith.constant 239 : i32
    %239 = tpu.dynamic_rotate %190 by %c239_i32_165 dim 1 : vector<32x256xf32>, i32 -> vector<32x256xf32>
    %240 = arith.truncf %239 : vector<32x256xf32> to vector<32x256xbf16>
    %cst_166 = arith.constant dense<0.000000e+00> : vector<2x256xf32>
    %241 = tpu.matmul %238, %240, %cst_166 {dimension_numbers = #tpu.dot_dimension_numbers<[1], [0], [0], [1], [0, 0, 1, 1], [], []>} : vector<2x32xbf16>, vector<32x256xbf16>, vector<2x256xf32> -> vector<2x256xf32>
    %242 = arith.addf %236, %241 : vector<2x256xf32>
    %c0_167 = arith.constant 0 : index
    %c0_168 = arith.constant 0 : index
    %243 = vector.load %arg9[%c0_167, %c0_168] : memref<2x1xf32, #tpu.memory_space<vmem>>, vector<2x1xf32>
    %244 = vector.broadcast %243 : vector<2x1xf32> to vector<2x256xf32>
    %245 = arith.addf %242, %244 : vector<2x256xf32>
    %cst_169 = arith.constant 0.000000e+00 : f32
    %246 = vector.broadcast %cst_169 : f32 to vector<2x256xf32>
    %247 = arith.maximumf %245, %246 : vector<2x256xf32>
    %248 = vector.extract_strided_slice %247 {offsets = [0, 0], sizes = [1, 256], strides = [1, 1]} : vector<2x256xf32> to vector<1x256xf32>
    %249 = vector.extract_strided_slice %247 {offsets = [1, 0], sizes = [1, 256], strides = [1, 1]} : vector<2x256xf32> to vector<1x256xf32>
    %250 = arith.subf %249, %248 : vector<1x256xf32>
    %251 = math.absf %250 : vector<1x256xf32>
    %cst_170 = arith.constant 0.000000e+00 : f32
    %252 = vector.broadcast %cst_170 : f32 to vector<1x256xf32>
    %253 = arith.subf %252, %251 : vector<1x256xf32>
    %254 = math.exp %253 : vector<1x256xf32>
    %cst_171 = arith.constant 1.000000e+00 : f32
    %255 = vector.broadcast %cst_171 : f32 to vector<1x256xf32>
    %256 = arith.addf %255, %254 : vector<1x256xf32>
    %257 = tpu.reciprocal %256 {approx = true} : vector<1x256xf32> -> vector<1x256xf32>
    %cst_172 = arith.constant 0.000000e+00 : f32
    %258 = vector.broadcast %cst_172 : f32 to vector<1x256xf32>
    %259 = arith.cmpf oge, %250, %258 : vector<1x256xf32>
    %260 = arith.mulf %254, %257 : vector<1x256xf32>
    %261 = arith.select %259, %257, %260 : vector<1x256xi1>, vector<1x256xf32>
    %cst_173 = arith.constant 1.000000e+00 : f32
    %262 = vector.broadcast %cst_173 : f32 to vector<1x256xf32>
    %263 = arith.subf %262, %261 : vector<1x256xf32>
    %264 = tpu.concatenate %263, %261 in 0 : vector<1x256xf32>, vector<1x256xf32> -> vector<2x256xf32>
    %c0_174 = arith.constant 0 : index
    %c0_175 = arith.constant 0 : index
    %c0_176 = arith.constant 0 : index
    %265 = vector.load %arg12[%c0_174, %c0_175, %c0_176] : memref<1x2x256xf32, #tpu.memory_space<vmem>>, vector<1x2x256xf32>
    %266 = vector.shape_cast %265 : vector<1x2x256xf32> to vector<2x256xf32>
    %267 = vector.shape_cast %264 : vector<2x256xf32> to vector<1x2x256xf32>
    tpu.vector_store %arg12[%c0_174, %c0_175, %c0_176], %267 {strides = array<i32>} : memref<1x2x256xf32, #tpu.memory_space<vmem>>, vector<1x2x256xf32>,
    return
  }
  func.func @transform_0(%arg0: i32) -> (i32, i32, i32) {
    %c0_i32 = arith.constant 0 : i32
    %c0_i32_0 = arith.constant 0 : i32
    %c0_i32_1 = arith.constant 0 : i32
    return %arg0, %c0_i32, %c0_i32_0 : i32, i32, i32
  }
  func.func @transform_1(%arg0: i32) -> (i32, i32, i32) {
    %c0_i32 = arith.constant 0 : i32
    %c0_i32_0 = arith.constant 0 : i32
    %c0_i32_1 = arith.constant 0 : i32
    %c0_i32_2 = arith.constant 0 : i32
    return %c0_i32, %c0_i32_0, %c0_i32_1 : i32, i32, i32
  }
  func.func @transform_2(%arg0: i32) -> (i32, i32) {
    %c0_i32 = arith.constant 0 : i32
    %c0_i32_0 = arith.constant 0 : i32
    %c0_i32_1 = arith.constant 0 : i32
    return %c0_i32, %c0_i32_0 : i32, i32
  }
  func.func @transform_3(%arg0: i32) -> (i32, i32, i32) {
    %c0_i32 = arith.constant 0 : i32
    %c0_i32_0 = arith.constant 0 : i32
    %c0_i32_1 = arith.constant 0 : i32
    %c0_i32_2 = arith.constant 0 : i32
    return %c0_i32, %c0_i32_0, %c0_i32_1 : i32, i32, i32
  }
  func.func @transform_4(%arg0: i32) -> (i32, i32) {
    %c0_i32 = arith.constant 0 : i32
    %c0_i32_0 = arith.constant 0 : i32
    %c0_i32_1 = arith.constant 0 : i32
    return %c0_i32, %c0_i32_0 : i32, i32
  }
  func.func @transform_5(%arg0: i32) -> (i32, i32, i32) {
    %c0_i32 = arith.constant 0 : i32
    %c0_i32_0 = arith.constant 0 : i32
    %c0_i32_1 = arith.constant 0 : i32
    %c0_i32_2 = arith.constant 0 : i32
    return %c0_i32, %c0_i32_0, %c0_i32_1 : i32, i32, i32
  }
  func.func @transform_6(%arg0: i32) -> (i32, i32) {
    %c0_i32 = arith.constant 0 : i32
    %c0_i32_0 = arith.constant 0 : i32
    %c0_i32_1 = arith.constant 0 : i32
    return %c0_i32, %c0_i32_0 : i32, i32
  }
  func.func @transform_7(%arg0: i32) -> (i32, i32, i32) {
    %c0_i32 = arith.constant 0 : i32
    %c0_i32_0 = arith.constant 0 : i32
    %c0_i32_1 = arith.constant 0 : i32
    %c0_i32_2 = arith.constant 0 : i32
    return %c0_i32, %c0_i32_0, %c0_i32_1 : i32, i32, i32
  }
  func.func @transform_8(%arg0: i32) -> (i32, i32) {
    %c0_i32 = arith.constant 0 : i32
    %c0_i32_0 = arith.constant 0 : i32
    %c0_i32_1 = arith.constant 0 : i32
    return %c0_i32, %c0_i32_0 : i32, i32
  }
  func.func @transform_9(%arg0: i32) -> (i32, i32) {
    %c0_i32 = arith.constant 0 : i32
    %c0_i32_0 = arith.constant 0 : i32
    %c0_i32_1 = arith.constant 0 : i32
    return %c0_i32, %c0_i32_0 : i32, i32
  }
  func.func @transform_10(%arg0: i32) -> (i32, i32) {
    %c0_i32 = arith.constant 0 : i32
    %c0_i32_0 = arith.constant 0 : i32
    %c0_i32_1 = arith.constant 0 : i32
    return %c0_i32, %c0_i32_0 : i32, i32
  }
  func.func @transform_11(%arg0: i32) -> (i32, i32, i32) {
    %c0_i32 = arith.constant 0 : i32
    %c0_i32_0 = arith.constant 0 : i32
    %c0_i32_1 = arith.constant 0 : i32
    return %arg0, %c0_i32, %c0_i32_0 : i32, i32, i32
  }
}

</mosaic_0001>

<llo_original>
// kernel: generator_forward.1
$region0: #{generator_forward.1}
  #allocation0 [shape = 'u32[]', space=smem, size = 0x4, offset = 0x4, fixed_abs, tag = 'smem constant byte address 0x4 - core index']
  #allocation1 [shape = 'u32[144,128]{1,0:T(1,128)}', space=vmem, size = 0x12000, scoped, tag = 'internal scratch']
  %s0 = inlined_call_operand.vmem [shape: f32[2,1,256], index: 0, kind: input, shape index: {}]
  %s1 = inlined_call_operand.vmem [shape: f32[9,32,1], index: 1, kind: input, shape index: {}]
  %s2 = inlined_call_operand.vmem [shape: f32[32,1], index: 2, kind: input, shape index: {}]
  %s3 = inlined_call_operand.vmem [shape: bf16[9,64,32], index: 3, kind: input, shape index: {}]
  %s4 = inlined_call_operand.vmem [shape: f32[64,1], index: 4, kind: input, shape index: {}]
  %s5 = inlined_call_operand.vmem [shape: bf16[9,32,64], index: 5, kind: input, shape index: {}]
  %s6 = inlined_call_operand.vmem [shape: f32[32,1], index: 6, kind: input, shape index: {}]
  %s7 = inlined_call_operand.vmem [shape: bf16[9,2,32], index: 7, kind: input, shape index: {}]
  %s8 = inlined_call_operand.vmem [shape: f32[2,1], index: 8, kind: input, shape index: {}]
  %s9 = inlined_call_operand.vmem [shape: f32[1,256], index: 9, kind: input, shape index: {}]
  %s10 = inlined_call_operand.vmem [shape: f32[1,256], index: 10, kind: input, shape index: {}]
  %s11 = inlined_call_operand.vmem [shape: f32[2,2,256], index: 11, kind: output, shape index: {}]
  %s12 = sld [smem:[#allocation0]]
  $region77: #{generator_forward.1} parent=0
    _
  %s14 = ssub.s32 1, %s12
  %s15 = scalar_select 0, %s14, %s12
  loop: start=0, step=1, limit=4
  $region2: #{generator_forward.1} parent=0 // loop_pre_header
    _
  $region3: #{generator_forward.1} parent=0 // loop_header
    %s17 = sphi 0, %s21
    %p18 = scmp.ge.s32.totalorder %s17, 4
    %s27 = sphi 0, %s29
    %s30 = sphi 0, %s27
    %s31 = sphi 0, %s30
    %s47 = sphi 0, %s31
    %s51 = sphi 0, %s51
    %s53 = sphi 0, %s51
    %s54 = sphi 0, %s53
    %s68 = sphi 0, %s54
    %s72 = sphi 0, %s72
    %s74 = sphi 0, %s72
    %s75 = sphi 0, %s74
    %s89 = sphi 0, %s75
    %s93 = sphi 0, %s93
    %s95 = sphi 0, %s93
    %s96 = sphi 0, %s95
    %s110 = sphi 0, %s96
    %s114 = sphi 0, %s114
    %s116 = sphi 0, %s114
    %s117 = sphi 0, %s116
    %s131 = sphi 0, %s117
    %s135 = sphi 0, %s135
    %s137 = sphi 0, %s135
    %s138 = sphi 0, %s137
    %s152 = sphi 0, %s138
    %s156 = sphi 0, %s156
    %s158 = sphi 0, %s156
    %s159 = sphi 0, %s158
    %s173 = sphi 0, %s159
    %s177 = sphi 0, %s177
    %s179 = sphi 0, %s177
    %s180 = sphi 0, %s179
    %s194 = sphi 0, %s180
    %s198 = sphi 0, %s198
    %s200 = sphi 0, %s198
    %s201 = sphi 0, %s200
    %s215 = sphi 0, %s201
    %s219 = sphi 0, %s219
    %s221 = sphi 0, %s219
    %s222 = sphi 0, %s221
    %s236 = sphi 0, %s222
    %s240 = sphi 0, %s240
    %s242 = sphi 0, %s240
    %s243 = sphi 0, %s242
    %s257 = sphi 0, %s243
    %s263 = sphi 0, %s265
    %s266 = sphi 0, %s263
    %s267 = sphi 0, %s266
    %s283 = sphi 0, %s267
  $region4: #{generator_forward.1} parent=0 // loop_header_branch
    %20 = sbr.rel (%p18) target = $region8
  $region5: #{generator_forward.1} parent=0 // loop_body
    %s22 = ssub.s32 %s17, 1
    %s23 = ssub.s32 %s17, 2
    %s24 = sadd.s32 %s17, 1
    %s25 = ssub.s32 %s17, %s24
    %p26 = scmp.eq.s32.totalorder %s25, 0
    %s28 = sadd.s32 %s27, 1
    %s29 = scalar_select %p26, %s27, %s28
    %p32 = pneg %p26
    %p33 = scmp.eq.s32.totalorder %s17, 1
    %p34 = por %p32, %p33
    %p35 = scmp.ne.s32.totalorder %s27, %s30
    %p36 = scmp.eq.s32.totalorder %s17, 0
    %p37 = por %p35, %p36
    %p38 = scmp.ne.s32.totalorder %s27, %s30
    %p39 = scmp.eq.s32.totalorder %s22, 1
    %p40 = por %p38, %p39
    %p41 = scmp.ne.s32.totalorder %s30, %s31
    %p42 = scmp.eq.s32.totalorder %s22, 0
    %p43 = por %p41, %p42
    %p44 = scmp.ne.s32.totalorder %s30, %s31
    %p45 = scmp.eq.s32.totalorder %s23, 1
    %p46 = por %p44, %p45
    %p48 = scmp.ne.s32.totalorder %s31, %s47
    %p49 = scmp.eq.s32.totalorder %s23, 0
    %p50 = por %p48, %p49
    %s52 = sadd.s32 %s51, 1
    %p55 = scmp.eq.s32.totalorder %s17, 1
    %p56 = scmp.ne.s32.totalorder %s51, %s53
    %p57 = scmp.eq.s32.totalorder %s17, 0
    %p58 = por %p56, %p57
    %p59 = scmp.ne.s32.totalorder %s51, %s53
    %p60 = scmp.eq.s32.totalorder %s22, 1
    %p61 = por %p59, %p60
    %p62 = scmp.ne.s32.totalorder %s53, %s54
    %p63 = scmp.eq.s32.totalorder %s22, 0
    %p64 = por %p62, %p63
    %p65 = scmp.ne.s32.totalorder %s53, %s54
    %p66 = scmp.eq.s32.totalorder %s23, 1
    %p67 = por %p65, %p66
    %p69 = scmp.ne.s32.totalorder %s54, %s68
    %p70 = scmp.eq.s32.totalorder %s23, 0
    %p71 = por %p69, %p70
    %s73 = sadd.s32 %s72, 1
    %p76 = scmp.eq.s32.totalorder %s17, 1
    %p77 = scmp.ne.s32.totalorder %s72, %s74
    %p78 = scmp.eq.s32.totalorder %s17, 0
    %p79 = por %p77, %p78
    %p80 = scmp.ne.s32.totalorder %s72, %s74
    %p81 = scmp.eq.s32.totalorder %s22, 1
    %p82 = por %p80, %p81
    %p83 = scmp.ne.s32.totalorder %s74, %s75
    %p84 = scmp.eq.s32.totalorder %s22, 0
    %p85 = por %p83, %p84
    %p86 = scmp.ne.s32.totalorder %s74, %s75
    %p87 = scmp.eq.s32.totalorder %s23, 1
    %p88 = por %p86, %p87
    %p90 = scmp.ne.s32.totalorder %s75, %s89
    %p91 = scmp.eq.s32.totalorder %s23, 0
    %p92 = por %p90, %p91
    %s94 = sadd.s32 %s93, 1
    %p97 = scmp.eq.s32.totalorder %s17, 1
    %p98 = scmp.ne.s32.totalorder %s93, %s95
    %p99 = scmp.eq.s32.totalorder %s17, 0
    %p100 = por %p98, %p99
    %p101 = scmp.ne.s32.totalorder %s93, %s95
    %p102 = scmp.eq.s32.totalorder %s22, 1
    %p103 = por %p101, %p102
    %p104 = scmp.ne.s32.totalorder %s95, %s96
    %p105 = scmp.eq.s32.totalorder %s22, 0
    %p106 = por %p104, %p105
    %p107 = scmp.ne.s32.totalorder %s95, %s96
    %p108 = scmp.eq.s32.totalorder %s23, 1
    %p109 = por %p107, %p108
    %p111 = scmp.ne.s32.totalorder %s96, %s110
    %p112 = scmp.eq.s32.totalorder %s23, 0
    %p113 = por %p111, %p112
    %s115 = sadd.s32 %s114, 1
    %p118 = scmp.eq.s32.totalorder %s17, 1
    %p119 = scmp.ne.s32.totalorder %s114, %s116
    %p120 = scmp.eq.s32.totalorder %s17, 0
    %p121 = por %p119, %p120
    %p122 = scmp.ne.s32.totalorder %s114, %s116
    %p123 = scmp.eq.s32.totalorder %s22, 1
    %p124 = por %p122, %p123
    %p125 = scmp.ne.s32.totalorder %s116, %s117
    %p126 = scmp.eq.s32.totalorder %s22, 0
    %p127 = por %p125, %p126
    %p128 = scmp.ne.s32.totalorder %s116, %s117
    %p129 = scmp.eq.s32.totalorder %s23, 1
    %p130 = por %p128, %p129
    %p132 = scmp.ne.s32.totalorder %s117, %s131
    %p133 = scmp.eq.s32.totalorder %s23, 0
    %p134 = por %p132, %p133
    %s136 = sadd.s32 %s135, 1
    %p139 = scmp.eq.s32.totalorder %s17, 1
    %p140 = scmp.ne.s32.totalorder %s135, %s137
    %p141 = scmp.eq.s32.totalorder %s17, 0
    %p142 = por %p140, %p141
    %p143 = scmp.ne.s32.totalorder %s135, %s137
    %p144 = scmp.eq.s32.totalorder %s22, 1
    %p145 = por %p143, %p144
    %p146 = scmp.ne.s32.totalorder %s137, %s138
    %p147 = scmp.eq.s32.totalorder %s22, 0
    %p148 = por %p146, %p147
    %p149 = scmp.ne.s32.totalorder %s137, %s138
    %p150 = scmp.eq.s32.totalorder %s23, 1
    %p151 = por %p149, %p150
    %p153 = scmp.ne.s32.totalorder %s138, %s152
    %p154 = scmp.eq.s32.totalorder %s23, 0
    %p155 = por %p153, %p154
    %s157 = sadd.s32 %s156, 1
    %p160 = scmp.eq.s32.totalorder %s17, 1
    %p161 = scmp.ne.s32.totalorder %s156, %s158
    %p162 = scmp.eq.s32.totalorder %s17, 0
    %p163 = por %p161, %p162
    %p164 = scmp.ne.s32.totalorder %s156, %s158
    %p165 = scmp.eq.s32.totalorder %s22, 1
    %p166 = por %p164, %p165
    %p167 = scmp.ne.s32.totalorder %s158, %s159
    %p168 = scmp.eq.s32.totalorder %s22, 0
    %p169 = por %p167, %p168
    %p170 = scmp.ne.s32.totalorder %s158, %s159
    %p171 = scmp.eq.s32.totalorder %s23, 1
    %p172 = por %p170, %p171
    %p174 = scmp.ne.s32.totalorder %s159, %s173
    %p175 = scmp.eq.s32.totalorder %s23, 0
    %p176 = por %p174, %p175
    %s178 = sadd.s32 %s177, 1
    %p181 = scmp.eq.s32.totalorder %s17, 1
    %p182 = scmp.ne.s32.totalorder %s177, %s179
    %p183 = scmp.eq.s32.totalorder %s17, 0
    %p184 = por %p182, %p183
    %p185 = scmp.ne.s32.totalorder %s177, %s179
    %p186 = scmp.eq.s32.totalorder %s22, 1
    %p187 = por %p185, %p186
    %p188 = scmp.ne.s32.totalorder %s179, %s180
    %p189 = scmp.eq.s32.totalorder %s22, 0
    %p190 = por %p188, %p189
    %p191 = scmp.ne.s32.totalorder %s179, %s180
    %p192 = scmp.eq.s32.totalorder %s23, 1
    %p193 = por %p191, %p192
    %p195 = scmp.ne.s32.totalorder %s180, %s194
    %p196 = scmp.eq.s32.totalorder %s23, 0
    %p197 = por %p195, %p196
    %s199 = sadd.s32 %s198, 1
    %p202 = scmp.eq.s32.totalorder %s17, 1
    %p203 = scmp.ne.s32.totalorder %s198, %s200
    %p204 = scmp.eq.s32.totalorder %s17, 0
    %p205 = por %p203, %p204
    %p206 = scmp.ne.s32.totalorder %s198, %s200
    %p207 = scmp.eq.s32.totalorder %s22, 1
    %p208 = por %p206, %p207
    %p209 = scmp.ne.s32.totalorder %s200, %s201
    %p210 = scmp.eq.s32.totalorder %s22, 0
    %p211 = por %p209, %p210
    %p212 = scmp.ne.s32.totalorder %s200, %s201
    %p213 = scmp.eq.s32.totalorder %s23, 1
    %p214 = por %p212, %p213
    %p216 = scmp.ne.s32.totalorder %s201, %s215
    %p217 = scmp.eq.s32.totalorder %s23, 0
    %p218 = por %p216, %p217
    %s220 = sadd.s32 %s219, 1
    %p223 = scmp.eq.s32.totalorder %s17, 1
    %p224 = scmp.ne.s32.totalorder %s219, %s221
    %p225 = scmp.eq.s32.totalorder %s17, 0
    %p226 = por %p224, %p225
    %p227 = scmp.ne.s32.totalorder %s219, %s221
    %p228 = scmp.eq.s32.totalorder %s22, 1
    %p229 = por %p227, %p228
    %p230 = scmp.ne.s32.totalorder %s221, %s222
    %p231 = scmp.eq.s32.totalorder %s22, 0
    %p232 = por %p230, %p231
    %p233 = scmp.ne.s32.totalorder %s221, %s222
    %p234 = scmp.eq.s32.totalorder %s23, 1
    %p235 = por %p233, %p234
    %p237 = scmp.ne.s32.totalorder %s222, %s236
    %p238 = scmp.eq.s32.totalorder %s23, 0
    %p239 = por %p237, %p238
    %s241 = sadd.s32 %s240, 1
    %p244 = scmp.eq.s32.totalorder %s17, 1
    %p245 = scmp.ne.s32.totalorder %s240, %s242
    %p246 = scmp.eq.s32.totalorder %s17, 0
    %p247 = por %p245, %p246
    %p248 = scmp.ne.s32.totalorder %s240, %s242
    %p249 = scmp.eq.s32.totalorder %s22, 1
    %p250 = por %p248, %p249
    %p251 = scmp.ne.s32.totalorder %s242, %s243
    %p252 = scmp.eq.s32.totalorder %s22, 0
    %p253 = por %p251, %p252
    %p254 = scmp.ne.s32.totalorder %s242, %s243
    %p255 = scmp.eq.s32.totalorder %s23, 1
    %p256 = por %p254, %p255
    %p258 = scmp.ne.s32.totalorder %s243, %s257
    %p259 = scmp.eq.s32.totalorder %s23, 0
    %p260 = por %p258, %p259
    %s261 = ssub.s32 %s17, %s24
    %p262 = scmp.eq.s32.totalorder %s261, 0
    %s264 = sadd.s32 %s263, 1
    %s265 = scalar_select %p262, %s263, %s264
    %p268 = pneg %p262
    %p269 = scmp.eq.s32.totalorder %s17, 1
    %p270 = por %p268, %p269
    %p271 = scmp.ne.s32.totalorder %s263, %s266
    %p272 = scmp.eq.s32.totalorder %s17, 0
    %p273 = por %p271, %p272
    %p274 = scmp.ne.s32.totalorder %s263, %s266
    %p275 = scmp.eq.s32.totalorder %s22, 1
    %p276 = por %p274, %p275
    %p277 = scmp.ne.s32.totalorder %s266, %s267
    %p278 = scmp.eq.s32.totalorder %s22, 0
    %p279 = por %p277, %p278
    %p280 = scmp.ne.s32.totalorder %s266, %s267
    %p281 = scmp.eq.s32.totalorder %s23, 1
    %p282 = por %p280, %p281
    %p284 = scmp.ne.s32.totalorder %s267, %s283
    %p285 = scmp.eq.s32.totalorder %s23, 0
    %p286 = por %p284, %p285
    %p287 = scmp.le.s32.totalorder 1, %s17
    %p288 = scmp.lt.s32.totalorder %s17, 3
    %p289 = pnand %p287, %p288
    %p290 = pneg %p289
    // Predicated region
    $region9: #{generator_forward.1} parent=5 // pred_check
      _
    $region10: #{generator_forward.1} parent=5 // pred_check_branch
      %292 = sbr.rel (%p289) target = $region12
    $region11: #{generator_forward.1} parent=5 // pred_region
      %s293 = ssub.s32 %s17, 1
      // Predicated region
      $region13: #{generator_forward.1} parent=11 // pred_check
        %p294 = pneg %p64
      $region14: #{generator_forward.1} parent=11 // pred_check_branch
        %296 = sbr.rel (%p294) target = $region16
      $region15: #{generator_forward.1} parent=11 // pred_region
        _
      $region16: #{generator_forward.1} parent=11 // pred_fallthru
        _
      // Predicated region
      $region17: #{generator_forward.1} parent=11 // pred_check
        %p297 = pneg %p85
      $region18: #{generator_forward.1} parent=11 // pred_check_branch
        %299 = sbr.rel (%p297) target = $region20
      $region19: #{generator_forward.1} parent=11 // pred_region
        _
      $region20: #{generator_forward.1} parent=11 // pred_fallthru
        _
      // Predicated region
      $region21: #{generator_forward.1} parent=11 // pred_check
        %p300 = pneg %p106
      $region22: #{generator_forward.1} parent=11 // pred_check_branch
        %302 = sbr.rel (%p300) target = $region24
      $region23: #{generator_forward.1} parent=11 // pred_region
        _
      $region24: #{generator_forward.1} parent=11 // pred_fallthru
        _
      // Predicated region
      $region25: #{generator_forward.1} parent=11 // pred_check
        %p303 = pneg %p127
      $region26: #{generator_forward.1} parent=11 // pred_check_branch
        %305 = sbr.rel (%p303) target = $region28
      $region27: #{generator_forward.1} parent=11 // pred_region
        _
      $region28: #{generator_forward.1} parent=11 // pred_fallthru
        _
      // Predicated region
      $region29: #{generator_forward.1} parent=11 // pred_check
        %p306 = pneg %p148
      $region30: #{generator_forward.1} parent=11 // pred_check_branch
        %308 = sbr.rel (%p306) target = $region32
      $region31: #{generator_forward.1} parent=11 // pred_region
        _
      $region32: #{generator_forward.1} parent=11 // pred_fallthru
        _
      // Predicated region
      $region33: #{generator_forward.1} parent=11 // pred_check
        %p309 = pneg %p169
      $region34: #{generator_forward.1} parent=11 // pred_check_branch
        %311 = sbr.rel (%p309) target = $region36
      $region35: #{generator_forward.1} parent=11 // pred_region
        _
      $region36: #{generator_forward.1} parent=11 // pred_fallthru
        _
      // Predicated region
      $region37: #{generator_forward.1} parent=11 // pred_check
        %p312 = pneg %p190
      $region38: #{generator_forward.1} parent=11 // pred_check_branch
        %314 = sbr.rel (%p312) target = $region40
      $region39: #{generator_forward.1} parent=11 // pred_region
        _
      $region40: #{generator_forward.1} parent=11 // pred_fallthru
        _
      // Predicated region
      $region41: #{generator_forward.1} parent=11 // pred_check
        %p315 = pneg %p211
      $region42: #{generator_forward.1} parent=11 // pred_check_branch
        %317 = sbr.rel (%p315) target = $region44
      $region43: #{generator_forward.1} parent=11 // pred_region
        _
      $region44: #{generator_forward.1} parent=11 // pred_fallthru
        _
      // Predicated region
      $region45: #{generator_forward.1} parent=11 // pred_check
        %p318 = pneg %p232
      $region46: #{generator_forward.1} parent=11 // pred_check_branch
        %320 = sbr.rel (%p318) target = $region48
      $region47: #{generator_forward.1} parent=11 // pred_region
        _
      $region48: #{generator_forward.1} parent=11 // pred_fallthru
        _
      // Predicated region
      $region49: #{generator_forward.1} parent=11 // pred_check
        %p321 = pneg %p253
      $region50: #{generator_forward.1} parent=11 // pred_check_branch
        %323 = sbr.rel (%p321) target = $region52
      $region51: #{generator_forward.1} parent=11 // pred_region
        _
      $region52: #{generator_forward.1} parent=11 // pred_fallthru
        _
    $region12: #{generator_forward.1} parent=5 // pred_fallthru
      _
    %p324 = scmp.lt.s32.totalorder %s17, 2
    // Predicated region
    $region53: #{generator_forward.1} parent=5 // pred_check
      %p325 = pneg %p324
    $region54: #{generator_forward.1} parent=5 // pred_check_branch
      %327 = sbr.rel (%p325) target = $region56
    $region55: #{generator_forward.1} parent=5 // pred_region
      // Predicated region
      $region57: #{generator_forward.1} parent=55 // pred_check
        %p328 = pneg %p37
      $region58: #{generator_forward.1} parent=55 // pred_check_branch
        %330 = sbr.rel (%p328) target = $region60
      $region59: #{generator_forward.1} parent=55 // pred_region
        %p331 = scmp.lt.s32.totalorder %s17, 1
        %s332 = scalar_select %p331, %s17, 1
        %s333 = smul.addr %s332, 2
        %s334 = scalar_lea.vmem %s0, %s333
      $region60: #{generator_forward.1} parent=55 // pred_fallthru
        _
    $region56: #{generator_forward.1} parent=5 // pred_fallthru
      _
    %p335 = scmp.le.s32.totalorder 1, %s17
    %p336 = scmp.lt.s32.totalorder %s17, 3
    %p337 = pnand %p335, %p336
    %p338 = pneg %p337
    // Predicated region
    $region61: #{generator_forward.1} parent=5 // pred_check
      _
    $region62: #{generator_forward.1} parent=5 // pred_check_branch
      %340 = sbr.rel (%p337) target = $region64
    $region63: #{generator_forward.1} parent=5 // pred_region
      %s341 = ssub.s32 %s17, 1
      %p342 = scmp.lt.s32.totalorder %s22, 1
      %s343 = scalar_select %p342, %s22, 1
      %s344 = smul.addr %s343, 2
      %s345 = scalar_lea.vmem %s0, %s344
      %p346 = pneg %p43
      %p347 = pneg %p40
      %p348 = pneg %p64
      %p349 = pneg %p61
      %p350 = pneg %p85
      %p351 = pneg %p82
      %p352 = pneg %p106
      %p353 = pneg %p103
      %p354 = pneg %p127
      %p355 = pneg %p124
      %p356 = pneg %p148
      %p357 = pneg %p145
      %p358 = pneg %p169
      %p359 = pneg %p166
      %p360 = pneg %p190
      %p361 = pneg %p187
      %p362 = pneg %p211
      %p363 = pneg %p208
      %p364 = pneg %p232
      %p365 = pneg %p229
      %p366 = pneg %p253
      %p367 = pneg %p250
      %p368 = pneg %p279
      %p369 = pneg %p276
      %p370 = scmp.lt.s32.totalorder %s22, 1
      %s371 = scalar_select %p370, %s22, 1
      %s372 = smul.addr %s371, 2
      %s373 = smul.addr %s372, 2
      %s374 = scalar_lea.vmem %s11, %s373
      %p375 = scmp.lt.s32.totalorder %s22, 1
      %s376 = scalar_select %p375, %s22, 1
      %s377 = smul.addr %s376, 2
      %s378 = scalar_lea.vmem %s0, %s377
      %p379 = scmp.lt.s32.totalorder %s22, 1
      %s380 = scalar_select %p379, %s22, 1
      %s381 = smul.addr %s380, 2
      %s382 = smul.addr %s381, 2
      %s383 = scalar_lea.vmem %s11, %s382
      %v385 = vld [vmem:[%s378] sm:$0x3]
      %v386 = vld [vmem:[%s1] sm:$0xff]
      %v387 = vld [vmem:[%s1 + $0x8] sm:$0xff]
      %v388 = vld [vmem:[%s1 + $0x10] sm:$0xff]
      %v389 = vld [vmem:[%s1 + $0x18] sm:$0xff]
      %v391 = vlaneseq
      %v392 = vshrl.u32 %v391, 7
      %v393 = vsub.s32 0, %v392
      %v394 = vrot.slane %v385, %v393
      %v395 = vlaneseq
      %v396 = vshrl.u32 %v395, 7
      %v397 = vsub.s32 1, %v396
      %v398 = vrot.slane %v385, %v397
      %401 = vrot.lane.b32.xlu0 %v394, 17
      %v402 = vpop.permute.xlu0 %401
      %403 = vrot.lane.b32.xlu0 %v398, 17
      %v404 = vpop.permute.xlu0 %403
      %v405 = vlaneseq
      %v406 = vand.u32 %v405, 127
      %vm407 = vcmp.lt.s32.totalorder %v406, 17
      %v408 = vsel %vm407, %v402, %v404
      %v409 = vsel %vm407, %v404, %v402
      %411 = vset.pattern.permute.xlu0 0
      %412 = vperm.xlu0 %411, %v386
      %v413 = vpop.permute.xlu0 %412
      %416 = vset.pattern.permute.xlu0 0
      %417 = vperm.xlu0 %416, %v387
      %v418 = vpop.permute.xlu0 %417
      %421 = vset.pattern.permute.xlu0 0
      %422 = vperm.xlu0 %421, %v388
      %v423 = vpop.permute.xlu0 %422
      %426 = vset.pattern.permute.xlu0 0
      %427 = vperm.xlu0 %426, %v389
      %v428 = vpop.permute.xlu0 %427
      %v430 = vlaneseq
      %v431 = vshrl.u32 %v430, 7
      %v432 = vsub.s32 0, %v431
      %v433 = vrot.slane %v409, %v432
      %v434 = vlaneseq
      %v435 = vshrl.u32 %v434, 7
      %v436 = vsub.s32 0, %v435
      %v437 = vrot.slane %v408, %v436
      %v438 = vmul.f32 %v413, %v433
      %v439 = vmul.f32 %v413, %v437
      %v440 = vmul.f32 %v418, %v433
      %v441 = vmul.f32 %v418, %v437
      %v442 = vmul.f32 %v423, %v433
      %v443 = vmul.f32 %v423, %v437
      %v444 = vmul.f32 %v428, %v433
      %v445 = vmul.f32 %v428, %v437
      %s446 = scalar_lea.vmem %s1, 32
      %v447 = vld [vmem:[%s446] sm:$0xff]
      %v448 = vld [vmem:[%s446 + $0x8] sm:$0xff]
      %v449 = vld [vmem:[%s446 + $0x10] sm:$0xff]
      %v450 = vld [vmem:[%s446 + $0x18] sm:$0xff]
      %451 = vrot.lane.b32.xlu0 %v394, 16
      %v452 = vpop.permute.xlu0 %451
      %453 = vrot.lane.b32.xlu0 %v398, 16
      %v454 = vpop.permute.xlu0 %453
      %vm455 = vcmp.lt.s32.totalorder %v406, 16
      %v456 = vsel %vm455, %v452, %v454
      %v457 = vsel %vm455, %v454, %v452
      %459 = vset.pattern.permute.xlu0 0
      %460 = vperm.xlu0 %459, %v447
      %v461 = vpop.permute.xlu0 %460
      %464 = vset.pattern.permute.xlu0 0
      %465 = vperm.xlu0 %464, %v448
      %v466 = vpop.permute.xlu0 %465
      %469 = vset.pattern.permute.xlu0 0
      %470 = vperm.xlu0 %469, %v449
      %v471 = vpop.permute.xlu0 %470
      %474 = vset.pattern.permute.xlu0 0
      %475 = vperm.xlu0 %474, %v450
      %v476 = vpop.permute.xlu0 %475
      %v478 = vlaneseq
      %v479 = vshrl.u32 %v478, 7
      %v480 = vsub.s32 0, %v479
      %v481 = vrot.slane %v457, %v480
      %v482 = vlaneseq
      %v483 = vshrl.u32 %v482, 7
      %v484 = vsub.s32 0, %v483
      %v485 = vrot.slane %v456, %v484
      %v486 = vmul.f32 %v461, %v481
      %v487 = vmul.f32 %v461, %v485
      %v488 = vmul.f32 %v466, %v481
      %v489 = vmul.f32 %v466, %v485
      %v490 = vmul.f32 %v471, %v481
      %v491 = vmul.f32 %v471, %v485
      %v492 = vmul.f32 %v476, %v481
      %v493 = vmul.f32 %v476, %v485
      %v494 = vadd.f32 %v438, %v486
      %v495 = vadd.f32 %v439, %v487
      %v496 = vadd.f32 %v440, %v488
      %v497 = vadd.f32 %v441, %v489
      %v498 = vadd.f32 %v442, %v490
      %v499 = vadd.f32 %v443, %v491
      %v500 = vadd.f32 %v444, %v492
      %v501 = vadd.f32 %v445, %v493
      %s502 = scalar_lea.vmem %s1, 64
      %v503 = vld [vmem:[%s502] sm:$0xff]
      %v504 = vld [vmem:[%s502 + $0x8] sm:$0xff]
      %v505 = vld [vmem:[%s502 + $0x10] sm:$0xff]
      %v506 = vld [vmem:[%s502 + $0x18] sm:$0xff]
      %507 = vrot.lane.b32.xlu0 %v394, 15
      %v508 = vpop.permute.xlu0 %507
      %509 = vrot.lane.b32.xlu0 %v398, 15
      %v510 = vpop.permute.xlu0 %509
      %vm511 = vcmp.lt.s32.totalorder %v406, 15
      %v512 = vsel %vm511, %v508, %v510
      %v513 = vsel %vm511, %v510, %v508
      %515 = vset.pattern.permute.xlu0 0
      %516 = vperm.xlu0 %515, %v503
      %v517 = vpop.permute.xlu0 %516
      %520 = vset.pattern.permute.xlu0 0
      %521 = vperm.xlu0 %520, %v504
      %v522 = vpop.permute.xlu0 %521
      %525 = vset.pattern.permute.xlu0 0
      %526 = vperm.xlu0 %525, %v505
      %v527 = vpop.permute.xlu0 %526
      %530 = vset.pattern.permute.xlu0 0
      %531 = vperm.xlu0 %530, %v506
      %v532 = vpop.permute.xlu0 %531
      %v534 = vlaneseq
      %v535 = vshrl.u32 %v534, 7
      %v536 = vsub.s32 0, %v535
      %v537 = vrot.slane %v513, %v536
      %v538 = vlaneseq
      %v539 = vshrl.u32 %v538, 7
      %v540 = vsub.s32 0, %v539
      %v541 = vrot.slane %v512, %v540
      %v542 = vmul.f32 %v517, %v537
      %v543 = vmul.f32 %v517, %v541
      %v544 = vmul.f32 %v522, %v537
      %v545 = vmul.f32 %v522, %v541
      %v546 = vmul.f32 %v527, %v537
      %v547 = vmul.f32 %v527, %v541
      %v548 = vmul.f32 %v532, %v537
      %v549 = vmul.f32 %v532, %v541
      %v550 = vadd.f32 %v494, %v542
      %v551 = vadd.f32 %v495, %v543
      %v552 = vadd.f32 %v496, %v544
      %v553 = vadd.f32 %v497, %v545
      %v554 = vadd.f32 %v498, %v546
      %v555 = vadd.f32 %v499, %v547
      %v556 = vadd.f32 %v500, %v548
      %v557 = vadd.f32 %v501, %v549
      %s558 = scalar_lea.vmem %s1, 96
      %v559 = vld [vmem:[%s558] sm:$0xff]
      %v560 = vld [vmem:[%s558 + $0x8] sm:$0xff]
      %v561 = vld [vmem:[%s558 + $0x10] sm:$0xff]
      %v562 = vld [vmem:[%s558 + $0x18] sm:$0xff]
      %563 = vrot.lane.b32.xlu0 %v394, 1
      %v564 = vpop.permute.xlu0 %563
      %565 = vrot.lane.b32.xlu0 %v398, 1
      %v566 = vpop.permute.xlu0 %565
      %vm567 = vcmp.lt.s32.totalorder %v406, 1
      %v568 = vsel %vm567, %v564, %v566
      %v569 = vsel %vm567, %v566, %v564
      %571 = vset.pattern.permute.xlu0 0
      %572 = vperm.xlu0 %571, %v559
      %v573 = vpop.permute.xlu0 %572
      %576 = vset.pattern.permute.xlu0 0
      %577 = vperm.xlu0 %576, %v560
      %v578 = vpop.permute.xlu0 %577
      %581 = vset.pattern.permute.xlu0 0
      %582 = vperm.xlu0 %581, %v561
      %v583 = vpop.permute.xlu0 %582
      %586 = vset.pattern.permute.xlu0 0
      %587 = vperm.xlu0 %586, %v562
      %v588 = vpop.permute.xlu0 %587
      %v590 = vlaneseq
      %v591 = vshrl.u32 %v590, 7
      %v592 = vsub.s32 0, %v591
      %v593 = vrot.slane %v569, %v592
      %v594 = vlaneseq
      %v595 = vshrl.u32 %v594, 7
      %v596 = vsub.s32 0, %v595
      %v597 = vrot.slane %v568, %v596
      %v598 = vmul.f32 %v573, %v593
      %v599 = vmul.f32 %v573, %v597
      %v600 = vmul.f32 %v578, %v593
      %v601 = vmul.f32 %v578, %v597
      %v602 = vmul.f32 %v583, %v593
      %v603 = vmul.f32 %v583, %v597
      %v604 = vmul.f32 %v588, %v593
      %v605 = vmul.f32 %v588, %v597
      %v606 = vadd.f32 %v550, %v598
      %v607 = vadd.f32 %v551, %v599
      %v608 = vadd.f32 %v552, %v600
      %v609 = vadd.f32 %v553, %v601
      %v610 = vadd.f32 %v554, %v602
      %v611 = vadd.f32 %v555, %v603
      %v612 = vadd.f32 %v556, %v604
      %v613 = vadd.f32 %v557, %v605
      %s614 = scalar_lea.vmem %s1, 128
      %v615 = vld [vmem:[%s614] sm:$0xff]
      %v616 = vld [vmem:[%s614 + $0x8] sm:$0xff]
      %v617 = vld [vmem:[%s614 + $0x10] sm:$0xff]
      %v618 = vld [vmem:[%s614 + $0x18] sm:$0xff]
      %620 = vset.pattern.permute.xlu0 0
      %621 = vperm.xlu0 %620, %v615
      %v622 = vpop.permute.xlu0 %621
      %625 = vset.pattern.permute.xlu0 0
      %626 = vperm.xlu0 %625, %v616
      %v627 = vpop.permute.xlu0 %626
      %630 = vset.pattern.permute.xlu0 0
      %631 = vperm.xlu0 %630, %v617
      %v632 = vpop.permute.xlu0 %631
      %635 = vset.pattern.permute.xlu0 0
      %636 = vperm.xlu0 %635, %v618
      %v637 = vpop.permute.xlu0 %636
      %v639 = vmul.f32 %v622, %v394
      %v640 = vmul.f32 %v622, %v398
      %v641 = vmul.f32 %v627, %v394
      %v642 = vmul.f32 %v627, %v398
      %v643 = vmul.f32 %v632, %v394
      %v644 = vmul.f32 %v632, %v398
      %v645 = vmul.f32 %v637, %v394
      %v646 = vmul.f32 %v637, %v398
      %v647 = vadd.f32 %v606, %v639
      %v648 = vadd.f32 %v607, %v640
      %v649 = vadd.f32 %v608, %v641
      %v650 = vadd.f32 %v609, %v642
      %v651 = vadd.f32 %v610, %v643
      %v652 = vadd.f32 %v611, %v644
      %v653 = vadd.f32 %v612, %v645
      %v654 = vadd.f32 %v613, %v646
      %s655 = scalar_lea.vmem %s1, 160
      %v656 = vld [vmem:[%s655] sm:$0xff]
      %v657 = vld [vmem:[%s655 + $0x8] sm:$0xff]
      %v658 = vld [vmem:[%s655 + $0x10] sm:$0xff]
      %v659 = vld [vmem:[%s655 + $0x18] sm:$0xff]
      %660 = vrot.lane.b32.xlu0 %v394, 127
      %v661 = vpop.permute.xlu0 %660
      %662 = vrot.lane.b32.xlu0 %v398, 127
      %v663 = vpop.permute.xlu0 %662
      %vm664 = vcmp.lt.s32.totalorder %v406, 127
      %v665 = vsel %vm664, %v661, %v663
      %v666 = vsel %vm664, %v663, %v661
      %668 = vset.pattern.permute.xlu0 0
      %669 = vperm.xlu0 %668, %v656
      %v670 = vpop.permute.xlu0 %669
      %673 = vset.pattern.permute.xlu0 0
      %674 = vperm.xlu0 %673, %v657
      %v675 = vpop.permute.xlu0 %674
      %678 = vset.pattern.permute.xlu0 0
      %679 = vperm.xlu0 %678, %v658
      %v680 = vpop.permute.xlu0 %679
      %683 = vset.pattern.permute.xlu0 0
      %684 = vperm.xlu0 %683, %v659
      %v685 = vpop.permute.xlu0 %684
      %v687 = vlaneseq
      %v688 = vshrl.u32 %v687, 7
      %v689 = vsub.s32 0, %v688
      %v690 = vrot.slane %v665, %v689
      %v691 = vlaneseq
      %v692 = vshrl.u32 %v691, 7
      %v693 = vsub.s32 0, %v692
      %v694 = vrot.slane %v666, %v693
      %v695 = vmul.f32 %v670, %v690
      %v696 = vmul.f32 %v670, %v694
      %v697 = vmul.f32 %v675, %v690
      %v698 = vmul.f32 %v675, %v694
      %v699 = vmul.f32 %v680, %v690
      %v700 = vmul.f32 %v680, %v694
      %v701 = vmul.f32 %v685, %v690
      %v702 = vmul.f32 %v685, %v694
      %v703 = vadd.f32 %v647, %v695
      %v704 = vadd.f32 %v648, %v696
      %v705 = vadd.f32 %v649, %v697
      %v706 = vadd.f32 %v650, %v698
      %v707 = vadd.f32 %v651, %v699
      %v708 = vadd.f32 %v652, %v700
      %v709 = vadd.f32 %v653, %v701
      %v710 = vadd.f32 %v654, %v702
      %s711 = scalar_lea.vmem %s1, 192
      %v712 = vld [vmem:[%s711] sm:$0xff]
      %v713 = vld [vmem:[%s711 + $0x8] sm:$0xff]
      %v714 = vld [vmem:[%s711 + $0x10] sm:$0xff]
      %v715 = vld [vmem:[%s711 + $0x18] sm:$0xff]
      %716 = vrot.lane.b32.xlu0 %v394, 113
      %v717 = vpop.permute.xlu0 %716
      %718 = vrot.lane.b32.xlu0 %v398, 113
      %v719 = vpop.permute.xlu0 %718
      %vm720 = vcmp.lt.s32.totalorder %v406, 113
      %v721 = vsel %vm720, %v717, %v719
      %v722 = vsel %vm720, %v719, %v717
      %724 = vset.pattern.permute.xlu0 0
      %725 = vperm.xlu0 %724, %v712
      %v726 = vpop.permute.xlu0 %725
      %729 = vset.pattern.permute.xlu0 0
      %730 = vperm.xlu0 %729, %v713
      %v731 = vpop.permute.xlu0 %730
      %734 = vset.pattern.permute.xlu0 0
      %735 = vperm.xlu0 %734, %v714
      %v736 = vpop.permute.xlu0 %735
      %739 = vset.pattern.permute.xlu0 0
      %740 = vperm.xlu0 %739, %v715
      %v741 = vpop.permute.xlu0 %740
      %v743 = vlaneseq
      %v744 = vshrl.u32 %v743, 7
      %v745 = vsub.s32 0, %v744
      %v746 = vrot.slane %v721, %v745
      %v747 = vlaneseq
      %v748 = vshrl.u32 %v747, 7
      %v749 = vsub.s32 0, %v748
      %v750 = vrot.slane %v722, %v749
      %v751 = vmul.f32 %v726, %v746
      %v752 = vmul.f32 %v726, %v750
      %v753 = vmul.f32 %v731, %v746
      %v754 = vmul.f32 %v731, %v750
      %v755 = vmul.f32 %v736, %v746
      %v756 = vmul.f32 %v736, %v750
      %v757 = vmul.f32 %v741, %v746
      %v758 = vmul.f32 %v741, %v750
      %v759 = vadd.f32 %v703, %v751
      %v760 = vadd.f32 %v704, %v752
      %v761 = vadd.f32 %v705, %v753
      %v762 = vadd.f32 %v706, %v754
      %v763 = vadd.f32 %v707, %v755
      %v764 = vadd.f32 %v708, %v756
      %v765 = vadd.f32 %v709, %v757
      %v766 = vadd.f32 %v710, %v758
      %s767 = scalar_lea.vmem %s1, 224
      %v768 = vld [vmem:[%s767] sm:$0xff]
      %v769 = vld [vmem:[%s767 + $0x8] sm:$0xff]
      %v770 = vld [vmem:[%s767 + $0x10] sm:$0xff]
      %v771 = vld [vmem:[%s767 + $0x18] sm:$0xff]
      %772 = vrot.lane.b32.xlu0 %v394, 112
      %v773 = vpop.permute.xlu0 %772
      %774 = vrot.lane.b32.xlu0 %v398, 112
      %v775 = vpop.permute.xlu0 %774
      %vm776 = vcmp.lt.s32.totalorder %v406, 112
      %v777 = vsel %vm776, %v773, %v775
      %v778 = vsel %vm776, %v775, %v773
      %780 = vset.pattern.permute.xlu0 0
      %781 = vperm.xlu0 %780, %v768
      %v782 = vpop.permute.xlu0 %781
      %785 = vset.pattern.permute.xlu0 0
      %786 = vperm.xlu0 %785, %v769
      %v787 = vpop.permute.xlu0 %786
      %790 = vset.pattern.permute.xlu0 0
      %791 = vperm.xlu0 %790, %v770
      %v792 = vpop.permute.xlu0 %791
      %795 = vset.pattern.permute.xlu0 0
      %796 = vperm.xlu0 %795, %v771
      %v797 = vpop.permute.xlu0 %796
      %v799 = vlaneseq
      %v800 = vshrl.u32 %v799, 7
      %v801 = vsub.s32 0, %v800
      %v802 = vrot.slane %v777, %v801
      %v803 = vlaneseq
      %v804 = vshrl.u32 %v803, 7
      %v805 = vsub.s32 0, %v804
      %v806 = vrot.slane %v778, %v805
      %v807 = vmul.f32 %v782, %v802
      %v808 = vmul.f32 %v782, %v806
      %v809 = vmul.f32 %v787, %v802
      %v810 = vmul.f32 %v787, %v806
      %v811 = vmul.f32 %v792, %v802
      %v812 = vmul.f32 %v792, %v806
      %v813 = vmul.f32 %v797, %v802
      %v814 = vmul.f32 %v797, %v806
      %v815 = vadd.f32 %v759, %v807
      %v816 = vadd.f32 %v760, %v808
      %v817 = vadd.f32 %v761, %v809
      %v818 = vadd.f32 %v762, %v810
      %v819 = vadd.f32 %v763, %v811
      %v820 = vadd.f32 %v764, %v812
      %v821 = vadd.f32 %v765, %v813
      %v822 = vadd.f32 %v766, %v814
      %s823 = scalar_lea.vmem %s1, 256
      %v824 = vld [vmem:[%s823] sm:$0xff]
      %v825 = vld [vmem:[%s823 + $0x8] sm:$0xff]
      %v826 = vld [vmem:[%s823 + $0x10] sm:$0xff]
      %v827 = vld [vmem:[%s823 + $0x18] sm:$0xff]
      %828 = vrot.lane.b32.xlu0 %v394, 111
      %v829 = vpop.permute.xlu0 %828
      %830 = vrot.lane.b32.xlu0 %v398, 111
      %v831 = vpop.permute.xlu0 %830
      %vm832 = vcmp.lt.s32.totalorder %v406, 111
      %v833 = vsel %vm832, %v829, %v831
      %v834 = vsel %vm832, %v831, %v829
      %836 = vset.pattern.permute.xlu0 0
      %837 = vperm.xlu0 %836, %v824
      %v838 = vpop.permute.xlu0 %837
      %841 = vset.pattern.permute.xlu0 0
      %842 = vperm.xlu0 %841, %v825
      %v843 = vpop.permute.xlu0 %842
      %846 = vset.pattern.permute.xlu0 0
      %847 = vperm.xlu0 %846, %v826
      %v848 = vpop.permute.xlu0 %847
      %851 = vset.pattern.permute.xlu0 0
      %852 = vperm.xlu0 %851, %v827
      %v853 = vpop.permute.xlu0 %852
      %v855 = vlaneseq
      %v856 = vshrl.u32 %v855, 7
      %v857 = vsub.s32 0, %v856
      %v858 = vrot.slane %v833, %v857
      %v859 = vlaneseq
      %v860 = vshrl.u32 %v859, 7
      %v861 = vsub.s32 0, %v860
      %v862 = vrot.slane %v834, %v861
      %v863 = vmul.f32 %v838, %v858
      %v864 = vmul.f32 %v838, %v862
      %v865 = vmul.f32 %v843, %v858
      %v866 = vmul.f32 %v843, %v862
      %v867 = vmul.f32 %v848, %v858
      %v868 = vmul.f32 %v848, %v862
      %v869 = vmul.f32 %v853, %v858
      %v870 = vmul.f32 %v853, %v862
      %v871 = vadd.f32 %v815, %v863
      %v872 = vadd.f32 %v816, %v864
      %v873 = vadd.f32 %v817, %v865
      %v874 = vadd.f32 %v818, %v866
      %v875 = vadd.f32 %v819, %v867
      %v876 = vadd.f32 %v820, %v868
      %v877 = vadd.f32 %v821, %v869
      %v878 = vadd.f32 %v822, %v870
      %v879 = vld [vmem:[%s2] sm:$0xff]
      %v880 = vld [vmem:[%s2 + $0x8] sm:$0xff]
      %v881 = vld [vmem:[%s2 + $0x10] sm:$0xff]
      %v882 = vld [vmem:[%s2 + $0x18] sm:$0xff]
      %884 = vset.pattern.permute.xlu0 0
      %885 = vperm.xlu0 %884, %v879
      %v886 = vpop.permute.xlu0 %885
      %889 = vset.pattern.permute.xlu0 0
      %890 = vperm.xlu0 %889, %v880
      %v891 = vpop.permute.xlu0 %890
      %894 = vset.pattern.permute.xlu0 0
      %895 = vperm.xlu0 %894, %v881
      %v896 = vpop.permute.xlu0 %895
      %899 = vset.pattern.permute.xlu0 0
      %900 = vperm.xlu0 %899, %v882
      %v901 = vpop.permute.xlu0 %900
      %v903 = vadd.f32 %v871, %v886
      %v904 = vadd.f32 %v872, %v886
      %v905 = vadd.f32 %v873, %v891
      %v906 = vadd.f32 %v874, %v891
      %v907 = vadd.f32 %v875, %v896
      %v908 = vadd.f32 %v876, %v896
      %v909 = vadd.f32 %v877, %v901
      %v910 = vadd.f32 %v878, %v901
      %v911 = vmax.f32 %v903, 0.0
      %v912 = vmax.f32 %v904, 0.0
      %v913 = vmax.f32 %v905, 0.0
      %v914 = vmax.f32 %v906, 0.0
      %v915 = vmax.f32 %v907, 0.0
      %v916 = vmax.f32 %v908, 0.0
      %v917 = vmax.f32 %v909, 0.0
      %v918 = vmax.f32 %v910, 0.0
      %v919 = vld [vmem:[%s9] sm:$0x3]
      %v921 = vlaneseq
      %v922 = vshrl.u32 %v921, 7
      %v923 = vsub.s32 0, %v922
      %v924 = vrot.slane %v919, %v923
      %v925 = vlaneseq
      %v926 = vshrl.u32 %v925, 7
      %v927 = vsub.s32 1, %v926
      %v928 = vrot.slane %v919, %v927
      %v931 = vmul.f32 %v911, %v924
      %v932 = vmul.f32 %v912, %v928
      %v933 = vmul.f32 %v913, %v924
      %v934 = vmul.f32 %v914, %v928
      %v935 = vmul.f32 %v915, %v924
      %v936 = vmul.f32 %v916, %v928
      %v937 = vmul.f32 %v917, %v924
      %v938 = vmul.f32 %v918, %v928
      %v939 = vld [vmem:[%s3] sm:$0xf]
      %v940 = vld [vmem:[%s3 + $0x4] sm:$0xf]
      %v941 = vld [vmem:[%s3 + $0x8] sm:$0xf]
      %v942 = vld [vmem:[%s3 + $0xc] sm:$0xf]
      %v943 = vld [vmem:[%s3 + $0x10] sm:$0xf]
      %v944 = vld [vmem:[%s3 + $0x14] sm:$0xf]
      %v945 = vld [vmem:[%s3 + $0x18] sm:$0xf]
      %v946 = vld [vmem:[%s3 + $0x1c] sm:$0xf]
      %947 = vrot.lane.b32.xlu0 %v931, 17
      %v948 = vpop.permute.xlu0 %947
      %949 = vrot.lane.b32.xlu0 %v933, 17
      %v950 = vpop.permute.xlu0 %949
      %951 = vrot.lane.b32.xlu0 %v935, 17
      %v952 = vpop.permute.xlu0 %951
      %953 = vrot.lane.b32.xlu0 %v937, 17
      %v954 = vpop.permute.xlu0 %953
      %955 = vrot.lane.b32.xlu0 %v932, 17
      %v956 = vpop.permute.xlu0 %955
      %957 = vrot.lane.b32.xlu0 %v934, 17
      %v958 = vpop.permute.xlu0 %957
      %959 = vrot.lane.b32.xlu0 %v936, 17
      %v960 = vpop.permute.xlu0 %959
      %961 = vrot.lane.b32.xlu0 %v938, 17
      %v962 = vpop.permute.xlu0 %961
      %v963 = vsel %vm407, %v948, %v956
      %v964 = vsel %vm407, %v950, %v958
      %v965 = vsel %vm407, %v952, %v960
      %v966 = vsel %vm407, %v954, %v962
      %v967 = vsel %vm407, %v956, %v948
      %v968 = vsel %vm407, %v958, %v950
      %v969 = vsel %vm407, %v960, %v952
      %v970 = vsel %vm407, %v962, %v954
      %v971 = vpack.c.bf16 %v968, %v967
      %v972 = vpack.c.bf16 %v964, %v963
      %v973 = vpack.c.bf16 %v970, %v969
      %v974 = vpack.c.bf16 %v966, %v965
      %s975 = scalar_lea.vmem %s3, 32
      %v976 = vld [vmem:[%s975] sm:$0xf]
      %v977 = vld [vmem:[%s975 + $0x4] sm:$0xf]
      %v978 = vld [vmem:[%s975 + $0x8] sm:$0xf]
      %v979 = vld [vmem:[%s975 + $0xc] sm:$0xf]
      %v980 = vld [vmem:[%s975 + $0x10] sm:$0xf]
      %v981 = vld [vmem:[%s975 + $0x14] sm:$0xf]
      %v982 = vld [vmem:[%s975 + $0x18] sm:$0xf]
      %v983 = vld [vmem:[%s975 + $0x1c] sm:$0xf]
      %984 = vrot.lane.b32.xlu0 %v931, 16
      %v985 = vpop.permute.xlu0 %984
      %986 = vrot.lane.b32.xlu0 %v933, 16
      %v987 = vpop.permute.xlu0 %986
      %988 = vrot.lane.b32.xlu0 %v935, 16
      %v989 = vpop.permute.xlu0 %988
      %990 = vrot.lane.b32.xlu0 %v937, 16
      %v991 = vpop.permute.xlu0 %990
      %992 = vrot.lane.b32.xlu0 %v932, 16
      %v993 = vpop.permute.xlu0 %992
      %994 = vrot.lane.b32.xlu0 %v934, 16
      %v995 = vpop.permute.xlu0 %994
      %996 = vrot.lane.b32.xlu0 %v936, 16
      %v997 = vpop.permute.xlu0 %996
      %998 = vrot.lane.b32.xlu0 %v938, 16
      %v999 = vpop.permute.xlu0 %998
      %v1000 = vsel %vm455, %v985, %v993
      %v1001 = vsel %vm455, %v987, %v995
      %v1002 = vsel %vm455, %v989, %v997
      %v1003 = vsel %vm455, %v991, %v999
      %v1004 = vsel %vm455, %v993, %v985
      %v1005 = vsel %vm455, %v995, %v987
      %v1006 = vsel %vm455, %v997, %v989
      %v1007 = vsel %vm455, %v999, %v991
      %v1008 = vpack.c.bf16 %v1005, %v1004
      %v1009 = vpack.c.bf16 %v1001, %v1000
      %v1010 = vpack.c.bf16 %v1007, %v1006
      %v1011 = vpack.c.bf16 %v1003, %v1002
      %v1020 = vunpack.c.l.b16 %v976
      %v1021 = vunpack.c.l.b16 %v977
      %v1022 = vunpack.c.l.b16 %v978
      %v1023 = vunpack.c.l.b16 %v979
      %v1024 = vunpack.c.l.b16 %v980
      %v1025 = vunpack.c.l.b16 %v981
      %v1026 = vunpack.c.l.b16 %v982
      %v1027 = vunpack.c.l.b16 %v983
      %v1028 = vpack.c.b16 %v1021, %v1020
      %v1029 = vpack.c.b16 %v1023, %v1022
      %v1030 = vpack.c.b16 %v1025, %v1024
      %v1031 = vpack.c.b16 %v1027, %v1026
      %vm1032 = vcmask 261120
      %v1034 = vsel %vm1032, %v1028, 0
      %v1037 = vsel %vm1032, %v1029, 0
      %v1040 = vsel %vm1032, %v1030, 0
      %v1043 = vsel %vm1032, %v1031, 0
      %1045 = vmatprep.subr.bf16.mxu0 %v1009
      %1046 = vmatpush1.bf16.msra.mxu0 %v1008
      %1047 = vmatprep.subr.bf16.mxu0 %v1011
      %1048 = vmatpush1.bf16.msra.mxu0 %v1010
      %1049 = vmatprep.subr.bf16.mxu0 0
      %1050 = vmatpush1.bf16.msra.mxu0 0
      %1051 = vmatprep.subr.bf16.mxu0 0
      %1052 = vmatpush1.bf16.msra.mxu0 0
      %1053 = vmatprep.subr.bf16.mxu0 0
      %1054 = vmatpush1.bf16.msra.mxu0 0
      %1055 = vmatprep.subr.bf16.mxu0 0
      %1056 = vmatpush1.bf16.msra.mxu0 0
      %1057 = vmatprep.subr.bf16.mxu0 0
      %1058 = vmatpush1.bf16.msra.mxu0 0
      %1059 = vmatprep.subr.bf16.mxu0 0
      %1060 = vmatpush1.bf16.msra.mxu0 0
      %1061 = vmatprep.subr.bf16.mxu0 0
      %1062 = vmatpush1.bf16.msra.mxu0 0
      %1063 = vmatprep.subr.bf16.mxu0 0
      %1064 = vmatpush1.bf16.msra.mxu0 0
      %1065 = vmatprep.subr.bf16.mxu0 0
      %1066 = vmatpush1.bf16.msra.mxu0 0
      %1067 = vmatprep.subr.bf16.mxu0 0
      %1068 = vmatpush1.bf16.msra.mxu0 0
      %1069 = vmatprep.subr.bf16.mxu0 0
      %1070 = vmatpush1.bf16.msra.mxu0 0
      %1071 = vmatprep.subr.bf16.mxu0 0
      %1072 = vmatpush1.bf16.msra.mxu0 0
      %1073 = vmatprep.subr.bf16.mxu0 0
      %1074 = vmatpush1.bf16.msra.mxu0 0
      %1075 = vmatprep.subr.bf16.mxu0 0
      %1076 = vmatpush1.bf16.msra.mxu0 0
      %1077 = vmatprep.mubr.bf16.mxu0 0
      %1078 = vmatmul.mubr.bf16.gmra.mrb[0].mxu0 %v1034
      %v1079 = vpop.f32.mrb[0].mxu0
      %v1080 = vadd.f32 0.0, %v1079
      %v1081 = vpop.f32.mrb[0].mxu0
      %v1082 = vadd.f32 0.0, %v1081
      %v1083 = vpop.f32.mrb[0].mxu0
      %v1084 = vadd.f32 0.0, %v1083
      %v1085 = vpop.f32.mrb[0].mxu0
      %v1086 = vadd.f32 0.0, %v1085
      %1087 = vmatprep.mubr.bf16.mxu0 0
      %1088 = vmatmul.mubr.bf16.gmra.mrb[0].mxu0 %v1037
      %v1089 = vpop.f32.mrb[0].mxu0
      %v1090 = vadd.f32 0.0, %v1089
      %v1091 = vpop.f32.mrb[0].mxu0
      %v1092 = vadd.f32 0.0, %v1091
      %v1093 = vpop.f32.mrb[0].mxu0
      %v1094 = vadd.f32 0.0, %v1093
      %v1095 = vpop.f32.mrb[0].mxu0
      %v1096 = vadd.f32 0.0, %v1095
      %1097 = vmatprep.mubr.bf16.mxu0 0
      %1098 = vmatmul.mubr.bf16.gmra.mrb[0].mxu0 %v1040
      %v1099 = vpop.f32.mrb[0].mxu0
      %v1100 = vadd.f32 0.0, %v1099
      %v1101 = vpop.f32.mrb[0].mxu0
      %v1102 = vadd.f32 0.0, %v1101
      %v1103 = vpop.f32.mrb[0].mxu0
      %v1104 = vadd.f32 0.0, %v1103
      %v1105 = vpop.f32.mrb[0].mxu0
      %v1106 = vadd.f32 0.0, %v1105
      %1107 = vmatprep.mubr.bf16.mxu0 0
      %1108 = vmatmul.mubr.bf16.gmra.mrb[0].mxu0 %v1043
      %v1109 = vpop.f32.mrb[0].mxu0
      %v1110 = vadd.f32 0.0, %v1109
      %v1111 = vpop.f32.mrb[0].mxu0
      %v1112 = vadd.f32 0.0, %v1111
      %v1113 = vpop.f32.mrb[0].mxu0
      %v1114 = vadd.f32 0.0, %v1113
      %v1115 = vpop.f32.mrb[0].mxu0
      %v1116 = vadd.f32 0.0, %v1115
      %1117 = vdwg.mxu0
      %v1126 = vunpack.c.l.b16 %v939
      %v1127 = vunpack.c.l.b16 %v940
      %v1128 = vunpack.c.l.b16 %v941
      %v1129 = vunpack.c.l.b16 %v942
      %v1130 = vunpack.c.l.b16 %v943
      %v1131 = vunpack.c.l.b16 %v944
      %v1132 = vunpack.c.l.b16 %v945
      %v1133 = vunpack.c.l.b16 %v946
      %v1134 = vpack.c.b16 %v1127, %v1126
      %v1135 = vpack.c.b16 %v1129, %v1128
      %v1136 = vpack.c.b16 %v1131, %v1130
      %v1137 = vpack.c.b16 %v1133, %v1132
      %v1139 = vsel %vm1032, %v1134, 0
      %v1142 = vsel %vm1032, %v1135, 0
      %v1145 = vsel %vm1032, %v1136, 0
      %v1148 = vsel %vm1032, %v1137, 0
      %1150 = vmatprep.subr.bf16.mxu0 %v972
      %1151 = vmatpush1.bf16.msra.mxu0 %v971
      %1152 = vmatprep.subr.bf16.mxu0 %v974
      %1153 = vmatpush1.bf16.msra.mxu0 %v973
      %1154 = vmatprep.subr.bf16.mxu0 0
      %1155 = vmatpush1.bf16.msra.mxu0 0
      %1156 = vmatprep.subr.bf16.mxu0 0
      %1157 = vmatpush1.bf16.msra.mxu0 0
      %1158 = vmatprep.subr.bf16.mxu0 0
      %1159 = vmatpush1.bf16.msra.mxu0 0
      %1160 = vmatprep.subr.bf16.mxu0 0
      %1161 = vmatpush1.bf16.msra.mxu0 0
      %1162 = vmatprep.subr.bf16.mxu0 0
      %1163 = vmatpush1.bf16.msra.mxu0 0
      %1164 = vmatprep.subr.bf16.mxu0 0
      %1165 = vmatpush1.bf16.msra.mxu0 0
      %1166 = vmatprep.subr.bf16.mxu0 0
      %1167 = vmatpush1.bf16.msra.mxu0 0
      %1168 = vmatprep.subr.bf16.mxu0 0
      %1169 = vmatpush1.bf16.msra.mxu0 0
      %1170 = vmatprep.subr.bf16.mxu0 0
      %1171 = vmatpush1.bf16.msra.mxu0 0
      %1172 = vmatprep.subr.bf16.mxu0 0
      %1173 = vmatpush1.bf16.msra.mxu0 0
      %1174 = vmatprep.subr.bf16.mxu0 0
      %1175 = vmatpush1.bf16.msra.mxu0 0
      %1176 = vmatprep.subr.bf16.mxu0 0
      %1177 = vmatpush1.bf16.msra.mxu0 0
      %1178 = vmatprep.subr.bf16.mxu0 0
      %1179 = vmatpush1.bf16.msra.mxu0 0
      %1180 = vmatprep.subr.bf16.mxu0 0
      %1181 = vmatpush1.bf16.msra.mxu0 0
      %1182 = vmatprep.mubr.bf16.mxu0 0
      %1183 = vmatmul.mubr.bf16.gmra.mrb[0].mxu0 %v1139
      %v1184 = vpop.f32.mrb[0].mxu0
      %v1185 = vadd.f32 %v1080, %v1184
      %v1186 = vpop.f32.mrb[0].mxu0
      %v1187 = vadd.f32 %v1082, %v1186
      %v1188 = vpop.f32.mrb[0].mxu0
      %v1189 = vadd.f32 %v1084, %v1188
      %v1190 = vpop.f32.mrb[0].mxu0
      %v1191 = vadd.f32 %v1086, %v1190
      %1192 = vmatprep.mubr.bf16.mxu0 0
      %1193 = vmatmul.mubr.bf16.gmra.mrb[0].mxu0 %v1142
      %v1194 = vpop.f32.mrb[0].mxu0
      %v1195 = vadd.f32 %v1090, %v1194
      %v1196 = vpop.f32.mrb[0].mxu0
      %v1197 = vadd.f32 %v1092, %v1196
      %v1198 = vpop.f32.mrb[0].mxu0
      %v1199 = vadd.f32 %v1094, %v1198
      %v1200 = vpop.f32.mrb[0].mxu0
      %v1201 = vadd.f32 %v1096, %v1200
      %1202 = vmatprep.mubr.bf16.mxu0 0
      %1203 = vmatmul.mubr.bf16.gmra.mrb[0].mxu0 %v1145
      %v1204 = vpop.f32.mrb[0].mxu0
      %v1205 = vadd.f32 %v1100, %v1204
      %v1206 = vpop.f32.mrb[0].mxu0
      %v1207 = vadd.f32 %v1102, %v1206
      %v1208 = vpop.f32.mrb[0].mxu0
      %v1209 = vadd.f32 %v1104, %v1208
      %v1210 = vpop.f32.mrb[0].mxu0
      %v1211 = vadd.f32 %v1106, %v1210
      %1212 = vmatprep.mubr.bf16.mxu0 0
      %1213 = vmatmul.mubr.bf16.gmra.mrb[0].mxu0 %v1148
      %v1214 = vpop.f32.mrb[0].mxu0
      %v1215 = vadd.f32 %v1110, %v1214
      %v1216 = vpop.f32.mrb[0].mxu0
      %v1217 = vadd.f32 %v1112, %v1216
      %v1218 = vpop.f32.mrb[0].mxu0
      %v1219 = vadd.f32 %v1114, %v1218
      %v1220 = vpop.f32.mrb[0].mxu0
      %v1221 = vadd.f32 %v1116, %v1220
      %1222 = vdwg.mxu0
      %s1223 = scalar_lea.vmem %s3, 64
      %v1224 = vld [vmem:[%s1223] sm:$0xf]
      %v1225 = vld [vmem:[%s1223 + $0x4] sm:$0xf]
      %v1226 = vld [vmem:[%s1223 + $0x8] sm:$0xf]
      %v1227 = vld [vmem:[%s1223 + $0xc] sm:$0xf]
      %v1228 = vld [vmem:[%s1223 + $0x10] sm:$0xf]
      %v1229 = vld [vmem:[%s1223 + $0x14] sm:$0xf]
      %v1230 = vld [vmem:[%s1223 + $0x18] sm:$0xf]
      %v1231 = vld [vmem:[%s1223 + $0x1c] sm:$0xf]
      %1232 = vrot.lane.b32.xlu0 %v931, 15
      %v1233 = vpop.permute.xlu0 %1232
      %1234 = vrot.lane.b32.xlu0 %v933, 15
      %v1235 = vpop.permute.xlu0 %1234
      %1236 = vrot.lane.b32.xlu0 %v935, 15
      %v1237 = vpop.permute.xlu0 %1236
      %1238 = vrot.lane.b32.xlu0 %v937, 15
      %v1239 = vpop.permute.xlu0 %1238
      %1240 = vrot.lane.b32.xlu0 %v932, 15
      %v1241 = vpop.permute.xlu0 %1240
      %1242 = vrot.lane.b32.xlu0 %v934, 15
      %v1243 = vpop.permute.xlu0 %1242
      %1244 = vrot.lane.b32.xlu0 %v936, 15
      %v1245 = vpop.permute.xlu0 %1244
      %1246 = vrot.lane.b32.xlu0 %v938, 15
      %v1247 = vpop.permute.xlu0 %1246
      %v1248 = vsel %vm511, %v1233, %v1241
      %v1249 = vsel %vm511, %v1235, %v1243
      %v1250 = vsel %vm511, %v1237, %v1245
      %v1251 = vsel %vm511, %v1239, %v1247
      %v1252 = vsel %vm511, %v1241, %v1233
      %v1253 = vsel %vm511, %v1243, %v1235
      %v1254 = vsel %vm511, %v1245, %v1237
      %v1255 = vsel %vm511, %v1247, %v1239
      %v1256 = vpack.c.bf16 %v1253, %v1252
      %v1257 = vpack.c.bf16 %v1249, %v1248
      %v1258 = vpack.c.bf16 %v1255, %v1254
      %v1259 = vpack.c.bf16 %v1251, %v1250
      %v1268 = vunpack.c.l.b16 %v1224
      %v1269 = vunpack.c.l.b16 %v1225
      %v1270 = vunpack.c.l.b16 %v1226
      %v1271 = vunpack.c.l.b16 %v1227
      %v1272 = vunpack.c.l.b16 %v1228
      %v1273 = vunpack.c.l.b16 %v1229
      %v1274 = vunpack.c.l.b16 %v1230
      %v1275 = vunpack.c.l.b16 %v1231
      %v1276 = vpack.c.b16 %v1269, %v1268
      %v1277 = vpack.c.b16 %v1271, %v1270
      %v1278 = vpack.c.b16 %v1273, %v1272
      %v1279 = vpack.c.b16 %v1275, %v1274
      %v1281 = vsel %vm1032, %v1276, 0
      %v1284 = vsel %vm1032, %v1277, 0
      %v1287 = vsel %vm1032, %v1278, 0
      %v1290 = vsel %vm1032, %v1279, 0
      %1292 = vmatprep.subr.bf16.mxu0 %v1257
      %1293 = vmatpush1.bf16.msra.mxu0 %v1256
      %1294 = vmatprep.subr.bf16.mxu0 %v1259
      %1295 = vmatpush1.bf16.msra.mxu0 %v1258
      %1296 = vmatprep.subr.bf16.mxu0 0
      %1297 = vmatpush1.bf16.msra.mxu0 0
      %1298 = vmatprep.subr.bf16.mxu0 0
      %1299 = vmatpush1.bf16.msra.mxu0 0
      %1300 = vmatprep.subr.bf16.mxu0 0
      %1301 = vmatpush1.bf16.msra.mxu0 0
      %1302 = vmatprep.subr.bf16.mxu0 0
      %1303 = vmatpush1.bf16.msra.mxu0 0
      %1304 = vmatprep.subr.bf16.mxu0 0
      %1305 = vmatpush1.bf16.msra.mxu0 0
      %1306 = vmatprep.subr.bf16.mxu0 0
      %1307 = vmatpush1.bf16.msra.mxu0 0
      %1308 = vmatprep.subr.bf16.mxu0 0
      %1309 = vmatpush1.bf16.msra.mxu0 0
      %1310 = vmatprep.subr.bf16.mxu0 0
      %1311 = vmatpush1.bf16.msra.mxu0 0
      %1312 = vmatprep.subr.bf16.mxu0 0
      %1313 = vmatpush1.bf16.msra.mxu0 0
      %1314 = vmatprep.subr.bf16.mxu0 0
      %1315 = vmatpush1.bf16.msra.mxu0 0
      %1316 = vmatprep.subr.bf16.mxu0 0
      %1317 = vmatpush1.bf16.msra.mxu0 0
      %1318 = vmatprep.subr.bf16.mxu0 0
      %1319 = vmatpush1.bf16.msra.mxu0 0
      %1320 = vmatprep.subr.bf16.mxu0 0
      %1321 = vmatpush1.bf16.msra.mxu0 0
      %1322 = vmatprep.subr.bf16.mxu0 0
      %1323 = vmatpush1.bf16.msra.mxu0 0
      %1324 = vmatprep.mubr.bf16.mxu0 0
      %1325 = vmatmul.mubr.bf16.gmra.mrb[0].mxu0 %v1281
      %v1326 = vpop.f32.mrb[0].mxu0
      %v1327 = vadd.f32 0.0, %v1326
      %v1328 = vpop.f32.mrb[0].mxu0
      %v1329 = vadd.f32 0.0, %v1328
      %v1330 = vpop.f32.mrb[0].mxu0
      %v1331 = vadd.f32 0.0, %v1330
      %v1332 = vpop.f32.mrb[0].mxu0
      %v1333 = vadd.f32 0.0, %v1332
      %1334 = vmatprep.mubr.bf16.mxu0 0
      %1335 = vmatmul.mubr.bf16.gmra.mrb[0].mxu0 %v1284
      %v1336 = vpop.f32.mrb[0].mxu0
      %v1337 = vadd.f32 0.0, %v1336
      %v1338 = vpop.f32.mrb[0].mxu0
      %v1339 = vadd.f32 0.0, %v1338
      %v1340 = vpop.f32.mrb[0].mxu0
      %v1341 = vadd.f32 0.0, %v1340
      %v1342 = vpop.f32.mrb[0].mxu0
      %v1343 = vadd.f32 0.0, %v1342
      %1344 = vmatprep.mubr.bf16.mxu0 0
      %1345 = vmatmul.mubr.bf16.gmra.mrb[0].mxu0 %v1287
      %v1346 = vpop.f32.mrb[0].mxu0
      %v1347 = vadd.f32 0.0, %v1346
      %v1348 = vpop.f32.mrb[0].mxu0
      %v1349 = vadd.f32 0.0, %v1348
      %v1350 = vpop.f32.mrb[0].mxu0
      %v1351 = vadd.f32 0.0, %v1350
      %v1352 = vpop.f32.mrb[0].mxu0
      %v1353 = vadd.f32 0.0, %v1352
      %1354 = vmatprep.mubr.bf16.mxu0 0
      %1355 = vmatmul.mubr.bf16.gmra.mrb[0].mxu0 %v1290
      %v1356 = vpop.f32.mrb[0].mxu0
      %v1357 = vadd.f32 0.0, %v1356
      %v1358 = vpop.f32.mrb[0].mxu0
      %v1359 = vadd.f32 0.0, %v1358
      %v1360 = vpop.f32.mrb[0].mxu0
      %v1361 = vadd.f32 0.0, %v1360
      %v1362 = vpop.f32.mrb[0].mxu0
      %v1363 = vadd.f32 0.0, %v1362
      %1364 = vdwg.mxu0
      %v1365 = vadd.f32 %v1185, %v1327
      %v1366 = vadd.f32 %v1187, %v1329
      %v1367 = vadd.f32 %v1189, %v1331
      %v1368 = vadd.f32 %v1191, %v1333
      %v1369 = vadd.f32 %v1195, %v1337
      %v1370 = vadd.f32 %v1197, %v1339
      %v1371 = vadd.f32 %v1199, %v1341
      %v1372 = vadd.f32 %v1201, %v1343
      %v1373 = vadd.f32 %v1205, %v1347
      %v1374 = vadd.f32 %v1207, %v1349
      %v1375 = vadd.f32 %v1209, %v1351
      %v1376 = vadd.f32 %v1211, %v1353
      %v1377 = vadd.f32 %v1215, %v1357
      %v1378 = vadd.f32 %v1217, %v1359
      %v1379 = vadd.f32 %v1219, %v1361
      %v1380 = vadd.f32 %v1221, %v1363
      %s1381 = scalar_lea.vmem %s3, 96
      %v1382 = vld [vmem:[%s1381] sm:$0xf]
      %v1383 = vld [vmem:[%s1381 + $0x4] sm:$0xf]
      %v1384 = vld [vmem:[%s1381 + $0x8] sm:$0xf]
      %v1385 = vld [vmem:[%s1381 + $0xc] sm:$0xf]
      %v1386 = vld [vmem:[%s1381 + $0x10] sm:$0xf]
      %v1387 = vld [vmem:[%s1381 + $0x14] sm:$0xf]
      %v1388 = vld [vmem:[%s1381 + $0x18] sm:$0xf]
      %v1389 = vld [vmem:[%s1381 + $0x1c] sm:$0xf]
      %1390 = vrot.lane.b32.xlu0 %v931, 1
      %v1391 = vpop.permute.xlu0 %1390
      %1392 = vrot.lane.b32.xlu0 %v933, 1
      %v1393 = vpop.permute.xlu0 %1392
      %1394 = vrot.lane.b32.xlu0 %v935, 1
      %v1395 = vpop.permute.xlu0 %1394
      %1396 = vrot.lane.b32.xlu0 %v937, 1
      %v1397 = vpop.permute.xlu0 %1396
      %1398 = vrot.lane.b32.xlu0 %v932, 1
      %v1399 = vpop.permute.xlu0 %1398
      %1400 = vrot.lane.b32.xlu0 %v934, 1
      %v1401 = vpop.permute.xlu0 %1400
      %1402 = vrot.lane.b32.xlu0 %v936, 1
      %v1403 = vpop.permute.xlu0 %1402
      %1404 = vrot.lane.b32.xlu0 %v938, 1
      %v1405 = vpop.permute.xlu0 %1404
      %v1406 = vsel %vm567, %v1391, %v1399
      %v1407 = vsel %vm567, %v1393, %v1401
      %v1408 = vsel %vm567, %v1395, %v1403
      %v1409 = vsel %vm567, %v1397, %v1405
      %v1410 = vsel %vm567, %v1399, %v1391
      %v1411 = vsel %vm567, %v1401, %v1393
      %v1412 = vsel %vm567, %v1403, %v1395
      %v1413 = vsel %vm567, %v1405, %v1397
      %v1414 = vpack.c.bf16 %v1411, %v1410
      %v1415 = vpack.c.bf16 %v1407, %v1406
      %v1416 = vpack.c.bf16 %v1413, %v1412
      %v1417 = vpack.c.bf16 %v1409, %v1408
      %v1426 = vunpack.c.l.b16 %v1382
      %v1427 = vunpack.c.l.b16 %v1383
      %v1428 = vunpack.c.l.b16 %v1384
      %v1429 = vunpack.c.l.b16 %v1385
      %v1430 = vunpack.c.l.b16 %v1386
      %v1431 = vunpack.c.l.b16 %v1387
      %v1432 = vunpack.c.l.b16 %v1388
      %v1433 = vunpack.c.l.b16 %v1389
      %v1434 = vpack.c.b16 %v1427, %v1426
      %v1435 = vpack.c.b16 %v1429, %v1428
      %v1436 = vpack.c.b16 %v1431, %v1430
      %v1437 = vpack.c.b16 %v1433, %v1432
      %v1439 = vsel %vm1032, %v1434, 0
      %v1442 = vsel %vm1032, %v1435, 0
      %v1445 = vsel %vm1032, %v1436, 0
      %v1448 = vsel %vm1032, %v1437, 0
      %1450 = vmatprep.subr.bf16.mxu0 %v1415
      %1451 = vmatpush1.bf16.msra.mxu0 %v1414
      %1452 = vmatprep.subr.bf16.mxu0 %v1417
      %1453 = vmatpush1.bf16.msra.mxu0 %v1416
      %1454 = vmatprep.subr.bf16.mxu0 0
      %1455 = vmatpush1.bf16.msra.mxu0 0
      %1456 = vmatprep.subr.bf16.mxu0 0
      %1457 = vmatpush1.bf16.msra.mxu0 0
      %1458 = vmatprep.subr.bf16.mxu0 0
      %1459 = vmatpush1.bf16.msra.mxu0 0
      %1460 = vmatprep.subr.bf16.mxu0 0
      %1461 = vmatpush1.bf16.msra.mxu0 0
      %1462 = vmatprep.subr.bf16.mxu0 0
      %1463 = vmatpush1.bf16.msra.mxu0 0
      %1464 = vmatprep.subr.bf16.mxu0 0
      %1465 = vmatpush1.bf16.msra.mxu0 0
      %1466 = vmatprep.subr.bf16.mxu0 0
      %1467 = vmatpush1.bf16.msra.mxu0 0
      %1468 = vmatprep.subr.bf16.mxu0 0
      %1469 = vmatpush1.bf16.msra.mxu0 0
      %1470 = vmatprep.subr.bf16.mxu0 0
      %1471 = vmatpush1.bf16.msra.mxu0 0
      %1472 = vmatprep.subr.bf16.mxu0 0
      %1473 = vmatpush1.bf16.msra.mxu0 0
      %1474 = vmatprep.subr.bf16.mxu0 0
      %1475 = vmatpush1.bf16.msra.mxu0 0
      %1476 = vmatprep.subr.bf16.mxu0 0
      %1477 = vmatpush1.bf16.msra.mxu0 0
      %1478 = vmatprep.subr.bf16.mxu0 0
      %1479 = vmatpush1.bf16.msra.mxu0 0
      %1480 = vmatprep.subr.bf16.mxu0 0
      %1481 = vmatpush1.bf16.msra.mxu0 0
      %1482 = vmatprep.mubr.bf16.mxu0 0
      %1483 = vmatmul.mubr.bf16.gmra.mrb[0].mxu0 %v1439
      %v1484 = vpop.f32.mrb[0].mxu0
      %v1485 = vadd.f32 0.0, %v1484
      %v1486 = vpop.f32.mrb[0].mxu0
      %v1487 = vadd.f32 0.0, %v1486
      %v1488 = vpop.f32.mrb[0].mxu0
      %v1489 = vadd.f32 0.0, %v1488
      %v1490 = vpop.f32.mrb[0].mxu0
      %v1491 = vadd.f32 0.0, %v1490
      %1492 = vmatprep.mubr.bf16.mxu0 0
      %1493 = vmatmul.mubr.bf16.gmra.mrb[0].mxu0 %v1442
      %v1494 = vpop.f32.mrb[0].mxu0
      %v1495 = vadd.f32 0.0, %v1494
      %v1496 = vpop.f32.mrb[0].mxu0
      %v1497 = vadd.f32 0.0, %v1496
      %v1498 = vpop.f32.mrb[0].mxu0
      %v1499 = vadd.f32 0.0, %v1498
      %v1500 = vpop.f32.mrb[0].mxu0
      %v1501 = vadd.f32 0.0, %v1500
      %1502 = vmatprep.mubr.bf16.mxu0 0
      %1503 = vmatmul.mubr.bf16.gmra.mrb[0].mxu0 %v1445
      %v1504 = vpop.f32.mrb[0].mxu0
      %v1505 = vadd.f32 0.0, %v1504
      %v1506 = vpop.f32.mrb[0].mxu0
      %v1507 = vadd.f32 0.0, %v1506
      %v1508 = vpop.f32.mrb[0].mxu0
      %v1509 = vadd.f32 0.0, %v1508
      %v1510 = vpop.f32.mrb[0].mxu0
      %v1511 = vadd.f32 0.0, %v1510
      %1512 = vmatprep.mubr.bf16.mxu0 0
      %1513 = vmatmul.mubr.bf16.gmra.mrb[0].mxu0 %v1448
      %v1514 = vpop.f32.mrb[0].mxu0
      %v1515 = vadd.f32 0.0, %v1514
      %v1516 = vpop.f32.mrb[0].mxu0
      %v1517 = vadd.f32 0.0, %v1516
      %v1518 = vpop.f32.mrb[0].mxu0
      %v1519 = vadd.f32 0.0, %v1518
      %v1520 = vpop.f32.mrb[0].mxu0
      %v1521 = vadd.f32 0.0, %v1520
      %1522 = vdwg.mxu0
      %v1523 = vadd.f32 %v1365, %v1485
      %v1524 = vadd.f32 %v1366, %v1487
      %v1525 = vadd.f32 %v1367, %v1489
      %v1526 = vadd.f32 %v1368, %v1491
      %v1527 = vadd.f32 %v1369, %v1495
      %v1528 = vadd.f32 %v1370, %v1497
      %v1529 = vadd.f32 %v1371, %v1499
      %v1530 = vadd.f32 %v1372, %v1501
      %v1531 = vadd.f32 %v1373, %v1505
      %v1532 = vadd.f32 %v1374, %v1507
      %v1533 = vadd.f32 %v1375, %v1509
      %v1534 = vadd.f32 %v1376, %v1511
      %v1535 = vadd.f32 %v1377, %v1515
      %v1536 = vadd.f32 %v1378, %v1517
      %v1537 = vadd.f32 %v1379, %v1519
      %v1538 = vadd.f32 %v1380, %v1521
      %s1539 = scalar_lea.vmem %s3, 128
      %v1540 = vld [vmem:[%s1539] sm:$0xf]
      %v1541 = vld [vmem:[%s1539 + $0x4] sm:$0xf]
      %v1542 = vld [vmem:[%s1539 + $0x8] sm:$0xf]
      %v1543 = vld [vmem:[%s1539 + $0xc] sm:$0xf]
      %v1544 = vld [vmem:[%s1539 + $0x10] sm:$0xf]
      %v1545 = vld [vmem:[%s1539 + $0x14] sm:$0xf]
      %v1546 = vld [vmem:[%s1539 + $0x18] sm:$0xf]
      %v1547 = vld [vmem:[%s1539 + $0x1c] sm:$0xf]
      %v1548 = vpack.c.bf16 %v933, %v931
      %v1549 = vpack.c.bf16 %v934, %v932
      %v1550 = vpack.c.bf16 %v937, %v935
      %v1551 = vpack.c.bf16 %v938, %v936
      %v1560 = vunpack.c.l.b16 %v1540
      %v1561 = vunpack.c.l.b16 %v1541
      %v1562 = vunpack.c.l.b16 %v1542
      %v1563 = vunpack.c.l.b16 %v1543
      %v1564 = vunpack.c.l.b16 %v1544
      %v1565 = vunpack.c.l.b16 %v1545
      %v1566 = vunpack.c.l.b16 %v1546
      %v1567 = vunpack.c.l.b16 %v1547
      %v1568 = vpack.c.b16 %v1561, %v1560
      %v1569 = vpack.c.b16 %v1563, %v1562
      %v1570 = vpack.c.b16 %v1565, %v1564
      %v1571 = vpack.c.b16 %v1567, %v1566
      %v1573 = vsel %vm1032, %v1568, 0
      %v1576 = vsel %vm1032, %v1569, 0
      %v1579 = vsel %vm1032, %v1570, 0
      %v1582 = vsel %vm1032, %v1571, 0
      %1584 = vmatprep.subr.bf16.mxu0 %v1549
      %1585 = vmatpush1.bf16.msra.mxu0 %v1548
      %1586 = vmatprep.subr.bf16.mxu0 %v1551
      %1587 = vmatpush1.bf16.msra.mxu0 %v1550
      %1588 = vmatprep.subr.bf16.mxu0 0
      %1589 = vmatpush1.bf16.msra.mxu0 0
      %1590 = vmatprep.subr.bf16.mxu0 0
      %1591 = vmatpush1.bf16.msra.mxu0 0
      %1592 = vmatprep.subr.bf16.mxu0 0
      %1593 = vmatpush1.bf16.msra.mxu0 0
      %1594 = vmatprep.subr.bf16.mxu0 0
      %1595 = vmatpush1.bf16.msra.mxu0 0
      %1596 = vmatprep.subr.bf16.mxu0 0
      %1597 = vmatpush1.bf16.msra.mxu0 0
      %1598 = vmatprep.subr.bf16.mxu0 0
      %1599 = vmatpush1.bf16.msra.mxu0 0
      %1600 = vmatprep.subr.bf16.mxu0 0
      %1601 = vmatpush1.bf16.msra.mxu0 0
      %1602 = vmatprep.subr.bf16.mxu0 0
      %1603 = vmatpush1.bf16.msra.mxu0 0
      %1604 = vmatprep.subr.bf16.mxu0 0
      %1605 = vmatpush1.bf16.msra.mxu0 0
      %1606 = vmatprep.subr.bf16.mxu0 0
      %1607 = vmatpush1.bf16.msra.mxu0 0
      %1608 = vmatprep.subr.bf16.mxu0 0
      %1609 = vmatpush1.bf16.msra.mxu0 0
      %1610 = vmatprep.subr.bf16.mxu0 0
      %1611 = vmatpush1.bf16.msra.mxu0 0
      %1612 = vmatprep.subr.bf16.mxu0 0
      %1613 = vmatpush1.bf16.msra.mxu0 0
      %1614 = vmatprep.subr.bf16.mxu0 0
      %1615 = vmatpush1.bf16.msra.mxu0 0
      %1616 = vmatprep.mubr.bf16.mxu0 0
      %1617 = vmatmul.mubr.bf16.gmra.mrb[0].mxu0 %v1573
      %v1618 = vpop.f32.mrb[0].mxu0
      %v1619 = vadd.f32 0.0, %v1618
      %v1620 = vpop.f32.mrb[0].mxu0
      %v1621 = vadd.f32 0.0, %v1620
      %v1622 = vpop.f32.mrb[0].mxu0
      %v1623 = vadd.f32 0.0, %v1622
      %v1624 = vpop.f32.mrb[0].mxu0
      %v1625 = vadd.f32 0.0, %v1624
      %1626 = vmatprep.mubr.bf16.mxu0 0
      %1627 = vmatmul.mubr.bf16.gmra.mrb[0].mxu0 %v1576
      %v1628 = vpop.f32.mrb[0].mxu0
      %v1629 = vadd.f32 0.0, %v1628
      %v1630 = vpop.f32.mrb[0].mxu0
      %v1631 = vadd.f32 0.0, %v1630
      %v1632 = vpop.f32.mrb[0].mxu0
      %v1633 = vadd.f32 0.0, %v1632
      %v1634 = vpop.f32.mrb[0].mxu0
      %v1635 = vadd.f32 0.0, %v1634
      %1636 = vmatprep.mubr.bf16.mxu0 0
      %1637 = vmatmul.mubr.bf16.gmra.mrb[0].mxu0 %v1579
      %v1638 = vpop.f32.mrb[0].mxu0
      %v1639 = vadd.f32 0.0, %v1638
      %v1640 = vpop.f32.mrb[0].mxu0
      %v1641 = vadd.f32 0.0, %v1640
      %v1642 = vpop.f32.mrb[0].mxu0
      %v1643 = vadd.f32 0.0, %v1642
      %v1644 = vpop.f32.mrb[0].mxu0
      %v1645 = vadd.f32 0.0, %v1644
      %1646 = vmatprep.mubr.bf16.mxu0 0
      %1647 = vmatmul.mubr.bf16.gmra.mrb[0].mxu0 %v1582
      %v1648 = vpop.f32.mrb[0].mxu0
      %v1649 = vadd.f32 0.0, %v1648
      %v1650 = vpop.f32.mrb[0].mxu0
      %v1651 = vadd.f32 0.0, %v1650
      %v1652 = vpop.f32.mrb[0].mxu0
      %v1653 = vadd.f32 0.0, %v1652
      %v1654 = vpop.f32.mrb[0].mxu0
      %v1655 = vadd.f32 0.0, %v1654
      %1656 = vdwg.mxu0
      %v1657 = vadd.f32 %v1523, %v1619
      %v1658 = vadd.f32 %v1524, %v1621
      %v1659 = vadd.f32 %v1525, %v1623
      %v1660 = vadd.f32 %v1526, %v1625
      %v1661 = vadd.f32 %v1527, %v1629
      %v1662 = vadd.f32 %v1528, %v1631
      %v1663 = vadd.f32 %v1529, %v1633
      %v1664 = vadd.f32 %v1530, %v1635
      %v1665 = vadd.f32 %v1531, %v1639
      %v1666 = vadd.f32 %v1532, %v1641
      %v1667 = vadd.f32 %v1533, %v1643
      %v1668 = vadd.f32 %v1534, %v1645
      %v1669 = vadd.f32 %v1535, %v1649
      %v1670 = vadd.f32 %v1536, %v1651
      %v1671 = vadd.f32 %v1537, %v1653
      %v1672 = vadd.f32 %v1538, %v1655
      %s1673 = scalar_lea.vmem %s3, 160
      %v1674 = vld [vmem:[%s1673] sm:$0xf]
      %v1675 = vld [vmem:[%s1673 + $0x4] sm:$0xf]
      %v1676 = vld [vmem:[%s1673 + $0x8] sm:$0xf]
      %v1677 = vld [vmem:[%s1673 + $0xc] sm:$0xf]
      %v1678 = vld [vmem:[%s1673 + $0x10] sm:$0xf]
      %v1679 = vld [vmem:[%s1673 + $0x14] sm:$0xf]
      %v1680 = vld [vmem:[%s1673 + $0x18] sm:$0xf]
      %v1681 = vld [vmem:[%s1673 + $0x1c] sm:$0xf]
      %1682 = vrot.lane.b32.xlu0 %v931, 127
      %v1683 = vpop.permute.xlu0 %1682
      %1684 = vrot.lane.b32.xlu0 %v933, 127
      %v1685 = vpop.permute.xlu0 %1684
      %1686 = vrot.lane.b32.xlu0 %v935, 127
      %v1687 = vpop.permute.xlu0 %1686
      %1688 = vrot.lane.b32.xlu0 %v937, 127
      %v1689 = vpop.permute.xlu0 %1688
      %1690 = vrot.lane.b32.xlu0 %v932, 127
      %v1691 = vpop.permute.xlu0 %1690
      %1692 = vrot.lane.b32.xlu0 %v934, 127
      %v1693 = vpop.permute.xlu0 %1692
      %1694 = vrot.lane.b32.xlu0 %v936, 127
      %v1695 = vpop.permute.xlu0 %1694
      %1696 = vrot.lane.b32.xlu0 %v938, 127
      %v1697 = vpop.permute.xlu0 %1696
      %v1698 = vsel %vm664, %v1683, %v1691
      %v1699 = vsel %vm664, %v1685, %v1693
      %v1700 = vsel %vm664, %v1687, %v1695
      %v1701 = vsel %vm664, %v1689, %v1697
      %v1702 = vsel %vm664, %v1691, %v1683
      %v1703 = vsel %vm664, %v1693, %v1685
      %v1704 = vsel %vm664, %v1695, %v1687
      %v1705 = vsel %vm664, %v1697, %v1689
      %v1706 = vpack.c.bf16 %v1699, %v1698
      %v1707 = vpack.c.bf16 %v1703, %v1702
      %v1708 = vpack.c.bf16 %v1701, %v1700
      %v1709 = vpack.c.bf16 %v1705, %v1704
      %v1718 = vunpack.c.l.b16 %v1674
      %v1719 = vunpack.c.l.b16 %v1675
      %v1720 = vunpack.c.l.b16 %v1676
      %v1721 = vunpack.c.l.b16 %v1677
      %v1722 = vunpack.c.l.b16 %v1678
      %v1723 = vunpack.c.l.b16 %v1679
      %v1724 = vunpack.c.l.b16 %v1680
      %v1725 = vunpack.c.l.b16 %v1681
      %v1726 = vpack.c.b16 %v1719, %v1718
      %v1727 = vpack.c.b16 %v1721, %v1720
      %v1728 = vpack.c.b16 %v1723, %v1722
      %v1729 = vpack.c.b16 %v1725, %v1724
      %v1731 = vsel %vm1032, %v1726, 0
      %v1734 = vsel %vm1032, %v1727, 0
      %v1737 = vsel %vm1032, %v1728, 0
      %v1740 = vsel %vm1032, %v1729, 0
      %1742 = vmatprep.subr.bf16.mxu0 %v1707
      %1743 = vmatpush1.bf16.msra.mxu0 %v1706
      %1744 = vmatprep.subr.bf16.mxu0 %v1709
      %1745 = vmatpush1.bf16.msra.mxu0 %v1708
      %1746 = vmatprep.subr.bf16.mxu0 0
      %1747 = vmatpush1.bf16.msra.mxu0 0
      %1748 = vmatprep.subr.bf16.mxu0 0
      %1749 = vmatpush1.bf16.msra.mxu0 0
      %1750 = vmatprep.subr.bf16.mxu0 0
      %1751 = vmatpush1.bf16.msra.mxu0 0
      %1752 = vmatprep.subr.bf16.mxu0 0
      %1753 = vmatpush1.bf16.msra.mxu0 0
      %1754 = vmatprep.subr.bf16.mxu0 0
      %1755 = vmatpush1.bf16.msra.mxu0 0
      %1756 = vmatprep.subr.bf16.mxu0 0
      %1757 = vmatpush1.bf16.msra.mxu0 0
      %1758 = vmatprep.subr.bf16.mxu0 0
      %1759 = vmatpush1.bf16.msra.mxu0 0
      %1760 = vmatprep.subr.bf16.mxu0 0
      %1761 = vmatpush1.bf16.msra.mxu0 0
      %1762 = vmatprep.subr.bf16.mxu0 0
      %1763 = vmatpush1.bf16.msra.mxu0 0
      %1764 = vmatprep.subr.bf16.mxu0 0
      %1765 = vmatpush1.bf16.msra.mxu0 0
      %1766 = vmatprep.subr.bf16.mxu0 0
      %1767 = vmatpush1.bf16.msra.mxu0 0
      %1768 = vmatprep.subr.bf16.mxu0 0
      %1769 = vmatpush1.bf16.msra.mxu0 0
      %1770 = vmatprep.subr.bf16.mxu0 0
      %1771 = vmatpush1.bf16.msra.mxu0 0
      %1772 = vmatprep.subr.bf16.mxu0 0
      %1773 = vmatpush1.bf16.msra.mxu0 0
      %1774 = vmatprep.mubr.bf16.mxu0 0
      %1775 = vmatmul.mubr.bf16.gmra.mrb[0].mxu0 %v1731
      %v1776 = vpop.f32.mrb[0].mxu0
      %v1777 = vadd.f32 0.0, %v1776
      %v1778 = vpop.f32.mrb[0].mxu0
      %v1779 = vadd.f32 0.0, %v1778
      %v1780 = vpop.f32.mrb[0].mxu0
      %v1781 = vadd.f32 0.0, %v1780
      %v1782 = vpop.f32.mrb[0].mxu0
      %v1783 = vadd.f32 0.0, %v1782
      %1784 = vmatprep.mubr.bf16.mxu0 0
      %1785 = vmatmul.mubr.bf16.gmra.mrb[0].mxu0 %v1734
      %v1786 = vpop.f32.mrb[0].mxu0
      %v1787 = vadd.f32 0.0, %v1786
      %v1788 = vpop.f32.mrb[0].mxu0
      %v1789 = vadd.f32 0.0, %v1788
      %v1790 = vpop.f32.mrb[0].mxu0
      %v1791 = vadd.f32 0.0, %v1790
      %v1792 = vpop.f32.mrb[0].mxu0
      %v1793 = vadd.f32 0.0, %v1792
      %1794 = vmatprep.mubr.bf16.mxu0 0
      %1795 = vmatmul.mubr.bf16.gmra.mrb[0].mxu0 %v1737
      %v1796 = vpop.f32.mrb[0].mxu0
      %v1797 = vadd.f32 0.0, %v1796
      %v1798 = vpop.f32.mrb[0].mxu0
      %v1799 = vadd.f32 0.0, %v1798
      %v1800 = vpop.f32.mrb[0].mxu0
      %v1801 = vadd.f32 0.0, %v1800
      %v1802 = vpop.f32.mrb[0].mxu0
      %v1803 = vadd.f32 0.0, %v1802
      %1804 = vmatprep.mubr.bf16.mxu0 0
      %1805 = vmatmul.mubr.bf16.gmra.mrb[0].mxu0 %v1740
      %v1806 = vpop.f32.mrb[0].mxu0
      %v1807 = vadd.f32 0.0, %v1806
      %v1808 = vpop.f32.mrb[0].mxu0
      %v1809 = vadd.f32 0.0, %v1808
      %v1810 = vpop.f32.mrb[0].mxu0
      %v1811 = vadd.f32 0.0, %v1810
      %v1812 = vpop.f32.mrb[0].mxu0
      %v1813 = vadd.f32 0.0, %v1812
      %1814 = vdwg.mxu0
      %v1815 = vadd.f32 %v1657, %v1777
      %v1816 = vadd.f32 %v1658, %v1779
      %v1817 = vadd.f32 %v1659, %v1781
      %v1818 = vadd.f32 %v1660, %v1783
      %v1819 = vadd.f32 %v1661, %v1787
      %v1820 = vadd.f32 %v1662, %v1789
      %v1821 = vadd.f32 %v1663, %v1791
      %v1822 = vadd.f32 %v1664, %v1793
      %v1823 = vadd.f32 %v1665, %v1797
      %v1824 = vadd.f32 %v1666, %v1799
      %v1825 = vadd.f32 %v1667, %v1801
      %v1826 = vadd.f32 %v1668, %v1803
      %v1827 = vadd.f32 %v1669, %v1807
      %v1828 = vadd.f32 %v1670, %v1809
      %v1829 = vadd.f32 %v1671, %v1811
      %v1830 = vadd.f32 %v1672, %v1813
      %s1831 = scalar_lea.vmem %s3, 192
      %v1832 = vld [vmem:[%s1831] sm:$0xf]
      %v1833 = vld [vmem:[%s1831 + $0x4] sm:$0xf]
      %v1834 = vld [vmem:[%s1831 + $0x8] sm:$0xf]
      %v1835 = vld [vmem:[%s1831 + $0xc] sm:$0xf]
      %v1836 = vld [vmem:[%s1831 + $0x10] sm:$0xf]
      %v1837 = vld [vmem:[%s1831 + $0x14] sm:$0xf]
      %v1838 = vld [vmem:[%s1831 + $0x18] sm:$0xf]
      %v1839 = vld [vmem:[%s1831 + $0x1c] sm:$0xf]
      %1840 = vrot.lane.b32.xlu0 %v931, 113
      %v1841 = vpop.permute.xlu0 %1840
      %1842 = vrot.lane.b32.xlu0 %v933, 113
      %v1843 = vpop.permute.xlu0 %1842
      %1844 = vrot.lane.b32.xlu0 %v935, 113
      %v1845 = vpop.permute.xlu0 %1844
      %1846 = vrot.lane.b32.xlu0 %v937, 113
      %v1847 = vpop.permute.xlu0 %1846
      %1848 = vrot.lane.b32.xlu0 %v932, 113
      %v1849 = vpop.permute.xlu0 %1848
      %1850 = vrot.lane.b32.xlu0 %v934, 113
      %v1851 = vpop.permute.xlu0 %1850
      %1852 = vrot.lane.b32.xlu0 %v936, 113
      %v1853 = vpop.permute.xlu0 %1852
      %1854 = vrot.lane.b32.xlu0 %v938, 113
      %v1855 = vpop.permute.xlu0 %1854
      %v1856 = vsel %vm720, %v1841, %v1849
      %v1857 = vsel %vm720, %v1843, %v1851
      %v1858 = vsel %vm720, %v1845, %v1853
      %v1859 = vsel %vm720, %v1847, %v1855
      %v1860 = vsel %vm720, %v1849, %v1841
      %v1861 = vsel %vm720, %v1851, %v1843
      %v1862 = vsel %vm720, %v1853, %v1845
      %v1863 = vsel %vm720, %v1855, %v1847
      %v1864 = vpack.c.bf16 %v1857, %v1856
      %v1865 = vpack.c.bf16 %v1861, %v1860
      %v1866 = vpack.c.bf16 %v1859, %v1858
      %v1867 = vpack.c.bf16 %v1863, %v1862
      %v1876 = vunpack.c.l.b16 %v1832
      %v1877 = vunpack.c.l.b16 %v1833
      %v1878 = vunpack.c.l.b16 %v1834
      %v1879 = vunpack.c.l.b16 %v1835
      %v1880 = vunpack.c.l.b16 %v1836
      %v1881 = vunpack.c.l.b16 %v1837
      %v1882 = vunpack.c.l.b16 %v1838
      %v1883 = vunpack.c.l.b16 %v1839
      %v1884 = vpack.c.b16 %v1877, %v1876
      %v1885 = vpack.c.b16 %v1879, %v1878
      %v1886 = vpack.c.b16 %v1881, %v1880
      %v1887 = vpack.c.b16 %v1883, %v1882
      %v1889 = vsel %vm1032, %v1884, 0
      %v1892 = vsel %vm1032, %v1885, 0
      %v1895 = vsel %vm1032, %v1886, 0
      %v1898 = vsel %vm1032, %v1887, 0
      %1900 = vmatprep.subr.bf16.mxu0 %v1865
      %1901 = vmatpush1.bf16.msra.mxu0 %v1864
      %1902 = vmatprep.subr.bf16.mxu0 %v1867
      %1903 = vmatpush1.bf16.msra.mxu0 %v1866
      %1904 = vmatprep.subr.bf16.mxu0 0
      %1905 = vmatpush1.bf16.msra.mxu0 0
      %1906 = vmatprep.subr.bf16.mxu0 0
      %1907 = vmatpush1.bf16.msra.mxu0 0
      %1908 = vmatprep.subr.bf16.mxu0 0
      %1909 = vmatpush1.bf16.msra.mxu0 0
      %1910 = vmatprep.subr.bf16.mxu0 0
      %1911 = vmatpush1.bf16.msra.mxu0 0
      %1912 = vmatprep.subr.bf16.mxu0 0
      %1913 = vmatpush1.bf16.msra.mxu0 0
      %1914 = vmatprep.subr.bf16.mxu0 0
      %1915 = vmatpush1.bf16.msra.mxu0 0
      %1916 = vmatprep.subr.bf16.mxu0 0
      %1917 = vmatpush1.bf16.msra.mxu0 0
      %1918 = vmatprep.subr.bf16.mxu0 0
      %1919 = vmatpush1.bf16.msra.mxu0 0
      %1920 = vmatprep.subr.bf16.mxu0 0
      %1921 = vmatpush1.bf16.msra.mxu0 0
      %1922 = vmatprep.subr.bf16.mxu0 0
      %1923 = vmatpush1.bf16.msra.mxu0 0
      %1924 = vmatprep.subr.bf16.mxu0 0
      %1925 = vmatpush1.bf16.msra.mxu0 0
      %1926 = vmatprep.subr.bf16.mxu0 0
      %1927 = vmatpush1.bf16.msra.mxu0 0
      %1928 = vmatprep.subr.bf16.mxu0 0
      %1929 = vmatpush1.bf16.msra.mxu0 0
      %1930 = vmatprep.subr.bf16.mxu0 0
      %1931 = vmatpush1.bf16.msra.mxu0 0
      %1932 = vmatprep.mubr.bf16.mxu0 0
      %1933 = vmatmul.mubr.bf16.gmra.mrb[0].mxu0 %v1889
      %v1934 = vpop.f32.mrb[0].mxu0
      %v1935 = vadd.f32 0.0, %v1934
      %v1936 = vpop.f32.mrb[0].mxu0
      %v1937 = vadd.f32 0.0, %v1936
      %v1938 = vpop.f32.mrb[0].mxu0
      %v1939 = vadd.f32 0.0, %v1938
      %v1940 = vpop.f32.mrb[0].mxu0
      %v1941 = vadd.f32 0.0, %v1940
      %1942 = vmatprep.mubr.bf16.mxu0 0
      %1943 = vmatmul.mubr.bf16.gmra.mrb[0].mxu0 %v1892
      %v1944 = vpop.f32.mrb[0].mxu0
      %v1945 = vadd.f32 0.0, %v1944
      %v1946 = vpop.f32.mrb[0].mxu0
      %v1947 = vadd.f32 0.0, %v1946
      %v1948 = vpop.f32.mrb[0].mxu0
      %v1949 = vadd.f32 0.0, %v1948
      %v1950 = vpop.f32.mrb[0].mxu0
      %v1951 = vadd.f32 0.0, %v1950
      %1952 = vmatprep.mubr.bf16.mxu0 0
      %1953 = vmatmul.mubr.bf16.gmra.mrb[0].mxu0 %v1895
      %v1954 = vpop.f32.mrb[0].mxu0
      %v1955 = vadd.f32 0.0, %v1954
      %v1956 = vpop.f32.mrb[0].mxu0
      %v1957 = vadd.f32 0.0, %v1956
      %v1958 = vpop.f32.mrb[0].mxu0
      %v1959 = vadd.f32 0.0, %v1958
      %v1960 = vpop.f32.mrb[0].mxu0
      %v1961 = vadd.f32 0.0, %v1960
      %1962 = vmatprep.mubr.bf16.mxu0 0
      %1963 = vmatmul.mubr.bf16.gmra.mrb[0].mxu0 %v1898
      %v1964 = vpop.f32.mrb[0].mxu0
      %v1965 = vadd.f32 0.0, %v1964
      %v1966 = vpop.f32.mrb[0].mxu0
      %v1967 = vadd.f32 0.0, %v1966
      %v1968 = vpop.f32.mrb[0].mxu0
      %v1969 = vadd.f32 0.0, %v1968
      %v1970 = vpop.f32.mrb[0].mxu0
      %v1971 = vadd.f32 0.0, %v1970
      %1972 = vdwg.mxu0
      %v1973 = vadd.f32 %v1815, %v1935
      %v1974 = vadd.f32 %v1816, %v1937
      %v1975 = vadd.f32 %v1817, %v1939
      %v1976 = vadd.f32 %v1818, %v1941
      %v1977 = vadd.f32 %v1819, %v1945
      %v1978 = vadd.f32 %v1820, %v1947
      %v1979 = vadd.f32 %v1821, %v1949
      %v1980 = vadd.f32 %v1822, %v1951
      %v1981 = vadd.f32 %v1823, %v1955
      %v1982 = vadd.f32 %v1824, %v1957
      %v1983 = vadd.f32 %v1825, %v1959
      %v1984 = vadd.f32 %v1826, %v1961
      %v1985 = vadd.f32 %v1827, %v1965
      %v1986 = vadd.f32 %v1828, %v1967
      %v1987 = vadd.f32 %v1829, %v1969
      %v1988 = vadd.f32 %v1830, %v1971
      %s1989 = scalar_lea.vmem %s3, 224
      %v1990 = vld [vmem:[%s1989] sm:$0xf]
      %v1991 = vld [vmem:[%s1989 + $0x4] sm:$0xf]
      %v1992 = vld [vmem:[%s1989 + $0x8] sm:$0xf]
      %v1993 = vld [vmem:[%s1989 + $0xc] sm:$0xf]
      %v1994 = vld [vmem:[%s1989 + $0x10] sm:$0xf]
      %v1995 = vld [vmem:[%s1989 + $0x14] sm:$0xf]
      %v1996 = vld [vmem:[%s1989 + $0x18] sm:$0xf]
      %v1997 = vld [vmem:[%s1989 + $0x1c] sm:$0xf]
      %1998 = vrot.lane.b32.xlu0 %v931, 112
      %v1999 = vpop.permute.xlu0 %1998
      %2000 = vrot.lane.b32.xlu0 %v933, 112
      %v2001 = vpop.permute.xlu0 %2000
      %2002 = vrot.lane.b32.xlu0 %v935, 112
      %v2003 = vpop.permute.xlu0 %2002
      %2004 = vrot.lane.b32.xlu0 %v937, 112
      %v2005 = vpop.permute.xlu0 %2004
      %2006 = vrot.lane.b32.xlu0 %v932, 112
      %v2007 = vpop.permute.xlu0 %2006
      %2008 = vrot.lane.b32.xlu0 %v934, 112
      %v2009 = vpop.permute.xlu0 %2008
      %2010 = vrot.lane.b32.xlu0 %v936, 112
      %v2011 = vpop.permute.xlu0 %2010
      %2012 = vrot.lane.b32.xlu0 %v938, 112
      %v2013 = vpop.permute.xlu0 %2012
      %v2014 = vsel %vm776, %v1999, %v2007
      %v2015 = vsel %vm776, %v2001, %v2009
      %v2016 = vsel %vm776, %v2003, %v2011
      %v2017 = vsel %vm776, %v2005, %v2013
      %v2018 = vsel %vm776, %v2007, %v1999
      %v2019 = vsel %vm776, %v2009, %v2001
      %v2020 = vsel %vm776, %v2011, %v2003
      %v2021 = vsel %vm776, %v2013, %v2005
      %v2022 = vpack.c.bf16 %v2015, %v2014
      %v2023 = vpack.c.bf16 %v2019, %v2018
      %v2024 = vpack.c.bf16 %v2017, %v2016
      %v2025 = vpack.c.bf16 %v2021, %v2020
      %v2034 = vunpack.c.l.b16 %v1990
      %v2035 = vunpack.c.l.b16 %v1991
      %v2036 = vunpack.c.l.b16 %v1992
      %v2037 = vunpack.c.l.b16 %v1993
      %v2038 = vunpack.c.l.b16 %v1994
      %v2039 = vunpack.c.l.b16 %v1995
      %v2040 = vunpack.c.l.b16 %v1996
      %v2041 = vunpack.c.l.b16 %v1997
      %v2042 = vpack.c.b16 %v2035, %v2034
      %v2043 = vpack.c.b16 %v2037, %v2036
      %v2044 = vpack.c.b16 %v2039, %v2038
      %v2045 = vpack.c.b16 %v2041, %v2040
      %v2047 = vsel %vm1032, %v2042, 0
      %v2050 = vsel %vm1032, %v2043, 0
      %v2053 = vsel %vm1032, %v2044, 0
      %v2056 = vsel %vm1032, %v2045, 0
      %2058 = vmatprep.subr.bf16.mxu0 %v2023
      %2059 = vmatpush1.bf16.msra.mxu0 %v2022
      %2060 = vmatprep.subr.bf16.mxu0 %v2025
      %2061 = vmatpush1.bf16.msra.mxu0 %v2024
      %2062 = vmatprep.subr.bf16.mxu0 0
      %2063 = vmatpush1.bf16.msra.mxu0 0
      %2064 = vmatprep.subr.bf16.mxu0 0
      %2065 = vmatpush1.bf16.msra.mxu0 0
      %2066 = vmatprep.subr.bf16.mxu0 0
      %2067 = vmatpush1.bf16.msra.mxu0 0
      %2068 = vmatprep.subr.bf16.mxu0 0
      %2069 = vmatpush1.bf16.msra.mxu0 0
      %2070 = vmatprep.subr.bf16.mxu0 0
      %2071 = vmatpush1.bf16.msra.mxu0 0
      %2072 = vmatprep.subr.bf16.mxu0 0
      %2073 = vmatpush1.bf16.msra.mxu0 0
      %2074 = vmatprep.subr.bf16.mxu0 0
      %2075 = vmatpush1.bf16.msra.mxu0 0
      %2076 = vmatprep.subr.bf16.mxu0 0
      %2077 = vmatpush1.bf16.msra.mxu0 0
      %2078 = vmatprep.subr.bf16.mxu0 0
      %2079 = vmatpush1.bf16.msra.mxu0 0
      %2080 = vmatprep.subr.bf16.mxu0 0
      %2081 = vmatpush1.bf16.msra.mxu0 0
      %2082 = vmatprep.subr.bf16.mxu0 0
      %2083 = vmatpush1.bf16.msra.mxu0 0
      %2084 = vmatprep.subr.bf16.mxu0 0
      %2085 = vmatpush1.bf16.msra.mxu0 0
      %2086 = vmatprep.subr.bf16.mxu0 0
      %2087 = vmatpush1.bf16.msra.mxu0 0
      %2088 = vmatprep.subr.bf16.mxu0 0
      %2089 = vmatpush1.bf16.msra.mxu0 0
      %2090 = vmatprep.mubr.bf16.mxu0 0
      %2091 = vmatmul.mubr.bf16.gmra.mrb[0].mxu0 %v2047
      %v2092 = vpop.f32.mrb[0].mxu0
      %v2093 = vadd.f32 0.0, %v2092
      %v2094 = vpop.f32.mrb[0].mxu0
      %v2095 = vadd.f32 0.0, %v2094
      %v2096 = vpop.f32.mrb[0].mxu0
      %v2097 = vadd.f32 0.0, %v2096
      %v2098 = vpop.f32.mrb[0].mxu0
      %v2099 = vadd.f32 0.0, %v2098
      %2100 = vmatprep.mubr.bf16.mxu0 0
      %2101 = vmatmul.mubr.bf16.gmra.mrb[0].mxu0 %v2050
      %v2102 = vpop.f32.mrb[0].mxu0
      %v2103 = vadd.f32 0.0, %v2102
      %v2104 = vpop.f32.mrb[0].mxu0
      %v2105 = vadd.f32 0.0, %v2104
      %v2106 = vpop.f32.mrb[0].mxu0
      %v2107 = vadd.f32 0.0, %v2106
      %v2108 = vpop.f32.mrb[0].mxu0
      %v2109 = vadd.f32 0.0, %v2108
      %2110 = vmatprep.mubr.bf16.mxu0 0
      %2111 = vmatmul.mubr.bf16.gmra.mrb[0].mxu0 %v2053
      %v2112 = vpop.f32.mrb[0].mxu0
      %v2113 = vadd.f32 0.0, %v2112
      %v2114 = vpop.f32.mrb[0].mxu0
      %v2115 = vadd.f32 0.0, %v2114
      %v2116 = vpop.f32.mrb[0].mxu0
      %v2117 = vadd.f32 0.0, %v2116
      %v2118 = vpop.f32.mrb[0].mxu0
      %v2119 = vadd.f32 0.0, %v2118
      %2120 = vmatprep.mubr.bf16.mxu0 0
      %2121 = vmatmul.mubr.bf16.gmra.mrb[0].mxu0 %v2056
      %v2122 = vpop.f32.mrb[0].mxu0
      %v2123 = vadd.f32 0.0, %v2122
      %v2124 = vpop.f32.mrb[0].mxu0
      %v2125 = vadd.f32 0.0, %v2124
      %v2126 = vpop.f32.mrb[0].mxu0
      %v2127 = vadd.f32 0.0, %v2126
      %v2128 = vpop.f32.mrb[0].mxu0
      %v2129 = vadd.f32 0.0, %v2128
      %2130 = vdwg.mxu0
      %v2131 = vadd.f32 %v1973, %v2093
      %v2132 = vadd.f32 %v1974, %v2095
      %v2133 = vadd.f32 %v1975, %v2097
      %v2134 = vadd.f32 %v1976, %v2099
      %v2135 = vadd.f32 %v1977, %v2103
      %v2136 = vadd.f32 %v1978, %v2105
      %v2137 = vadd.f32 %v1979, %v2107
      %v2138 = vadd.f32 %v1980, %v2109
      %v2139 = vadd.f32 %v1981, %v2113
      %v2140 = vadd.f32 %v1982, %v2115
      %v2141 = vadd.f32 %v1983, %v2117
      %v2142 = vadd.f32 %v1984, %v2119
      %v2143 = vadd.f32 %v1985, %v2123
      %v2144 = vadd.f32 %v1986, %v2125
      %v2145 = vadd.f32 %v1987, %v2127
      %v2146 = vadd.f32 %v1988, %v2129
      %s2147 = scalar_lea.vmem %s3, 256
      %v2148 = vld [vmem:[%s2147] sm:$0xf]
      %v2149 = vld [vmem:[%s2147 + $0x4] sm:$0xf]
      %v2150 = vld [vmem:[%s2147 + $0x8] sm:$0xf]
      %v2151 = vld [vmem:[%s2147 + $0xc] sm:$0xf]
      %v2152 = vld [vmem:[%s2147 + $0x10] sm:$0xf]
      %v2153 = vld [vmem:[%s2147 + $0x14] sm:$0xf]
      %v2154 = vld [vmem:[%s2147 + $0x18] sm:$0xf]
      %v2155 = vld [vmem:[%s2147 + $0x1c] sm:$0xf]
      %2156 = vrot.lane.b32.xlu0 %v931, 111
      %v2157 = vpop.permute.xlu0 %2156
      %2158 = vrot.lane.b32.xlu0 %v933, 111
      %v2159 = vpop.permute.xlu0 %2158
      %2160 = vrot.lane.b32.xlu0 %v935, 111
      %v2161 = vpop.permute.xlu0 %2160
      %2162 = vrot.lane.b32.xlu0 %v937, 111
      %v2163 = vpop.permute.xlu0 %2162
      %2164 = vrot.lane.b32.xlu0 %v932, 111
      %v2165 = vpop.permute.xlu0 %2164
      %2166 = vrot.lane.b32.xlu0 %v934, 111
      %v2167 = vpop.permute.xlu0 %2166
      %2168 = vrot.lane.b32.xlu0 %v936, 111
      %v2169 = vpop.permute.xlu0 %2168
      %2170 = vrot.lane.b32.xlu0 %v938, 111
      %v2171 = vpop.permute.xlu0 %2170
      %v2172 = vsel %vm832, %v2157, %v2165
      %v2173 = vsel %vm832, %v2159, %v2167
      %v2174 = vsel %vm832, %v2161, %v2169
      %v2175 = vsel %vm832, %v2163, %v2171
      %v2176 = vsel %vm832, %v2165, %v2157
      %v2177 = vsel %vm832, %v2167, %v2159
      %v2178 = vsel %vm832, %v2169, %v2161
      %v2179 = vsel %vm832, %v2171, %v2163
      %v2180 = vpack.c.bf16 %v2173, %v2172
      %v2181 = vpack.c.bf16 %v2177, %v2176
      %v2182 = vpack.c.bf16 %v2175, %v2174
      %v2183 = vpack.c.bf16 %v2179, %v2178
      %v2192 = vunpack.c.l.b16 %v2148
      %v2193 = vunpack.c.l.b16 %v2149
      %v2194 = vunpack.c.l.b16 %v2150
      %v2195 = vunpack.c.l.b16 %v2151
      %v2196 = vunpack.c.l.b16 %v2152
      %v2197 = vunpack.c.l.b16 %v2153
      %v2198 = vunpack.c.l.b16 %v2154
      %v2199 = vunpack.c.l.b16 %v2155
      %v2200 = vpack.c.b16 %v2193, %v2192
      %v2201 = vpack.c.b16 %v2195, %v2194
      %v2202 = vpack.c.b16 %v2197, %v2196
      %v2203 = vpack.c.b16 %v2199, %v2198
      %v2205 = vsel %vm1032, %v2200, 0
      %v2208 = vsel %vm1032, %v2201, 0
      %v2211 = vsel %vm1032, %v2202, 0
      %v2214 = vsel %vm1032, %v2203, 0
      %2216 = vmatprep.subr.bf16.mxu0 %v2181
      %2217 = vmatpush1.bf16.msra.mxu0 %v2180
      %2218 = vmatprep.subr.bf16.mxu0 %v2183
      %2219 = vmatpush1.bf16.msra.mxu0 %v2182
      %2220 = vmatprep.subr.bf16.mxu0 0
      %2221 = vmatpush1.bf16.msra.mxu0 0
      %2222 = vmatprep.subr.bf16.mxu0 0
      %2223 = vmatpush1.bf16.msra.mxu0 0
      %2224 = vmatprep.subr.bf16.mxu0 0
      %2225 = vmatpush1.bf16.msra.mxu0 0
      %2226 = vmatprep.subr.bf16.mxu0 0
      %2227 = vmatpush1.bf16.msra.mxu0 0
      %2228 = vmatprep.subr.bf16.mxu0 0
      %2229 = vmatpush1.bf16.msra.mxu0 0
      %2230 = vmatprep.subr.bf16.mxu0 0
      %2231 = vmatpush1.bf16.msra.mxu0 0
      %2232 = vmatprep.subr.bf16.mxu0 0
      %2233 = vmatpush1.bf16.msra.mxu0 0
      %2234 = vmatprep.subr.bf16.mxu0 0
      %2235 = vmatpush1.bf16.msra.mxu0 0
      %2236 = vmatprep.subr.bf16.mxu0 0
      %2237 = vmatpush1.bf16.msra.mxu0 0
      %2238 = vmatprep.subr.bf16.mxu0 0
      %2239 = vmatpush1.bf16.msra.mxu0 0
      %2240 = vmatprep.subr.bf16.mxu0 0
      %2241 = vmatpush1.bf16.msra.mxu0 0
      %2242 = vmatprep.subr.bf16.mxu0 0
      %2243 = vmatpush1.bf16.msra.mxu0 0
      %2244 = vmatprep.subr.bf16.mxu0 0
      %2245 = vmatpush1.bf16.msra.mxu0 0
      %2246 = vmatprep.subr.bf16.mxu0 0
      %2247 = vmatpush1.bf16.msra.mxu0 0
      %2248 = vmatprep.mubr.bf16.mxu0 0
      %2249 = vmatmul.mubr.bf16.gmra.mrb[0].mxu0 %v2205
      %v2250 = vpop.f32.mrb[0].mxu0
      %v2251 = vadd.f32 0.0, %v2250
      %v2252 = vpop.f32.mrb[0].mxu0
      %v2253 = vadd.f32 0.0, %v2252
      %v2254 = vpop.f32.mrb[0].mxu0
      %v2255 = vadd.f32 0.0, %v2254
      %v2256 = vpop.f32.mrb[0].mxu0
      %v2257 = vadd.f32 0.0, %v2256
      %2258 = vmatprep.mubr.bf16.mxu0 0
      %2259 = vmatmul.mubr.bf16.gmra.mrb[0].mxu0 %v2208
      %v2260 = vpop.f32.mrb[0].mxu0
      %v2261 = vadd.f32 0.0, %v2260
      %v2262 = vpop.f32.mrb[0].mxu0
      %v2263 = vadd.f32 0.0, %v2262
      %v2264 = vpop.f32.mrb[0].mxu0
      %v2265 = vadd.f32 0.0, %v2264
      %v2266 = vpop.f32.mrb[0].mxu0
      %v2267 = vadd.f32 0.0, %v2266
      %2268 = vmatprep.mubr.bf16.mxu0 0
      %2269 = vmatmul.mubr.bf16.gmra.mrb[0].mxu0 %v2211
      %v2270 = vpop.f32.mrb[0].mxu0
      %v2271 = vadd.f32 0.0, %v2270
      %v2272 = vpop.f32.mrb[0].mxu0
      %v2273 = vadd.f32 0.0, %v2272
      %v2274 = vpop.f32.mrb[0].mxu0
      %v2275 = vadd.f32 0.0, %v2274
      %v2276 = vpop.f32.mrb[0].mxu0
      %v2277 = vadd.f32 0.0, %v2276
      %2278 = vmatprep.mubr.bf16.mxu0 0
      %2279 = vmatmul.mubr.bf16.gmra.mrb[0].mxu0 %v2214
      %v2280 = vpop.f32.mrb[0].mxu0
      %v2281 = vadd.f32 0.0, %v2280
      %v2282 = vpop.f32.mrb[0].mxu0
      %v2283 = vadd.f32 0.0, %v2282
      %v2284 = vpop.f32.mrb[0].mxu0
      %v2285 = vadd.f32 0.0, %v2284
      %v2286 = vpop.f32.mrb[0].mxu0
      %v2287 = vadd.f32 0.0, %v2286
      %2288 = vdwg.mxu0
      %v2289 = vadd.f32 %v2131, %v2251
      %v2290 = vadd.f32 %v2132, %v2253
      %v2291 = vadd.f32 %v2133, %v2255
      %v2292 = vadd.f32 %v2134, %v2257
      %v2293 = vadd.f32 %v2135, %v2261
      %v2294 = vadd.f32 %v2136, %v2263
      %v2295 = vadd.f32 %v2137, %v2265
      %v2296 = vadd.f32 %v2138, %v2267
      %v2297 = vadd.f32 %v2139, %v2271
      %v2298 = vadd.f32 %v2140, %v2273
      %v2299 = vadd.f32 %v2141, %v2275
      %v2300 = vadd.f32 %v2142, %v2277
      %v2301 = vadd.f32 %v2143, %v2281
      %v2302 = vadd.f32 %v2144, %v2283
      %v2303 = vadd.f32 %v2145, %v2285
      %v2304 = vadd.f32 %v2146, %v2287
      %v2305 = vld [vmem:[%s4] sm:$0xff]
      %v2306 = vld [vmem:[%s4 + $0x8] sm:$0xff]
      %v2307 = vld [vmem:[%s4 + $0x10] sm:$0xff]
      %v2308 = vld [vmem:[%s4 + $0x18] sm:$0xff]
      %v2309 = vld [vmem:[%s4 + $0x20] sm:$0xff]
      %v2310 = vld [vmem:[%s4 + $0x28] sm:$0xff]
      %v2311 = vld [vmem:[%s4 + $0x30] sm:$0xff]
      %v2312 = vld [vmem:[%s4 + $0x38] sm:$0xff]
      %2314 = vset.pattern.permute.xlu0 0
      %2315 = vperm.xlu0 %2314, %v2305
      %v2316 = vpop.permute.xlu0 %2315
      %2319 = vset.pattern.permute.xlu0 0
      %2320 = vperm.xlu0 %2319, %v2306
      %v2321 = vpop.permute.xlu0 %2320
      %2324 = vset.pattern.permute.xlu0 0
      %2325 = vperm.xlu0 %2324, %v2307
      %v2326 = vpop.permute.xlu0 %2325
      %2329 = vset.pattern.permute.xlu0 0
      %2330 = vperm.xlu0 %2329, %v2308
      %v2331 = vpop.permute.xlu0 %2330
      %2334 = vset.pattern.permute.xlu0 0
      %2335 = vperm.xlu0 %2334, %v2309
      %v2336 = vpop.permute.xlu0 %2335
      %2339 = vset.pattern.permute.xlu0 0
      %2340 = vperm.xlu0 %2339, %v2310
      %v2341 = vpop.permute.xlu0 %2340
      %2344 = vset.pattern.permute.xlu0 0
      %2345 = vperm.xlu0 %2344, %v2311
      %v2346 = vpop.permute.xlu0 %2345
      %2349 = vset.pattern.permute.xlu0 0
      %2350 = vperm.xlu0 %2349, %v2312
      %v2351 = vpop.permute.xlu0 %2350
      %v2353 = vadd.f32 %v2289, %v2316
      %v2354 = vadd.f32 %v2290, %v2316
      %v2355 = vadd.f32 %v2291, %v2321
      %v2356 = vadd.f32 %v2292, %v2321
      %v2357 = vadd.f32 %v2293, %v2326
      %v2358 = vadd.f32 %v2294, %v2326
      %v2359 = vadd.f32 %v2295, %v2331
      %v2360 = vadd.f32 %v2296, %v2331
      %v2361 = vadd.f32 %v2297, %v2336
      %v2362 = vadd.f32 %v2298, %v2336
      %v2363 = vadd.f32 %v2299, %v2341
      %v2364 = vadd.f32 %v2300, %v2341
      %v2365 = vadd.f32 %v2301, %v2346
      %v2366 = vadd.f32 %v2302, %v2346
      %v2367 = vadd.f32 %v2303, %v2351
      %v2368 = vadd.f32 %v2304, %v2351
      %v2369 = vmax.f32 %v2353, 0.0
      %v2370 = vmax.f32 %v2354, 0.0
      %v2371 = vmax.f32 %v2355, 0.0
      %v2372 = vmax.f32 %v2356, 0.0
      %v2373 = vmax.f32 %v2357, 0.0
      %v2374 = vmax.f32 %v2358, 0.0
      %v2375 = vmax.f32 %v2359, 0.0
      %v2376 = vmax.f32 %v2360, 0.0
      %v2377 = vmax.f32 %v2361, 0.0
      %v2378 = vmax.f32 %v2362, 0.0
      %v2379 = vmax.f32 %v2363, 0.0
      %v2380 = vmax.f32 %v2364, 0.0
      %v2381 = vmax.f32 %v2365, 0.0
      %v2382 = vmax.f32 %v2366, 0.0
      %v2383 = vmax.f32 %v2367, 0.0
      %v2384 = vmax.f32 %v2368, 0.0
      %v2385 = vld [vmem:[%s10] sm:$0x3]
      %v2387 = vlaneseq
      %v2388 = vshrl.u32 %v2387, 7
      %v2389 = vsub.s32 0, %v2388
      %v2390 = vrot.slane %v2385, %v2389
      %v2391 = vlaneseq
      %v2392 = vshrl.u32 %v2391, 7
      %v2393 = vsub.s32 1, %v2392
      %v2394 = vrot.slane %v2385, %v2393
      %v2397 = vmul.f32 %v2369, %v2390
      %v2398 = vmul.f32 %v2370, %v2394
      %v2399 = vmul.f32 %v2371, %v2390
      %v2400 = vmul.f32 %v2372, %v2394
      %v2401 = vmul.f32 %v2373, %v2390
      %v2402 = vmul.f32 %v2374, %v2394
      %v2403 = vmul.f32 %v2375, %v2390
      %v2404 = vmul.f32 %v2376, %v2394
      %v2405 = vmul.f32 %v2377, %v2390
      %v2406 = vmul.f32 %v2378, %v2394
      %v2407 = vmul.f32 %v2379, %v2390
      %v2408 = vmul.f32 %v2380, %v2394
      %v2409 = vmul.f32 %v2381, %v2390
      %v2410 = vmul.f32 %v2382, %v2394
      %v2411 = vmul.f32 %v2383, %v2390
      %v2412 = vmul.f32 %v2384, %v2394
      %v2413 = vld [vmem:[%s5] sm:$0xf]
      %v2414 = vld [vmem:[%s5 + $0x4] sm:$0xf]
      %v2415 = vld [vmem:[%s5 + $0x8] sm:$0xf]
      %v2416 = vld [vmem:[%s5 + $0xc] sm:$0xf]
      %2417 = vrot.lane.b32.xlu0 %v2397, 17
      %v2418 = vpop.permute.xlu0 %2417
      %2419 = vrot.lane.b32.xlu0 %v2399, 17
      %v2420 = vpop.permute.xlu0 %2419
      %2421 = vrot.lane.b32.xlu0 %v2401, 17
      %v2422 = vpop.permute.xlu0 %2421
      %2423 = vrot.lane.b32.xlu0 %v2403, 17
      %v2424 = vpop.permute.xlu0 %2423
      %2425 = vrot.lane.b32.xlu0 %v2405, 17
      %v2426 = vpop.permute.xlu0 %2425
      %2427 = vrot.lane.b32.xlu0 %v2407, 17
      %v2428 = vpop.permute.xlu0 %2427
      %2429 = vrot.lane.b32.xlu0 %v2409, 17
      %v2430 = vpop.permute.xlu0 %2429
      %2431 = vrot.lane.b32.xlu0 %v2411, 17
      %v2432 = vpop.permute.xlu0 %2431
      %2433 = vrot.lane.b32.xlu0 %v2398, 17
      %v2434 = vpop.permute.xlu0 %2433
      %2435 = vrot.lane.b32.xlu0 %v2400, 17
      %v2436 = vpop.permute.xlu0 %2435
      %2437 = vrot.lane.b32.xlu0 %v2402, 17
      %v2438 = vpop.permute.xlu0 %2437
      %2439 = vrot.lane.b32.xlu0 %v2404, 17
      %v2440 = vpop.permute.xlu0 %2439
      %2441 = vrot.lane.b32.xlu0 %v2406, 17
      %v2442 = vpop.permute.xlu0 %2441
      %2443 = vrot.lane.b32.xlu0 %v2408, 17
      %v2444 = vpop.permute.xlu0 %2443
      %2445 = vrot.lane.b32.xlu0 %v2410, 17
      %v2446 = vpop.permute.xlu0 %2445
      %2447 = vrot.lane.b32.xlu0 %v2412, 17
      %v2448 = vpop.permute.xlu0 %2447
      %v2449 = vsel %vm407, %v2418, %v2434
      %v2450 = vsel %vm407, %v2420, %v2436
      %v2451 = vsel %vm407, %v2422, %v2438
      %v2452 = vsel %vm407, %v2424, %v2440
      %v2453 = vsel %vm407, %v2426, %v2442
      %v2454 = vsel %vm407, %v2428, %v2444
      %v2455 = vsel %vm407, %v2430, %v2446
      %v2456 = vsel %vm407, %v2432, %v2448
      %v2457 = vsel %vm407, %v2434, %v2418
      %v2458 = vsel %vm407, %v2436, %v2420
      %v2459 = vsel %vm407, %v2438, %v2422
      %v2460 = vsel %vm407, %v2440, %v2424
      %v2461 = vsel %vm407, %v2442, %v2426
      %v2462 = vsel %vm407, %v2444, %v2428
      %v2463 = vsel %vm407, %v2446, %v2430
      %v2464 = vsel %vm407, %v2448, %v2432
      %v2465 = vpack.c.bf16 %v2458, %v2457
      %v2466 = vpack.c.bf16 %v2450, %v2449
      %v2467 = vpack.c.bf16 %v2460, %v2459
      %v2468 = vpack.c.bf16 %v2452, %v2451
      %v2469 = vpack.c.bf16 %v2462, %v2461
      %v2470 = vpack.c.bf16 %v2454, %v2453
      %v2471 = vpack.c.bf16 %v2464, %v2463
      %v2472 = vpack.c.bf16 %v2456, %v2455
      %s2473 = scalar_lea.vmem %s5, 16
      %v2474 = vld [vmem:[%s2473] sm:$0xf]
      %v2475 = vld [vmem:[%s2473 + $0x4] sm:$0xf]
      %v2476 = vld [vmem:[%s2473 + $0x8] sm:$0xf]
      %v2477 = vld [vmem:[%s2473 + $0xc] sm:$0xf]
      %2478 = vrot.lane.b32.xlu0 %v2397, 16
      %v2479 = vpop.permute.xlu0 %2478
      %2480 = vrot.lane.b32.xlu0 %v2399, 16
      %v2481 = vpop.permute.xlu0 %2480
      %2482 = vrot.lane.b32.xlu0 %v2401, 16
      %v2483 = vpop.permute.xlu0 %2482
      %2484 = vrot.lane.b32.xlu0 %v2403, 16
      %v2485 = vpop.permute.xlu0 %2484
      %2486 = vrot.lane.b32.xlu0 %v2405, 16
      %v2487 = vpop.permute.xlu0 %2486
      %2488 = vrot.lane.b32.xlu0 %v2407, 16
      %v2489 = vpop.permute.xlu0 %2488
      %2490 = vrot.lane.b32.xlu0 %v2409, 16
      %v2491 = vpop.permute.xlu0 %2490
      %2492 = vrot.lane.b32.xlu0 %v2411, 16
      %v2493 = vpop.permute.xlu0 %2492
      %2494 = vrot.lane.b32.xlu0 %v2398, 16
      %v2495 = vpop.permute.xlu0 %2494
      %2496 = vrot.lane.b32.xlu0 %v2400, 16
      %v2497 = vpop.permute.xlu0 %2496
      %2498 = vrot.lane.b32.xlu0 %v2402, 16
      %v2499 = vpop.permute.xlu0 %2498
      %2500 = vrot.lane.b32.xlu0 %v2404, 16
      %v2501 = vpop.permute.xlu0 %2500
      %2502 = vrot.lane.b32.xlu0 %v2406, 16
      %v2503 = vpop.permute.xlu0 %2502
      %2504 = vrot.lane.b32.xlu0 %v2408, 16
      %v2505 = vpop.permute.xlu0 %2504
      %2506 = vrot.lane.b32.xlu0 %v2410, 16
      %v2507 = vpop.permute.xlu0 %2506
      %2508 = vrot.lane.b32.xlu0 %v2412, 16
      %v2509 = vpop.permute.xlu0 %2508
      %v2510 = vsel %vm455, %v2479, %v2495
      %v2511 = vsel %vm455, %v2481, %v2497
      %v2512 = vsel %vm455, %v2483, %v2499
      %v2513 = vsel %vm455, %v2485, %v2501
      %v2514 = vsel %vm455, %v2487, %v2503
      %v2515 = vsel %vm455, %v2489, %v2505
      %v2516 = vsel %vm455, %v2491, %v2507
      %v2517 = vsel %vm455, %v2493, %v2509
      %v2518 = vsel %vm455, %v2495, %v2479
      %v2519 = vsel %vm455, %v2497, %v2481
      %v2520 = vsel %vm455, %v2499, %v2483
      %v2521 = vsel %vm455, %v2501, %v2485
      %v2522 = vsel %vm455, %v2503, %v2487
      %v2523 = vsel %vm455, %v2505, %v2489
      %v2524 = vsel %vm455, %v2507, %v2491
      %v2525 = vsel %vm455, %v2509, %v2493
      %v2526 = vpack.c.bf16 %v2519, %v2518
      %v2527 = vpack.c.bf16 %v2511, %v2510
      %v2528 = vpack.c.bf16 %v2521, %v2520
      %v2529 = vpack.c.bf16 %v2513, %v2512
      %v2530 = vpack.c.bf16 %v2523, %v2522
      %v2531 = vpack.c.bf16 %v2515, %v2514
      %v2532 = vpack.c.bf16 %v2525, %v2524
      %v2533 = vpack.c.bf16 %v2517, %v2516
      %v2538 = vunpack.c.l.b16 %v2474
      %v2539 = vunpack.c.l.b16 %v2475
      %v2540 = vunpack.c.l.b16 %v2476
      %v2541 = vunpack.c.l.b16 %v2477
      %v2542 = vpack.c.b16 %v2539, %v2538
      %v2543 = vpack.c.b16 %v2541, %v2540
      %vm2544 = vcmask 523264
      %v2546 = vsel %vm2544, %v2542, 0
      %v2549 = vsel %vm2544, %v2543, 0
      %2551 = vmatprep.subr.bf16.mxu0 %v2527
      %2552 = vmatpush1.bf16.msra.mxu0 %v2526
      %2553 = vmatprep.subr.bf16.mxu0 %v2529
      %2554 = vmatpush1.bf16.msra.mxu0 %v2528
      %2555 = vmatprep.subr.bf16.mxu0 %v2531
      %2556 = vmatpush1.bf16.msra.mxu0 %v2530
      %2557 = vmatprep.subr.bf16.mxu0 %v2533
      %2558 = vmatpush1.bf16.msra.mxu0 %v2532
      %2559 = vmatprep.subr.bf16.mxu0 0
      %2560 = vmatpush1.bf16.msra.mxu0 0
      %2561 = vmatprep.subr.bf16.mxu0 0
      %2562 = vmatpush1.bf16.msra.mxu0 0
      %2563 = vmatprep.subr.bf16.mxu0 0
      %2564 = vmatpush1.bf16.msra.mxu0 0
      %2565 = vmatprep.subr.bf16.mxu0 0
      %2566 = vmatpush1.bf16.msra.mxu0 0
      %2567 = vmatprep.subr.bf16.mxu0 0
      %2568 = vmatpush1.bf16.msra.mxu0 0
      %2569 = vmatprep.subr.bf16.mxu0 0
      %2570 = vmatpush1.bf16.msra.mxu0 0
      %2571 = vmatprep.subr.bf16.mxu0 0
      %2572 = vmatpush1.bf16.msra.mxu0 0
      %2573 = vmatprep.subr.bf16.mxu0 0
      %2574 = vmatpush1.bf16.msra.mxu0 0
      %2575 = vmatprep.subr.bf16.mxu0 0
      %2576 = vmatpush1.bf16.msra.mxu0 0
      %2577 = vmatprep.subr.bf16.mxu0 0
      %2578 = vmatpush1.bf16.msra.mxu0 0
      %2579 = vmatprep.subr.bf16.mxu0 0
      %2580 = vmatpush1.bf16.msra.mxu0 0
      %2581 = vmatprep.subr.bf16.mxu0 0
      %2582 = vmatpush1.bf16.msra.mxu0 0
      %2583 = vmatprep.mubr.bf16.mxu0 0
      %2584 = vmatmul.mubr.bf16.gmra.mrb[0].mxu0 %v2546
      %v2585 = vpop.f32.mrb[0].mxu0
      %v2586 = vadd.f32 0.0, %v2585
      %v2587 = vpop.f32.mrb[0].mxu0
      %v2588 = vadd.f32 0.0, %v2587
      %v2589 = vpop.f32.mrb[0].mxu0
      %v2590 = vadd.f32 0.0, %v2589
      %v2591 = vpop.f32.mrb[0].mxu0
      %v2592 = vadd.f32 0.0, %v2591
      %2593 = vmatprep.mubr.bf16.mxu0 0
      %2594 = vmatmul.mubr.bf16.gmra.mrb[0].mxu0 %v2549
      %v2595 = vpop.f32.mrb[0].mxu0
      %v2596 = vadd.f32 0.0, %v2595
      %v2597 = vpop.f32.mrb[0].mxu0
      %v2598 = vadd.f32 0.0, %v2597
      %v2599 = vpop.f32.mrb[0].mxu0
      %v2600 = vadd.f32 0.0, %v2599
      %v2601 = vpop.f32.mrb[0].mxu0
      %v2602 = vadd.f32 0.0, %v2601
      %2603 = vdwg.mxu0
      %v2608 = vunpack.c.l.b16 %v2413
      %v2609 = vunpack.c.l.b16 %v2414
      %v2610 = vunpack.c.l.b16 %v2415
      %v2611 = vunpack.c.l.b16 %v2416
      %v2612 = vpack.c.b16 %v2609, %v2608
      %v2613 = vpack.c.b16 %v2611, %v2610
      %v2615 = vsel %vm2544, %v2612, 0
      %v2618 = vsel %vm2544, %v2613, 0
      %2620 = vmatprep.subr.bf16.mxu0 %v2466
      %2621 = vmatpush1.bf16.msra.mxu0 %v2465
      %2622 = vmatprep.subr.bf16.mxu0 %v2468
      %2623 = vmatpush1.bf16.msra.mxu0 %v2467
      %2624 = vmatprep.subr.bf16.mxu0 %v2470
      %2625 = vmatpush1.bf16.msra.mxu0 %v2469
      %2626 = vmatprep.subr.bf16.mxu0 %v2472
      %2627 = vmatpush1.bf16.msra.mxu0 %v2471
      %2628 = vmatprep.subr.bf16.mxu0 0
      %2629 = vmatpush1.bf16.msra.mxu0 0
      %2630 = vmatprep.subr.bf16.mxu0 0
      %2631 = vmatpush1.bf16.msra.mxu0 0
      %2632 = vmatprep.subr.bf16.mxu0 0
      %2633 = vmatpush1.bf16.msra.mxu0 0
      %2634 = vmatprep.subr.bf16.mxu0 0
      %2635 = vmatpush1.bf16.msra.mxu0 0
      %2636 = vmatprep.subr.bf16.mxu0 0
      %2637 = vmatpush1.bf16.msra.mxu0 0
      %2638 = vmatprep.subr.bf16.mxu0 0
      %2639 = vmatpush1.bf16.msra.mxu0 0
      %2640 = vmatprep.subr.bf16.mxu0 0
      %2641 = vmatpush1.bf16.msra.mxu0 0
      %2642 = vmatprep.subr.bf16.mxu0 0
      %2643 = vmatpush1.bf16.msra.mxu0 0
      %2644 = vmatprep.subr.bf16.mxu0 0
      %2645 = vmatpush1.bf16.msra.mxu0 0
      %2646 = vmatprep.subr.bf16.mxu0 0
      %2647 = vmatpush1.bf16.msra.mxu0 0
      %2648 = vmatprep.subr.bf16.mxu0 0
      %2649 = vmatpush1.bf16.msra.mxu0 0
      %2650 = vmatprep.subr.bf16.mxu0 0
      %2651 = vmatpush1.bf16.msra.mxu0 0
      %2652 = vmatprep.mubr.bf16.mxu0 0
      %2653 = vmatmul.mubr.bf16.gmra.mrb[0].mxu0 %v2615
      %v2654 = vpop.f32.mrb[0].mxu0
      %v2655 = vadd.f32 %v2586, %v2654
      %v2656 = vpop.f32.mrb[0].mxu0
      %v2657 = vadd.f32 %v2588, %v2656
      %v2658 = vpop.f32.mrb[0].mxu0
      %v2659 = vadd.f32 %v2590, %v2658
      %v2660 = vpop.f32.mrb[0].mxu0
      %v2661 = vadd.f32 %v2592, %v2660
      %2662 = vmatprep.mubr.bf16.mxu0 0
      %2663 = vmatmul.mubr.bf16.gmra.mrb[0].mxu0 %v2618
      %v2664 = vpop.f32.mrb[0].mxu0
      %v2665 = vadd.f32 %v2596, %v2664
      %v2666 = vpop.f32.mrb[0].mxu0
      %v2667 = vadd.f32 %v2598, %v2666
      %v2668 = vpop.f32.mrb[0].mxu0
      %v2669 = vadd.f32 %v2600, %v2668
      %v2670 = vpop.f32.mrb[0].mxu0
      %v2671 = vadd.f32 %v2602, %v2670
      %2672 = vdwg.mxu0
      %s2673 = scalar_lea.vmem %s5, 32
      %v2674 = vld [vmem:[%s2673] sm:$0xf]
      %v2675 = vld [vmem:[%s2673 + $0x4] sm:$0xf]
      %v2676 = vld [vmem:[%s2673 + $0x8] sm:$0xf]
      %v2677 = vld [vmem:[%s2673 + $0xc] sm:$0xf]
      %2678 = vrot.lane.b32.xlu0 %v2397, 15
      %v2679 = vpop.permute.xlu0 %2678
      %2680 = vrot.lane.b32.xlu0 %v2399, 15
      %v2681 = vpop.permute.xlu0 %2680
      %2682 = vrot.lane.b32.xlu0 %v2401, 15
      %v2683 = vpop.permute.xlu0 %2682
      %2684 = vrot.lane.b32.xlu0 %v2403, 15
      %v2685 = vpop.permute.xlu0 %2684
      %2686 = vrot.lane.b32.xlu0 %v2405, 15
      %v2687 = vpop.permute.xlu0 %2686
      %2688 = vrot.lane.b32.xlu0 %v2407, 15
      %v2689 = vpop.permute.xlu0 %2688
      %2690 = vrot.lane.b32.xlu0 %v2409, 15
      %v2691 = vpop.permute.xlu0 %2690
      %2692 = vrot.lane.b32.xlu0 %v2411, 15
      %v2693 = vpop.permute.xlu0 %2692
      %2694 = vrot.lane.b32.xlu0 %v2398, 15
      %v2695 = vpop.permute.xlu0 %2694
      %2696 = vrot.lane.b32.xlu0 %v2400, 15
      %v2697 = vpop.permute.xlu0 %2696
      %2698 = vrot.lane.b32.xlu0 %v2402, 15
      %v2699 = vpop.permute.xlu0 %2698
      %2700 = vrot.lane.b32.xlu0 %v2404, 15
      %v2701 = vpop.permute.xlu0 %2700
      %2702 = vrot.lane.b32.xlu0 %v2406, 15
      %v2703 = vpop.permute.xlu0 %2702
      %2704 = vrot.lane.b32.xlu0 %v2408, 15
      %v2705 = vpop.permute.xlu0 %2704
      %2706 = vrot.lane.b32.xlu0 %v2410, 15
      %v2707 = vpop.permute.xlu0 %2706
      %2708 = vrot.lane.b32.xlu0 %v2412, 15
      %v2709 = vpop.permute.xlu0 %2708
      %v2710 = vsel %vm511, %v2679, %v2695
      %v2711 = vsel %vm511, %v2681, %v2697
      %v2712 = vsel %vm511, %v2683, %v2699
      %v2713 = vsel %vm511, %v2685, %v2701
      %v2714 = vsel %vm511, %v2687, %v2703
      %v2715 = vsel %vm511, %v2689, %v2705
      %v2716 = vsel %vm511, %v2691, %v2707
      %v2717 = vsel %vm511, %v2693, %v2709
      %v2718 = vsel %vm511, %v2695, %v2679
      %v2719 = vsel %vm511, %v2697, %v2681
      %v2720 = vsel %vm511, %v2699, %v2683
      %v2721 = vsel %vm511, %v2701, %v2685
      %v2722 = vsel %vm511, %v2703, %v2687
      %v2723 = vsel %vm511, %v2705, %v2689
      %v2724 = vsel %vm511, %v2707, %v2691
      %v2725 = vsel %vm511, %v2709, %v2693
      %v2726 = vpack.c.bf16 %v2719, %v2718
      %v2727 = vpack.c.bf16 %v2711, %v2710
      %v2728 = vpack.c.bf16 %v2721, %v2720
      %v2729 = vpack.c.bf16 %v2713, %v2712
      %v2730 = vpack.c.bf16 %v2723, %v2722
      %v2731 = vpack.c.bf16 %v2715, %v2714
      %v2732 = vpack.c.bf16 %v2725, %v2724
      %v2733 = vpack.c.bf16 %v2717, %v2716
      %v2738 = vunpack.c.l.b16 %v2674
      %v2739 = vunpack.c.l.b16 %v2675
      %v2740 = vunpack.c.l.b16 %v2676
      %v2741 = vunpack.c.l.b16 %v2677
      %v2742 = vpack.c.b16 %v2739, %v2738
      %v2743 = vpack.c.b16 %v2741, %v2740
      %v2745 = vsel %vm2544, %v2742, 0
      %v2748 = vsel %vm2544, %v2743, 0
      %2750 = vmatprep.subr.bf16.mxu0 %v2727
      %2751 = vmatpush1.bf16.msra.mxu0 %v2726
      %2752 = vmatprep.subr.bf16.mxu0 %v2729
      %2753 = vmatpush1.bf16.msra.mxu0 %v2728
      %2754 = vmatprep.subr.bf16.mxu0 %v2731
      %2755 = vmatpush1.bf16.msra.mxu0 %v2730
      %2756 = vmatprep.subr.bf16.mxu0 %v2733
      %2757 = vmatpush1.bf16.msra.mxu0 %v2732
      %2758 = vmatprep.subr.bf16.mxu0 0
      %2759 = vmatpush1.bf16.msra.mxu0 0
      %2760 = vmatprep.subr.bf16.mxu0 0
      %2761 = vmatpush1.bf16.msra.mxu0 0
      %2762 = vmatprep.subr.bf16.mxu0 0
      %2763 = vmatpush1.bf16.msra.mxu0 0
      %2764 = vmatprep.subr.bf16.mxu0 0
      %2765 = vmatpush1.bf16.msra.mxu0 0
      %2766 = vmatprep.subr.bf16.mxu0 0
      %2767 = vmatpush1.bf16.msra.mxu0 0
      %2768 = vmatprep.subr.bf16.mxu0 0
      %2769 = vmatpush1.bf16.msra.mxu0 0
      %2770 = vmatprep.subr.bf16.mxu0 0
      %2771 = vmatpush1.bf16.msra.mxu0 0
      %2772 = vmatprep.subr.bf16.mxu0 0
      %2773 = vmatpush1.bf16.msra.mxu0 0
      %2774 = vmatprep.subr.bf16.mxu0 0
      %2775 = vmatpush1.bf16.msra.mxu0 0
      %2776 = vmatprep.subr.bf16.mxu0 0
      %2777 = vmatpush1.bf16.msra.mxu0 0
      %2778 = vmatprep.subr.bf16.mxu0 0
      %2779 = vmatpush1.bf16.msra.mxu0 0
      %2780 = vmatprep.subr.bf16.mxu0 0
      %2781 = vmatpush1.bf16.msra.mxu0 0
      %2782 = vmatprep.mubr.bf16.mxu0 0
      %2783 = vmatmul.mubr.bf16.gmra.mrb[0].mxu0 %v2745
      %v2784 = vpop.f32.mrb[0].mxu0
      %v2785 = vadd.f32 0.0, %v2784
      %v2786 = vpop.f32.mrb[0].mxu0
      %v2787 = vadd.f32 0.0, %v2786
      %v2788 = vpop.f32.mrb[0].mxu0
      %v2789 = vadd.f32 0.0, %v2788
      %v2790 = vpop.f32.mrb[0].mxu0
      %v2791 = vadd.f32 0.0, %v2790
      %2792 = vmatprep.mubr.bf16.mxu0 0
      %2793 = vmatmul.mubr.bf16.gmra.mrb[0].mxu0 %v2748
      %v2794 = vpop.f32.mrb[0].mxu0
      %v2795 = vadd.f32 0.0, %v2794
      %v2796 = vpop.f32.mrb[0].mxu0
      %v2797 = vadd.f32 0.0, %v2796
      %v2798 = vpop.f32.mrb[0].mxu0
      %v2799 = vadd.f32 0.0, %v2798
      %v2800 = vpop.f32.mrb[0].mxu0
      %v2801 = vadd.f32 0.0, %v2800
      %2802 = vdwg.mxu0
      %v2803 = vadd.f32 %v2655, %v2785
      %v2804 = vadd.f32 %v2657, %v2787
      %v2805 = vadd.f32 %v2659, %v2789
      %v2806 = vadd.f32 %v2661, %v2791
      %v2807 = vadd.f32 %v2665, %v2795
      %v2808 = vadd.f32 %v2667, %v2797
      %v2809 = vadd.f32 %v2669, %v2799
      %v2810 = vadd.f32 %v2671, %v2801
      %s2811 = scalar_lea.vmem %s5, 48
      %v2812 = vld [vmem:[%s2811] sm:$0xf]
      %v2813 = vld [vmem:[%s2811 + $0x4] sm:$0xf]
      %v2814 = vld [vmem:[%s2811 + $0x8] sm:$0xf]
      %v2815 = vld [vmem:[%s2811 + $0xc] sm:$0xf]
      %2816 = vrot.lane.b32.xlu0 %v2397, 1
      %v2817 = vpop.permute.xlu0 %2816
      %2818 = vrot.lane.b32.xlu0 %v2399, 1
      %v2819 = vpop.permute.xlu0 %2818
      %2820 = vrot.lane.b32.xlu0 %v2401, 1
      %v2821 = vpop.permute.xlu0 %2820
      %2822 = vrot.lane.b32.xlu0 %v2403, 1
      %v2823 = vpop.permute.xlu0 %2822
      %2824 = vrot.lane.b32.xlu0 %v2405, 1
      %v2825 = vpop.permute.xlu0 %2824
      %2826 = vrot.lane.b32.xlu0 %v2407, 1
      %v2827 = vpop.permute.xlu0 %2826
      %2828 = vrot.lane.b32.xlu0 %v2409, 1
      %v2829 = vpop.permute.xlu0 %2828
      %2830 = vrot.lane.b32.xlu0 %v2411, 1
      %v2831 = vpop.permute.xlu0 %2830
      %2832 = vrot.lane.b32.xlu0 %v2398, 1
      %v2833 = vpop.permute.xlu0 %2832
      %2834 = vrot.lane.b32.xlu0 %v2400, 1
      %v2835 = vpop.permute.xlu0 %2834
      %2836 = vrot.lane.b32.xlu0 %v2402, 1
      %v2837 = vpop.permute.xlu0 %2836
      %2838 = vrot.lane.b32.xlu0 %v2404, 1
      %v2839 = vpop.permute.xlu0 %2838
      %2840 = vrot.lane.b32.xlu0 %v2406, 1
      %v2841 = vpop.permute.xlu0 %2840
      %2842 = vrot.lane.b32.xlu0 %v2408, 1
      %v2843 = vpop.permute.xlu0 %2842
      %2844 = vrot.lane.b32.xlu0 %v2410, 1
      %v2845 = vpop.permute.xlu0 %2844
      %2846 = vrot.lane.b32.xlu0 %v2412, 1
      %v2847 = vpop.permute.xlu0 %2846
      %v2848 = vsel %vm567, %v2817, %v2833
      %v2849 = vsel %vm567, %v2819, %v2835
      %v2850 = vsel %vm567, %v2821, %v2837
      %v2851 = vsel %vm567, %v2823, %v2839
      %v2852 = vsel %vm567, %v2825, %v2841
      %v2853 = vsel %vm567, %v2827, %v2843
      %v2854 = vsel %vm567, %v2829, %v2845
      %v2855 = vsel %vm567, %v2831, %v2847
      %v2856 = vsel %vm567, %v2833, %v2817
      %v2857 = vsel %vm567, %v2835, %v2819
      %v2858 = vsel %vm567, %v2837, %v2821
      %v2859 = vsel %vm567, %v2839, %v2823
      %v2860 = vsel %vm567, %v2841, %v2825
      %v2861 = vsel %vm567, %v2843, %v2827
      %v2862 = vsel %vm567, %v2845, %v2829
      %v2863 = vsel %vm567, %v2847, %v2831
      %v2864 = vpack.c.bf16 %v2857, %v2856
      %v2865 = vpack.c.bf16 %v2849, %v2848
      %v2866 = vpack.c.bf16 %v2859, %v2858
      %v2867 = vpack.c.bf16 %v2851, %v2850
      %v2868 = vpack.c.bf16 %v2861, %v2860
      %v2869 = vpack.c.bf16 %v2853, %v2852
      %v2870 = vpack.c.bf16 %v2863, %v2862
      %v2871 = vpack.c.bf16 %v2855, %v2854
      %v2876 = vunpack.c.l.b16 %v2812
      %v2877 = vunpack.c.l.b16 %v2813
      %v2878 = vunpack.c.l.b16 %v2814
      %v2879 = vunpack.c.l.b16 %v2815
      %v2880 = vpack.c.b16 %v2877, %v2876
      %v2881 = vpack.c.b16 %v2879, %v2878
      %v2883 = vsel %vm2544, %v2880, 0
      %v2886 = vsel %vm2544, %v2881, 0
      %2888 = vmatprep.subr.bf16.mxu0 %v2865
      %2889 = vmatpush1.bf16.msra.mxu0 %v2864
      %2890 = vmatprep.subr.bf16.mxu0 %v2867
      %2891 = vmatpush1.bf16.msra.mxu0 %v2866
      %2892 = vmatprep.subr.bf16.mxu0 %v2869
      %2893 = vmatpush1.bf16.msra.mxu0 %v2868
      %2894 = vmatprep.subr.bf16.mxu0 %v2871
      %2895 = vmatpush1.bf16.msra.mxu0 %v2870
      %2896 = vmatprep.subr.bf16.mxu0 0
      %2897 = vmatpush1.bf16.msra.mxu0 0
      %2898 = vmatprep.subr.bf16.mxu0 0
      %2899 = vmatpush1.bf16.msra.mxu0 0
      %2900 = vmatprep.subr.bf16.mxu0 0
      %2901 = vmatpush1.bf16.msra.mxu0 0
      %2902 = vmatprep.subr.bf16.mxu0 0
      %2903 = vmatpush1.bf16.msra.mxu0 0
      %2904 = vmatprep.subr.bf16.mxu0 0
      %2905 = vmatpush1.bf16.msra.mxu0 0
      %2906 = vmatprep.subr.bf16.mxu0 0
      %2907 = vmatpush1.bf16.msra.mxu0 0
      %2908 = vmatprep.subr.bf16.mxu0 0
      %2909 = vmatpush1.bf16.msra.mxu0 0
      %2910 = vmatprep.subr.bf16.mxu0 0
      %2911 = vmatpush1.bf16.msra.mxu0 0
      %2912 = vmatprep.subr.bf16.mxu0 0
      %2913 = vmatpush1.bf16.msra.mxu0 0
      %2914 = vmatprep.subr.bf16.mxu0 0
      %2915 = vmatpush1.bf16.msra.mxu0 0
      %2916 = vmatprep.subr.bf16.mxu0 0
      %2917 = vmatpush1.bf16.msra.mxu0 0
      %2918 = vmatprep.subr.bf16.mxu0 0
      %2919 = vmatpush1.bf16.msra.mxu0 0
      %2920 = vmatprep.mubr.bf16.mxu0 0
      %2921 = vmatmul.mubr.bf16.gmra.mrb[0].mxu0 %v2883
      %v2922 = vpop.f32.mrb[0].mxu0
      %v2923 = vadd.f32 0.0, %v2922
      %v2924 = vpop.f32.mrb[0].mxu0
      %v2925 = vadd.f32 0.0, %v2924
      %v2926 = vpop.f32.mrb[0].mxu0
      %v2927 = vadd.f32 0.0, %v2926
      %v2928 = vpop.f32.mrb[0].mxu0
      %v2929 = vadd.f32 0.0, %v2928
      %2930 = vmatprep.mubr.bf16.mxu0 0
      %2931 = vmatmul.mubr.bf16.gmra.mrb[0].mxu0 %v2886
      %v2932 = vpop.f32.mrb[0].mxu0
      %v2933 = vadd.f32 0.0, %v2932
      %v2934 = vpop.f32.mrb[0].mxu0
      %v2935 = vadd.f32 0.0, %v2934
      %v2936 = vpop.f32.mrb[0].mxu0
      %v2937 = vadd.f32 0.0, %v2936
      %v2938 = vpop.f32.mrb[0].mxu0
      %v2939 = vadd.f32 0.0, %v2938
      %2940 = vdwg.mxu0
      %v2941 = vadd.f32 %v2803, %v2923
      %v2942 = vadd.f32 %v2804, %v2925
      %v2943 = vadd.f32 %v2805, %v2927
      %v2944 = vadd.f32 %v2806, %v2929
      %v2945 = vadd.f32 %v2807, %v2933
      %v2946 = vadd.f32 %v2808, %v2935
      %v2947 = vadd.f32 %v2809, %v2937
      %v2948 = vadd.f32 %v2810, %v2939
      %s2949 = scalar_lea.vmem %s5, 64
      %v2950 = vld [vmem:[%s2949] sm:$0xf]
      %v2951 = vld [vmem:[%s2949 + $0x4] sm:$0xf]
      %v2952 = vld [vmem:[%s2949 + $0x8] sm:$0xf]
      %v2953 = vld [vmem:[%s2949 + $0xc] sm:$0xf]
      %v2954 = vpack.c.bf16 %v2399, %v2397
      %v2955 = vpack.c.bf16 %v2400, %v2398
      %v2956 = vpack.c.bf16 %v2403, %v2401
      %v2957 = vpack.c.bf16 %v2404, %v2402
      %v2958 = vpack.c.bf16 %v2407, %v2405
      %v2959 = vpack.c.bf16 %v2408, %v2406
      %v2960 = vpack.c.bf16 %v2411, %v2409
      %v2961 = vpack.c.bf16 %v2412, %v2410
      %v2966 = vunpack.c.l.b16 %v2950
      %v2967 = vunpack.c.l.b16 %v2951
      %v2968 = vunpack.c.l.b16 %v2952
      %v2969 = vunpack.c.l.b16 %v2953
      %v2970 = vpack.c.b16 %v2967, %v2966
      %v2971 = vpack.c.b16 %v2969, %v2968
      %v2973 = vsel %vm2544, %v2970, 0
      %v2976 = vsel %vm2544, %v2971, 0
      %2978 = vmatprep.subr.bf16.mxu0 %v2955
      %2979 = vmatpush1.bf16.msra.mxu0 %v2954
      %2980 = vmatprep.subr.bf16.mxu0 %v2957
      %2981 = vmatpush1.bf16.msra.mxu0 %v2956
      %2982 = vmatprep.subr.bf16.mxu0 %v2959
      %2983 = vmatpush1.bf16.msra.mxu0 %v2958
      %2984 = vmatprep.subr.bf16.mxu0 %v2961
      %2985 = vmatpush1.bf16.msra.mxu0 %v2960
      %2986 = vmatprep.subr.bf16.mxu0 0
      %2987 = vmatpush1.bf16.msra.mxu0 0
      %2988 = vmatprep.subr.bf16.mxu0 0
      %2989 = vmatpush1.bf16.msra.mxu0 0
      %2990 = vmatprep.subr.bf16.mxu0 0
      %2991 = vmatpush1.bf16.msra.mxu0 0
      %2992 = vmatprep.subr.bf16.mxu0 0
      %2993 = vmatpush1.bf16.msra.mxu0 0
      %2994 = vmatprep.subr.bf16.mxu0 0
      %2995 = vmatpush1.bf16.msra.mxu0 0
      %2996 = vmatprep.subr.bf16.mxu0 0
      %2997 = vmatpush1.bf16.msra.mxu0 0
      %2998 = vmatprep.subr.bf16.mxu0 0
      %2999 = vmatpush1.bf16.msra.mxu0 0
      %3000 = vmatprep.subr.bf16.mxu0 0
      %3001 = vmatpush1.bf16.msra.mxu0 0
      %3002 = vmatprep.subr.bf16.mxu0 0
      %3003 = vmatpush1.bf16.msra.mxu0 0
      %3004 = vmatprep.subr.bf16.mxu0 0
      %3005 = vmatpush1.bf16.msra.mxu0 0
      %3006 = vmatprep.subr.bf16.mxu0 0
      %3007 = vmatpush1.bf16.msra.mxu0 0
      %3008 = vmatprep.subr.bf16.mxu0 0
      %3009 = vmatpush1.bf16.msra.mxu0 0
      %3010 = vmatprep.mubr.bf16.mxu0 0
      %3011 = vmatmul.mubr.bf16.gmra.mrb[0].mxu0 %v2973
      %v3012 = vpop.f32.mrb[0].mxu0
      %v3013 = vadd.f32 0.0, %v3012
      %v3014 = vpop.f32.mrb[0].mxu0
      %v3015 = vadd.f32 0.0, %v3014
      %v3016 = vpop.f32.mrb[0].mxu0
      %v3017 = vadd.f32 0.0, %v3016
      %v3018 = vpop.f32.mrb[0].mxu0
      %v3019 = vadd.f32 0.0, %v3018
      %3020 = vmatprep.mubr.bf16.mxu0 0
      %3021 = vmatmul.mubr.bf16.gmra.mrb[0].mxu0 %v2976
      %v3022 = vpop.f32.mrb[0].mxu0
      %v3023 = vadd.f32 0.0, %v3022
      %v3024 = vpop.f32.mrb[0].mxu0
      %v3025 = vadd.f32 0.0, %v3024
      %v3026 = vpop.f32.mrb[0].mxu0
      %v3027 = vadd.f32 0.0, %v3026
      %v3028 = vpop.f32.mrb[0].mxu0
      %v3029 = vadd.f32 0.0, %v3028
      %3030 = vdwg.mxu0
      %v3031 = vadd.f32 %v2941, %v3013
      %v3032 = vadd.f32 %v2942, %v3015
      %v3033 = vadd.f32 %v2943, %v3017
      %v3034 = vadd.f32 %v2944, %v3019
      %v3035 = vadd.f32 %v2945, %v3023
      %v3036 = vadd.f32 %v2946, %v3025
      %v3037 = vadd.f32 %v2947, %v3027
      %v3038 = vadd.f32 %v2948, %v3029
      %s3039 = scalar_lea.vmem %s5, 80
      %v3040 = vld [vmem:[%s3039] sm:$0xf]
      %v3041 = vld [vmem:[%s3039 + $0x4] sm:$0xf]
      %v3042 = vld [vmem:[%s3039 + $0x8] sm:$0xf]
      %v3043 = vld [vmem:[%s3039 + $0xc] sm:$0xf]
      %3044 = vrot.lane.b32.xlu0 %v2397, 127
      %v3045 = vpop.permute.xlu0 %3044
      %3046 = vrot.lane.b32.xlu0 %v2399, 127
      %v3047 = vpop.permute.xlu0 %3046
      %3048 = vrot.lane.b32.xlu0 %v2401, 127
      %v3049 = vpop.permute.xlu0 %3048
      %3050 = vrot.lane.b32.xlu0 %v2403, 127
      %v3051 = vpop.permute.xlu0 %3050
      %3052 = vrot.lane.b32.xlu0 %v2405, 127
      %v3053 = vpop.permute.xlu0 %3052
      %3054 = vrot.lane.b32.xlu0 %v2407, 127
      %v3055 = vpop.permute.xlu0 %3054
      %3056 = vrot.lane.b32.xlu0 %v2409, 127
      %v3057 = vpop.permute.xlu0 %3056
      %3058 = vrot.lane.b32.xlu0 %v2411, 127
      %v3059 = vpop.permute.xlu0 %3058
      %3060 = vrot.lane.b32.xlu0 %v2398, 127
      %v3061 = vpop.permute.xlu0 %3060
      %3062 = vrot.lane.b32.xlu0 %v2400, 127
      %v3063 = vpop.permute.xlu0 %3062
      %3064 = vrot.lane.b32.xlu0 %v2402, 127
      %v3065 = vpop.permute.xlu0 %3064
      %3066 = vrot.lane.b32.xlu0 %v2404, 127
      %v3067 = vpop.permute.xlu0 %3066
      %3068 = vrot.lane.b32.xlu0 %v2406, 127
      %v3069 = vpop.permute.xlu0 %3068
      %3070 = vrot.lane.b32.xlu0 %v2408, 127
      %v3071 = vpop.permute.xlu0 %3070
      %3072 = vrot.lane.b32.xlu0 %v2410, 127
      %v3073 = vpop.permute.xlu0 %3072
      %3074 = vrot.lane.b32.xlu0 %v2412, 127
      %v3075 = vpop.permute.xlu0 %3074
      %v3076 = vsel %vm664, %v3045, %v3061
      %v3077 = vsel %vm664, %v3047, %v3063
      %v3078 = vsel %vm664, %v3049, %v3065
      %v3079 = vsel %vm664, %v3051, %v3067
      %v3080 = vsel %vm664, %v3053, %v3069
      %v3081 = vsel %vm664, %v3055, %v3071
      %v3082 = vsel %vm664, %v3057, %v3073
      %v3083 = vsel %vm664, %v3059, %v3075
      %v3084 = vsel %vm664, %v3061, %v3045
      %v3085 = vsel %vm664, %v3063, %v3047
      %v3086 = vsel %vm664, %v3065, %v3049
      %v3087 = vsel %vm664, %v3067, %v3051
      %v3088 = vsel %vm664, %v3069, %v3053
      %v3089 = vsel %vm664, %v3071, %v3055
      %v3090 = vsel %vm664, %v3073, %v3057
      %v3091 = vsel %vm664, %v3075, %v3059
      %v3092 = vpack.c.bf16 %v3077, %v3076
      %v3093 = vpack.c.bf16 %v3085, %v3084
      %v3094 = vpack.c.bf16 %v3079, %v3078
      %v3095 = vpack.c.bf16 %v3087, %v3086
      %v3096 = vpack.c.bf16 %v3081, %v3080
      %v3097 = vpack.c.bf16 %v3089, %v3088
      %v3098 = vpack.c.bf16 %v3083, %v3082
      %v3099 = vpack.c.bf16 %v3091, %v3090
      %v3104 = vunpack.c.l.b16 %v3040
      %v3105 = vunpack.c.l.b16 %v3041
      %v3106 = vunpack.c.l.b16 %v3042
      %v3107 = vunpack.c.l.b16 %v3043
      %v3108 = vpack.c.b16 %v3105, %v3104
      %v3109 = vpack.c.b16 %v3107, %v3106
      %v3111 = vsel %vm2544, %v3108, 0
      %v3114 = vsel %vm2544, %v3109, 0
      %3116 = vmatprep.subr.bf16.mxu0 %v3093
      %3117 = vmatpush1.bf16.msra.mxu0 %v3092
      %3118 = vmatprep.subr.bf16.mxu0 %v3095
      %3119 = vmatpush1.bf16.msra.mxu0 %v3094
      %3120 = vmatprep.subr.bf16.mxu0 %v3097
      %3121 = vmatpush1.bf16.msra.mxu0 %v3096
      %3122 = vmatprep.subr.bf16.mxu0 %v3099
      %3123 = vmatpush1.bf16.msra.mxu0 %v3098
      %3124 = vmatprep.subr.bf16.mxu0 0
      %3125 = vmatpush1.bf16.msra.mxu0 0
      %3126 = vmatprep.subr.bf16.mxu0 0
      %3127 = vmatpush1.bf16.msra.mxu0 0
      %3128 = vmatprep.subr.bf16.mxu0 0
      %3129 = vmatpush1.bf16.msra.mxu0 0
      %3130 = vmatprep.subr.bf16.mxu0 0
      %3131 = vmatpush1.bf16.msra.mxu0 0
      %3132 = vmatprep.subr.bf16.mxu0 0
      %3133 = vmatpush1.bf16.msra.mxu0 0
      %3134 = vmatprep.subr.bf16.mxu0 0
      %3135 = vmatpush1.bf16.msra.mxu0 0
      %3136 = vmatprep.subr.bf16.mxu0 0
      %3137 = vmatpush1.bf16.msra.mxu0 0
      %3138 = vmatprep.subr.bf16.mxu0 0
      %3139 = vmatpush1.bf16.msra.mxu0 0
      %3140 = vmatprep.subr.bf16.mxu0 0
      %3141 = vmatpush1.bf16.msra.mxu0 0
      %3142 = vmatprep.subr.bf16.mxu0 0
      %3143 = vmatpush1.bf16.msra.mxu0 0
      %3144 = vmatprep.subr.bf16.mxu0 0
      %3145 = vmatpush1.bf16.msra.mxu0 0
      %3146 = vmatprep.subr.bf16.mxu0 0
      %3147 = vmatpush1.bf16.msra.mxu0 0
      %3148 = vmatprep.mubr.bf16.mxu0 0
      %3149 = vmatmul.mubr.bf16.gmra.mrb[0].mxu0 %v3111
      %v3150 = vpop.f32.mrb[0].mxu0
      %v3151 = vadd.f32 0.0, %v3150
      %v3152 = vpop.f32.mrb[0].mxu0
      %v3153 = vadd.f32 0.0, %v3152
      %v3154 = vpop.f32.mrb[0].mxu0
      %v3155 = vadd.f32 0.0, %v3154
      %v3156 = vpop.f32.mrb[0].mxu0
      %v3157 = vadd.f32 0.0, %v3156
      %3158 = vmatprep.mubr.bf16.mxu0 0
      %3159 = vmatmul.mubr.bf16.gmra.mrb[0].mxu0 %v3114
      %v3160 = vpop.f32.mrb[0].mxu0
      %v3161 = vadd.f32 0.0, %v3160
      %v3162 = vpop.f32.mrb[0].mxu0
      %v3163 = vadd.f32 0.0, %v3162
      %v3164 = vpop.f32.mrb[0].mxu0
      %v3165 = vadd.f32 0.0, %v3164
      %v3166 = vpop.f32.mrb[0].mxu0
      %v3167 = vadd.f32 0.0, %v3166
      %3168 = vdwg.mxu0
      %v3169 = vadd.f32 %v3031, %v3151
      %v3170 = vadd.f32 %v3032, %v3153
      %v3171 = vadd.f32 %v3033, %v3155
      %v3172 = vadd.f32 %v3034, %v3157
      %v3173 = vadd.f32 %v3035, %v3161
      %v3174 = vadd.f32 %v3036, %v3163
      %v3175 = vadd.f32 %v3037, %v3165
      %v3176 = vadd.f32 %v3038, %v3167
      %s3177 = scalar_lea.vmem %s5, 96
      %v3178 = vld [vmem:[%s3177] sm:$0xf]
      %v3179 = vld [vmem:[%s3177 + $0x4] sm:$0xf]
      %v3180 = vld [vmem:[%s3177 + $0x8] sm:$0xf]
      %v3181 = vld [vmem:[%s3177 + $0xc] sm:$0xf]
      %3182 = vrot.lane.b32.xlu0 %v2397, 113
      %v3183 = vpop.permute.xlu0 %3182
      %3184 = vrot.lane.b32.xlu0 %v2399, 113
      %v3185 = vpop.permute.xlu0 %3184
      %3186 = vrot.lane.b32.xlu0 %v2401, 113
      %v3187 = vpop.permute.xlu0 %3186
      %3188 = vrot.lane.b32.xlu0 %v2403, 113
      %v3189 = vpop.permute.xlu0 %3188
      %3190 = vrot.lane.b32.xlu0 %v2405, 113
      %v3191 = vpop.permute.xlu0 %3190
      %3192 = vrot.lane.b32.xlu0 %v2407, 113
      %v3193 = vpop.permute.xlu0 %3192
      %3194 = vrot.lane.b32.xlu0 %v2409, 113
      %v3195 = vpop.permute.xlu0 %3194
      %3196 = vrot.lane.b32.xlu0 %v2411, 113
      %v3197 = vpop.permute.xlu0 %3196
      %3198 = vrot.lane.b32.xlu0 %v2398, 113
      %v3199 = vpop.permute.xlu0 %3198
      %3200 = vrot.lane.b32.xlu0 %v2400, 113
      %v3201 = vpop.permute.xlu0 %3200
      %3202 = vrot.lane.b32.xlu0 %v2402, 113
      %v3203 = vpop.permute.xlu0 %3202
      %3204 = vrot.lane.b32.xlu0 %v2404, 113
      %v3205 = vpop.permute.xlu0 %3204
      %3206 = vrot.lane.b32.xlu0 %v2406, 113
      %v3207 = vpop.permute.xlu0 %3206
      %3208 = vrot.lane.b32.xlu0 %v2408, 113
      %v3209 = vpop.permute.xlu0 %3208
      %3210 = vrot.lane.b32.xlu0 %v2410, 113
      %v3211 = vpop.permute.xlu0 %3210
      %3212 = vrot.lane.b32.xlu0 %v2412, 113
      %v3213 = vpop.permute.xlu0 %3212
      %v3214 = vsel %vm720, %v3183, %v3199
      %v3215 = vsel %vm720, %v3185, %v3201
      %v3216 = vsel %vm720, %v3187, %v3203
      %v3217 = vsel %vm720, %v3189, %v3205
      %v3218 = vsel %vm720, %v3191, %v3207
      %v3219 = vsel %vm720, %v3193, %v3209
      %v3220 = vsel %vm720, %v3195, %v3211
      %v3221 = vsel %vm720, %v3197, %v3213
      %v3222 = vsel %vm720, %v3199, %v3183
      %v3223 = vsel %vm720, %v3201, %v3185
      %v3224 = vsel %vm720, %v3203, %v3187
      %v3225 = vsel %vm720, %v3205, %v3189
      %v3226 = vsel %vm720, %v3207, %v3191
      %v3227 = vsel %vm720, %v3209, %v3193
      %v3228 = vsel %vm720, %v3211, %v3195
      %v3229 = vsel %vm720, %v3213, %v3197
      %v3230 = vpack.c.bf16 %v3215, %v3214
      %v3231 = vpack.c.bf16 %v3223, %v3222
      %v3232 = vpack.c.bf16 %v3217, %v3216
      %v3233 = vpack.c.bf16 %v3225, %v3224
      %v3234 = vpack.c.bf16 %v3219, %v3218
      %v3235 = vpack.c.bf16 %v3227, %v3226
      %v3236 = vpack.c.bf16 %v3221, %v3220
      %v3237 = vpack.c.bf16 %v3229, %v3228
      %v3242 = vunpack.c.l.b16 %v3178
      %v3243 = vunpack.c.l.b16 %v3179
      %v3244 = vunpack.c.l.b16 %v3180
      %v3245 = vunpack.c.l.b16 %v3181
      %v3246 = vpack.c.b16 %v3243, %v3242
      %v3247 = vpack.c.b16 %v3245, %v3244
      %v3249 = vsel %vm2544, %v3246, 0
      %v3252 = vsel %vm2544, %v3247, 0
      %3254 = vmatprep.subr.bf16.mxu0 %v3231
      %3255 = vmatpush1.bf16.msra.mxu0 %v3230
      %3256 = vmatprep.subr.bf16.mxu0 %v3233
      %3257 = vmatpush1.bf16.msra.mxu0 %v3232
      %3258 = vmatprep.subr.bf16.mxu0 %v3235
      %3259 = vmatpush1.bf16.msra.mxu0 %v3234
      %3260 = vmatprep.subr.bf16.mxu0 %v3237
      %3261 = vmatpush1.bf16.msra.mxu0 %v3236
      %3262 = vmatprep.subr.bf16.mxu0 0
      %3263 = vmatpush1.bf16.msra.mxu0 0
      %3264 = vmatprep.subr.bf16.mxu0 0
      %3265 = vmatpush1.bf16.msra.mxu0 0
      %3266 = vmatprep.subr.bf16.mxu0 0
      %3267 = vmatpush1.bf16.msra.mxu0 0
      %3268 = vmatprep.subr.bf16.mxu0 0
      %3269 = vmatpush1.bf16.msra.mxu0 0
      %3270 = vmatprep.subr.bf16.mxu0 0
      %3271 = vmatpush1.bf16.msra.mxu0 0
      %3272 = vmatprep.subr.bf16.mxu0 0
      %3273 = vmatpush1.bf16.msra.mxu0 0
      %3274 = vmatprep.subr.bf16.mxu0 0
      %3275 = vmatpush1.bf16.msra.mxu0 0
      %3276 = vmatprep.subr.bf16.mxu0 0
      %3277 = vmatpush1.bf16.msra.mxu0 0
      %3278 = vmatprep.subr.bf16.mxu0 0
      %3279 = vmatpush1.bf16.msra.mxu0 0
      %3280 = vmatprep.subr.bf16.mxu0 0
      %3281 = vmatpush1.bf16.msra.mxu0 0
      %3282 = vmatprep.subr.bf16.mxu0 0
      %3283 = vmatpush1.bf16.msra.mxu0 0
      %3284 = vmatprep.subr.bf16.mxu0 0
      %3285 = vmatpush1.bf16.msra.mxu0 0
      %3286 = vmatprep.mubr.bf16.mxu0 0
      %3287 = vmatmul.mubr.bf16.gmra.mrb[0].mxu0 %v3249
      %v3288 = vpop.f32.mrb[0].mxu0
      %v3289 = vadd.f32 0.0, %v3288
      %v3290 = vpop.f32.mrb[0].mxu0
      %v3291 = vadd.f32 0.0, %v3290
      %v3292 = vpop.f32.mrb[0].mxu0
      %v3293 = vadd.f32 0.0, %v3292
      %v3294 = vpop.f32.mrb[0].mxu0
      %v3295 = vadd.f32 0.0, %v3294
      %3296 = vmatprep.mubr.bf16.mxu0 0
      %3297 = vmatmul.mubr.bf16.gmra.mrb[0].mxu0 %v3252
      %v3298 = vpop.f32.mrb[0].mxu0
      %v3299 = vadd.f32 0.0, %v3298
      %v3300 = vpop.f32.mrb[0].mxu0
      %v3301 = vadd.f32 0.0, %v3300
      %v3302 = vpop.f32.mrb[0].mxu0
      %v3303 = vadd.f32 0.0, %v3302
      %v3304 = vpop.f32.mrb[0].mxu0
      %v3305 = vadd.f32 0.0, %v3304
      %3306 = vdwg.mxu0
      %v3307 = vadd.f32 %v3169, %v3289
      %v3308 = vadd.f32 %v3170, %v3291
      %v3309 = vadd.f32 %v3171, %v3293
      %v3310 = vadd.f32 %v3172, %v3295
      %v3311 = vadd.f32 %v3173, %v3299
      %v3312 = vadd.f32 %v3174, %v3301
      %v3313 = vadd.f32 %v3175, %v3303
      %v3314 = vadd.f32 %v3176, %v3305
      %s3315 = scalar_lea.vmem %s5, 112
      %v3316 = vld [vmem:[%s3315] sm:$0xf]
      %v3317 = vld [vmem:[%s3315 + $0x4] sm:$0xf]
      %v3318 = vld [vmem:[%s3315 + $0x8] sm:$0xf]
      %v3319 = vld [vmem:[%s3315 + $0xc] sm:$0xf]
      %3320 = vrot.lane.b32.xlu0 %v2397, 112
      %v3321 = vpop.permute.xlu0 %3320
      %3322 = vrot.lane.b32.xlu0 %v2399, 112
      %v3323 = vpop.permute.xlu0 %3322
      %3324 = vrot.lane.b32.xlu0 %v2401, 112
      %v3325 = vpop.permute.xlu0 %3324
      %3326 = vrot.lane.b32.xlu0 %v2403, 112
      %v3327 = vpop.permute.xlu0 %3326
      %3328 = vrot.lane.b32.xlu0 %v2405, 112
      %v3329 = vpop.permute.xlu0 %3328
      %3330 = vrot.lane.b32.xlu0 %v2407, 112
      %v3331 = vpop.permute.xlu0 %3330
      %3332 = vrot.lane.b32.xlu0 %v2409, 112
      %v3333 = vpop.permute.xlu0 %3332
      %3334 = vrot.lane.b32.xlu0 %v2411, 112
      %v3335 = vpop.permute.xlu0 %3334
      %3336 = vrot.lane.b32.xlu0 %v2398, 112
      %v3337 = vpop.permute.xlu0 %3336
      %3338 = vrot.lane.b32.xlu0 %v2400, 112
      %v3339 = vpop.permute.xlu0 %3338
      %3340 = vrot.lane.b32.xlu0 %v2402, 112
      %v3341 = vpop.permute.xlu0 %3340
      %3342 = vrot.lane.b32.xlu0 %v2404, 112
      %v3343 = vpop.permute.xlu0 %3342
      %3344 = vrot.lane.b32.xlu0 %v2406, 112
      %v3345 = vpop.permute.xlu0 %3344
      %3346 = vrot.lane.b32.xlu0 %v2408, 112
      %v3347 = vpop.permute.xlu0 %3346
      %3348 = vrot.lane.b32.xlu0 %v2410, 112
      %v3349 = vpop.permute.xlu0 %3348
      %3350 = vrot.lane.b32.xlu0 %v2412, 112
      %v3351 = vpop.permute.xlu0 %3350
      %v3352 = vsel %vm776, %v3321, %v3337
      %v3353 = vsel %vm776, %v3323, %v3339
      %v3354 = vsel %vm776, %v3325, %v3341
      %v3355 = vsel %vm776, %v3327, %v3343
      %v3356 = vsel %vm776, %v3329, %v3345
      %v3357 = vsel %vm776, %v3331, %v3347
      %v3358 = vsel %vm776, %v3333, %v3349
      %v3359 = vsel %vm776, %v3335, %v3351
      %v3360 = vsel %vm776, %v3337, %v3321
      %v3361 = vsel %vm776, %v3339, %v3323
      %v3362 = vsel %vm776, %v3341, %v3325
      %v3363 = vsel %vm776, %v3343, %v3327
      %v3364 = vsel %vm776, %v3345, %v3329
      %v3365 = vsel %vm776, %v3347, %v3331
      %v3366 = vsel %vm776, %v3349, %v3333
      %v3367 = vsel %vm776, %v3351, %v3335
      %v3368 = vpack.c.bf16 %v3353, %v3352
      %v3369 = vpack.c.bf16 %v3361, %v3360
      %v3370 = vpack.c.bf16 %v3355, %v3354
      %v3371 = vpack.c.bf16 %v3363, %v3362
      %v3372 = vpack.c.bf16 %v3357, %v3356
      %v3373 = vpack.c.bf16 %v3365, %v3364
      %v3374 = vpack.c.bf16 %v3359, %v3358
      %v3375 = vpack.c.bf16 %v3367, %v3366
      %v3380 = vunpack.c.l.b16 %v3316
      %v3381 = vunpack.c.l.b16 %v3317
      %v3382 = vunpack.c.l.b16 %v3318
      %v3383 = vunpack.c.l.b16 %v3319
      %v3384 = vpack.c.b16 %v3381, %v3380
      %v3385 = vpack.c.b16 %v3383, %v3382
      %v3387 = vsel %vm2544, %v3384, 0
      %v3390 = vsel %vm2544, %v3385, 0
      %3392 = vmatprep.subr.bf16.mxu0 %v3369
      %3393 = vmatpush1.bf16.msra.mxu0 %v3368
      %3394 = vmatprep.subr.bf16.mxu0 %v3371
      %3395 = vmatpush1.bf16.msra.mxu0 %v3370
      %3396 = vmatprep.subr.bf16.mxu0 %v3373
      %3397 = vmatpush1.bf16.msra.mxu0 %v3372
      %3398 = vmatprep.subr.bf16.mxu0 %v3375
      %3399 = vmatpush1.bf16.msra.mxu0 %v3374
      %3400 = vmatprep.subr.bf16.mxu0 0
      %3401 = vmatpush1.bf16.msra.mxu0 0
      %3402 = vmatprep.subr.bf16.mxu0 0
      %3403 = vmatpush1.bf16.msra.mxu0 0
      %3404 = vmatprep.subr.bf16.mxu0 0
      %3405 = vmatpush1.bf16.msra.mxu0 0
      %3406 = vmatprep.subr.bf16.mxu0 0
      %3407 = vmatpush1.bf16.msra.mxu0 0
      %3408 = vmatprep.subr.bf16.mxu0 0
      %3409 = vmatpush1.bf16.msra.mxu0 0
      %3410 = vmatprep.subr.bf16.mxu0 0
      %3411 = vmatpush1.bf16.msra.mxu0 0
      %3412 = vmatprep.subr.bf16.mxu0 0
      %3413 = vmatpush1.bf16.msra.mxu0 0
      %3414 = vmatprep.subr.bf16.mxu0 0
      %3415 = vmatpush1.bf16.msra.mxu0 0
      %3416 = vmatprep.subr.bf16.mxu0 0
      %3417 = vmatpush1.bf16.msra.mxu0 0
      %3418 = vmatprep.subr.bf16.mxu0 0
      %3419 = vmatpush1.bf16.msra.mxu0 0
      %3420 = vmatprep.subr.bf16.mxu0 0
      %3421 = vmatpush1.bf16.msra.mxu0 0
      %3422 = vmatprep.subr.bf16.mxu0 0
      %3423 = vmatpush1.bf16.msra.mxu0 0
      %3424 = vmatprep.mubr.bf16.mxu0 0
      %3425 = vmatmul.mubr.bf16.gmra.mrb[0].mxu0 %v3387
      %v3426 = vpop.f32.mrb[0].mxu0
      %v3427 = vadd.f32 0.0, %v3426
      %v3428 = vpop.f32.mrb[0].mxu0
      %v3429 = vadd.f32 0.0, %v3428
      %v3430 = vpop.f32.mrb[0].mxu0
      %v3431 = vadd.f32 0.0, %v3430
      %v3432 = vpop.f32.mrb[0].mxu0
      %v3433 = vadd.f32 0.0, %v3432
      %3434 = vmatprep.mubr.bf16.mxu0 0
      %3435 = vmatmul.mubr.bf16.gmra.mrb[0].mxu0 %v3390
      %v3436 = vpop.f32.mrb[0].mxu0
      %v3437 = vadd.f32 0.0, %v3436
      %v3438 = vpop.f32.mrb[0].mxu0
      %v3439 = vadd.f32 0.0, %v3438
      %v3440 = vpop.f32.mrb[0].mxu0
      %v3441 = vadd.f32 0.0, %v3440
      %v3442 = vpop.f32.mrb[0].mxu0
      %v3443 = vadd.f32 0.0, %v3442
      %3444 = vdwg.mxu0
      %v3445 = vadd.f32 %v3307, %v3427
      %v3446 = vadd.f32 %v3308, %v3429
      %v3447 = vadd.f32 %v3309, %v3431
      %v3448 = vadd.f32 %v3310, %v3433
      %v3449 = vadd.f32 %v3311, %v3437
      %v3450 = vadd.f32 %v3312, %v3439
      %v3451 = vadd.f32 %v3313, %v3441
      %v3452 = vadd.f32 %v3314, %v3443
      %s3453 = scalar_lea.vmem %s5, 128
      %v3454 = vld [vmem:[%s3453] sm:$0xf]
      %v3455 = vld [vmem:[%s3453 + $0x4] sm:$0xf]
      %v3456 = vld [vmem:[%s3453 + $0x8] sm:$0xf]
      %v3457 = vld [vmem:[%s3453 + $0xc] sm:$0xf]
      %3458 = vrot.lane.b32.xlu0 %v2397, 111
      %v3459 = vpop.permute.xlu0 %3458
      %3460 = vrot.lane.b32.xlu0 %v2399, 111
      %v3461 = vpop.permute.xlu0 %3460
      %3462 = vrot.lane.b32.xlu0 %v2401, 111
      %v3463 = vpop.permute.xlu0 %3462
      %3464 = vrot.lane.b32.xlu0 %v2403, 111
      %v3465 = vpop.permute.xlu0 %3464
      %3466 = vrot.lane.b32.xlu0 %v2405, 111
      %v3467 = vpop.permute.xlu0 %3466
      %3468 = vrot.lane.b32.xlu0 %v2407, 111
      %v3469 = vpop.permute.xlu0 %3468
      %3470 = vrot.lane.b32.xlu0 %v2409, 111
      %v3471 = vpop.permute.xlu0 %3470
      %3472 = vrot.lane.b32.xlu0 %v2411, 111
      %v3473 = vpop.permute.xlu0 %3472
      %3474 = vrot.lane.b32.xlu0 %v2398, 111
      %v3475 = vpop.permute.xlu0 %3474
      %3476 = vrot.lane.b32.xlu0 %v2400, 111
      %v3477 = vpop.permute.xlu0 %3476
      %3478 = vrot.lane.b32.xlu0 %v2402, 111
      %v3479 = vpop.permute.xlu0 %3478
      %3480 = vrot.lane.b32.xlu0 %v2404, 111
      %v3481 = vpop.permute.xlu0 %3480
      %3482 = vrot.lane.b32.xlu0 %v2406, 111
      %v3483 = vpop.permute.xlu0 %3482
      %3484 = vrot.lane.b32.xlu0 %v2408, 111
      %v3485 = vpop.permute.xlu0 %3484
      %3486 = vrot.lane.b32.xlu0 %v2410, 111
      %v3487 = vpop.permute.xlu0 %3486
      %3488 = vrot.lane.b32.xlu0 %v2412, 111
      %v3489 = vpop.permute.xlu0 %3488
      %v3490 = vsel %vm832, %v3459, %v3475
      %v3491 = vsel %vm832, %v3461, %v3477
      %v3492 = vsel %vm832, %v3463, %v3479
      %v3493 = vsel %vm832, %v3465, %v3481
      %v3494 = vsel %vm832, %v3467, %v3483
      %v3495 = vsel %vm832, %v3469, %v3485
      %v3496 = vsel %vm832, %v3471, %v3487
      %v3497 = vsel %vm832, %v3473, %v3489
      %v3498 = vsel %vm832, %v3475, %v3459
      %v3499 = vsel %vm832, %v3477, %v3461
      %v3500 = vsel %vm832, %v3479, %v3463
      %v3501 = vsel %vm832, %v3481, %v3465
      %v3502 = vsel %vm832, %v3483, %v3467
      %v3503 = vsel %vm832, %v3485, %v3469
      %v3504 = vsel %vm832, %v3487, %v3471
      %v3505 = vsel %vm832, %v3489, %v3473
      %v3506 = vpack.c.bf16 %v3491, %v3490
      %v3507 = vpack.c.bf16 %v3499, %v3498
      %v3508 = vpack.c.bf16 %v3493, %v3492
      %v3509 = vpack.c.bf16 %v3501, %v3500
      %v3510 = vpack.c.bf16 %v3495, %v3494
      %v3511 = vpack.c.bf16 %v3503, %v3502
      %v3512 = vpack.c.bf16 %v3497, %v3496
      %v3513 = vpack.c.bf16 %v3505, %v3504
      %v3518 = vunpack.c.l.b16 %v3454
      %v3519 = vunpack.c.l.b16 %v3455
      %v3520 = vunpack.c.l.b16 %v3456
      %v3521 = vunpack.c.l.b16 %v3457
      %v3522 = vpack.c.b16 %v3519, %v3518
      %v3523 = vpack.c.b16 %v3521, %v3520
      %v3525 = vsel %vm2544, %v3522, 0
      %v3528 = vsel %vm2544, %v3523, 0
      %3530 = vmatprep.subr.bf16.mxu0 %v3507
      %3531 = vmatpush1.bf16.msra.mxu0 %v3506
      %3532 = vmatprep.subr.bf16.mxu0 %v3509
      %3533 = vmatpush1.bf16.msra.mxu0 %v3508
      %3534 = vmatprep.subr.bf16.mxu0 %v3511
      %3535 = vmatpush1.bf16.msra.mxu0 %v3510
      %3536 = vmatprep.subr.bf16.mxu0 %v3513
      %3537 = vmatpush1.bf16.msra.mxu0 %v3512
      %3538 = vmatprep.subr.bf16.mxu0 0
      %3539 = vmatpush1.bf16.msra.mxu0 0
      %3540 = vmatprep.subr.bf16.mxu0 0
      %3541 = vmatpush1.bf16.msra.mxu0 0
      %3542 = vmatprep.subr.bf16.mxu0 0
      %3543 = vmatpush1.bf16.msra.mxu0 0
      %3544 = vmatprep.subr.bf16.mxu0 0
      %3545 = vmatpush1.bf16.msra.mxu0 0
      %3546 = vmatprep.subr.bf16.mxu0 0
      %3547 = vmatpush1.bf16.msra.mxu0 0
      %3548 = vmatprep.subr.bf16.mxu0 0
      %3549 = vmatpush1.bf16.msra.mxu0 0
      %3550 = vmatprep.subr.bf16.mxu0 0
      %3551 = vmatpush1.bf16.msra.mxu0 0
      %3552 = vmatprep.subr.bf16.mxu0 0
      %3553 = vmatpush1.bf16.msra.mxu0 0
      %3554 = vmatprep.subr.bf16.mxu0 0
      %3555 = vmatpush1.bf16.msra.mxu0 0
      %3556 = vmatprep.subr.bf16.mxu0 0
      %3557 = vmatpush1.bf16.msra.mxu0 0
      %3558 = vmatprep.subr.bf16.mxu0 0
      %3559 = vmatpush1.bf16.msra.mxu0 0
      %3560 = vmatprep.subr.bf16.mxu0 0
      %3561 = vmatpush1.bf16.msra.mxu0 0
      %3562 = vmatprep.mubr.bf16.mxu0 0
      %3563 = vmatmul.mubr.bf16.gmra.mrb[0].mxu0 %v3525
      %v3564 = vpop.f32.mrb[0].mxu0
      %v3565 = vadd.f32 0.0, %v3564
      %v3566 = vpop.f32.mrb[0].mxu0
      %v3567 = vadd.f32 0.0, %v3566
      %v3568 = vpop.f32.mrb[0].mxu0
      %v3569 = vadd.f32 0.0, %v3568
      %v3570 = vpop.f32.mrb[0].mxu0
      %v3571 = vadd.f32 0.0, %v3570
      %3572 = vmatprep.mubr.bf16.mxu0 0
      %3573 = vmatmul.mubr.bf16.gmra.mrb[0].mxu0 %v3528
      %v3574 = vpop.f32.mrb[0].mxu0
      %v3575 = vadd.f32 0.0, %v3574
      %v3576 = vpop.f32.mrb[0].mxu0
      %v3577 = vadd.f32 0.0, %v3576
      %v3578 = vpop.f32.mrb[0].mxu0
      %v3579 = vadd.f32 0.0, %v3578
      %v3580 = vpop.f32.mrb[0].mxu0
      %v3581 = vadd.f32 0.0, %v3580
      %3582 = vdwg.mxu0
      %v3583 = vadd.f32 %v3445, %v3565
      %v3584 = vadd.f32 %v3446, %v3567
      %v3585 = vadd.f32 %v3447, %v3569
      %v3586 = vadd.f32 %v3448, %v3571
      %v3587 = vadd.f32 %v3449, %v3575
      %v3588 = vadd.f32 %v3450, %v3577
      %v3589 = vadd.f32 %v3451, %v3579
      %v3590 = vadd.f32 %v3452, %v3581
      %v3591 = vld [vmem:[%s6] sm:$0xff]
      %v3592 = vld [vmem:[%s6 + $0x8] sm:$0xff]
      %v3593 = vld [vmem:[%s6 + $0x10] sm:$0xff]
      %v3594 = vld [vmem:[%s6 + $0x18] sm:$0xff]
      %3596 = vset.pattern.permute.xlu0 0
      %3597 = vperm.xlu0 %3596, %v3591
      %v3598 = vpop.permute.xlu0 %3597
      %3601 = vset.pattern.permute.xlu0 0
      %3602 = vperm.xlu0 %3601, %v3592
      %v3603 = vpop.permute.xlu0 %3602
      %3606 = vset.pattern.permute.xlu0 0
      %3607 = vperm.xlu0 %3606, %v3593
      %v3608 = vpop.permute.xlu0 %3607
      %3611 = vset.pattern.permute.xlu0 0
      %3612 = vperm.xlu0 %3611, %v3594
      %v3613 = vpop.permute.xlu0 %3612
      %v3615 = vadd.f32 %v3583, %v3598
      %v3616 = vadd.f32 %v3584, %v3598
      %v3617 = vadd.f32 %v3585, %v3603
      %v3618 = vadd.f32 %v3586, %v3603
      %v3619 = vadd.f32 %v3587, %v3608
      %v3620 = vadd.f32 %v3588, %v3608
      %v3621 = vadd.f32 %v3589, %v3613
      %v3622 = vadd.f32 %v3590, %v3613
      %v3623 = vmax.f32 %v3615, 0.0
      %v3624 = vmax.f32 %v3616, 0.0
      %v3625 = vmax.f32 %v3617, 0.0
      %v3626 = vmax.f32 %v3618, 0.0
      %v3627 = vmax.f32 %v3619, 0.0
      %v3628 = vmax.f32 %v3620, 0.0
      %v3629 = vmax.f32 %v3621, 0.0
      %v3630 = vmax.f32 %v3622, 0.0
      %v3631 = vmul.f32 %v3623, %v924
      %v3632 = vmul.f32 %v3624, %v928
      %v3633 = vmul.f32 %v3625, %v924
      %v3634 = vmul.f32 %v3626, %v928
      %v3635 = vmul.f32 %v3627, %v924
      %v3636 = vmul.f32 %v3628, %v928
      %v3637 = vmul.f32 %v3629, %v924
      %v3638 = vmul.f32 %v3630, %v928
      %v3639 = vld [vmem:[%s7] sm:$0x1]
      %3640 = vrot.lane.b32.xlu0 %v3631, 17
      %v3641 = vpop.permute.xlu0 %3640
      %3642 = vrot.lane.b32.xlu0 %v3633, 17
      %v3643 = vpop.permute.xlu0 %3642
      %3644 = vrot.lane.b32.xlu0 %v3635, 17
      %v3645 = vpop.permute.xlu0 %3644
      %3646 = vrot.lane.b32.xlu0 %v3637, 17
      %v3647 = vpop.permute.xlu0 %3646
      %3648 = vrot.lane.b32.xlu0 %v3632, 17
      %v3649 = vpop.permute.xlu0 %3648
      %3650 = vrot.lane.b32.xlu0 %v3634, 17
      %v3651 = vpop.permute.xlu0 %3650
      %3652 = vrot.lane.b32.xlu0 %v3636, 17
      %v3653 = vpop.permute.xlu0 %3652
      %3654 = vrot.lane.b32.xlu0 %v3638, 17
      %v3655 = vpop.permute.xlu0 %3654
      %v3656 = vsel %vm407, %v3641, %v3649
      %v3657 = vsel %vm407, %v3643, %v3651
      %v3658 = vsel %vm407, %v3645, %v3653
      %v3659 = vsel %vm407, %v3647, %v3655
      %v3660 = vsel %vm407, %v3649, %v3641
      %v3661 = vsel %vm407, %v3651, %v3643
      %v3662 = vsel %vm407, %v3653, %v3645
      %v3663 = vsel %vm407, %v3655, %v3647
      %v3664 = vpack.c.bf16 %v3661, %v3660
      %v3665 = vpack.c.bf16 %v3657, %v3656
      %v3666 = vpack.c.bf16 %v3663, %v3662
      %v3667 = vpack.c.bf16 %v3659, %v3658
      %s3668 = scalar_lea.vmem %s7, 1
      %v3669 = vld [vmem:[%s3668] sm:$0x1]
      %3670 = vrot.lane.b32.xlu0 %v3631, 16
      %v3671 = vpop.permute.xlu0 %3670
      %3672 = vrot.lane.b32.xlu0 %v3633, 16
      %v3673 = vpop.permute.xlu0 %3672
      %3674 = vrot.lane.b32.xlu0 %v3635, 16
      %v3675 = vpop.permute.xlu0 %3674
      %3676 = vrot.lane.b32.xlu0 %v3637, 16
      %v3677 = vpop.permute.xlu0 %3676
      %3678 = vrot.lane.b32.xlu0 %v3632, 16
      %v3679 = vpop.permute.xlu0 %3678
      %3680 = vrot.lane.b32.xlu0 %v3634, 16
      %v3681 = vpop.permute.xlu0 %3680
      %3682 = vrot.lane.b32.xlu0 %v3636, 16
      %v3683 = vpop.permute.xlu0 %3682
      %3684 = vrot.lane.b32.xlu0 %v3638, 16
      %v3685 = vpop.permute.xlu0 %3684
      %v3686 = vsel %vm455, %v3671, %v3679
      %v3687 = vsel %vm455, %v3673, %v3681
      %v3688 = vsel %vm455, %v3675, %v3683
      %v3689 = vsel %vm455, %v3677, %v3685
      %v3690 = vsel %vm455, %v3679, %v3671
      %v3691 = vsel %vm455, %v3681, %v3673
      %v3692 = vsel %vm455, %v3683, %v3675
      %v3693 = vsel %vm455, %v3685, %v3677
      %v3694 = vpack.c.bf16 %v3691, %v3690
      %v3695 = vpack.c.bf16 %v3687, %v3686
      %v3696 = vpack.c.bf16 %v3693, %v3692
      %v3697 = vpack.c.bf16 %v3689, %v3688
      %v3699 = vsel %vm1032, %v3669, 0
      %3701 = vmatprep.subr.bf16.mxu0 %v3695
      %3702 = vmatpush1.bf16.msra.mxu0 %v3694
      %3703 = vmatprep.subr.bf16.mxu0 %v3697
      %3704 = vmatpush1.bf16.msra.mxu0 %v3696
      %3705 = vmatprep.subr.bf16.mxu0 0
      %3706 = vmatpush1.bf16.msra.mxu0 0
      %3707 = vmatprep.subr.bf16.mxu0 0
      %3708 = vmatpush1.bf16.msra.mxu0 0
      %3709 = vmatprep.subr.bf16.mxu0 0
      %3710 = vmatpush1.bf16.msra.mxu0 0
      %3711 = vmatprep.subr.bf16.mxu0 0
      %3712 = vmatpush1.bf16.msra.mxu0 0
      %3713 = vmatprep.subr.bf16.mxu0 0
      %3714 = vmatpush1.bf16.msra.mxu0 0
      %3715 = vmatprep.subr.bf16.mxu0 0
      %3716 = vmatpush1.bf16.msra.mxu0 0
      %3717 = vmatprep.subr.bf16.mxu0 0
      %3718 = vmatpush1.bf16.msra.mxu0 0
      %3719 = vmatprep.subr.bf16.mxu0 0
      %3720 = vmatpush1.bf16.msra.mxu0 0
      %3721 = vmatprep.subr.bf16.mxu0 0
      %3722 = vmatpush1.bf16.msra.mxu0 0
      %3723 = vmatprep.subr.bf16.mxu0 0
      %3724 = vmatpush1.bf16.msra.mxu0 0
      %3725 = vmatprep.subr.bf16.mxu0 0
      %3726 = vmatpush1.bf16.msra.mxu0 0
      %3727 = vmatprep.subr.bf16.mxu0 0
      %3728 = vmatpush1.bf16.msra.mxu0 0
      %3729 = vmatprep.subr.bf16.mxu0 0
      %3730 = vmatpush1.bf16.msra.mxu0 0
      %3731 = vmatprep.subr.bf16.mxu0 0
      %3732 = vmatpush1.bf16.msra.mxu0 0
      %3733 = vmatprep.mubr.bf16.mxu0 0
      %3734 = vmatmul.mubr.bf16.gmra.mrb[0].mxu0 %v3699
      %v3735 = vpop.f32.mrb[0].mxu0
      %v3736 = vadd.f32 0.0, %v3735
      %v3737 = vpop.f32.mrb[0].mxu0
      %v3738 = vadd.f32 0.0, %v3737
      %v3739 = vpop.f32.mrb[0].mxu0
      %v3740 = vpop.f32.mrb[0].mxu0
      %3741 = vdwg.mxu0
      %v3743 = vsel %vm1032, %v3639, 0
      %3745 = vmatprep.subr.bf16.mxu0 %v3665
      %3746 = vmatpush1.bf16.msra.mxu0 %v3664
      %3747 = vmatprep.subr.bf16.mxu0 %v3667
      %3748 = vmatpush1.bf16.msra.mxu0 %v3666
      %3749 = vmatprep.subr.bf16.mxu0 0
      %3750 = vmatpush1.bf16.msra.mxu0 0
      %3751 = vmatprep.subr.bf16.mxu0 0
      %3752 = vmatpush1.bf16.msra.mxu0 0
      %3753 = vmatprep.subr.bf16.mxu0 0
      %3754 = vmatpush1.bf16.msra.mxu0 0
      %3755 = vmatprep.subr.bf16.mxu0 0
      %3756 = vmatpush1.bf16.msra.mxu0 0
      %3757 = vmatprep.subr.bf16.mxu0 0
      %3758 = vmatpush1.bf16.msra.mxu0 0
      %3759 = vmatprep.subr.bf16.mxu0 0
      %3760 = vmatpush1.bf16.msra.mxu0 0
      %3761 = vmatprep.subr.bf16.mxu0 0
      %3762 = vmatpush1.bf16.msra.mxu0 0
      %3763 = vmatprep.subr.bf16.mxu0 0
      %3764 = vmatpush1.bf16.msra.mxu0 0
      %3765 = vmatprep.subr.bf16.mxu0 0
      %3766 = vmatpush1.bf16.msra.mxu0 0
      %3767 = vmatprep.subr.bf16.mxu0 0
      %3768 = vmatpush1.bf16.msra.mxu0 0
      %3769 = vmatprep.subr.bf16.mxu0 0
      %3770 = vmatpush1.bf16.msra.mxu0 0
      %3771 = vmatprep.subr.bf16.mxu0 0
      %3772 = vmatpush1.bf16.msra.mxu0 0
      %3773 = vmatprep.subr.bf16.mxu0 0
      %3774 = vmatpush1.bf16.msra.mxu0 0
      %3775 = vmatprep.subr.bf16.mxu0 0
      %3776 = vmatpush1.bf16.msra.mxu0 0
      %3777 = vmatprep.mubr.bf16.mxu0 0
      %3778 = vmatmul.mubr.bf16.gmra.mrb[0].mxu0 %v3743
      %v3779 = vpop.f32.mrb[0].mxu0
      %v3780 = vadd.f32 %v3736, %v3779
      %v3781 = vpop.f32.mrb[0].mxu0
      %v3782 = vadd.f32 %v3738, %v3781
      %v3783 = vpop.f32.mrb[0].mxu0
      %v3784 = vpop.f32.mrb[0].mxu0
      %3785 = vdwg.mxu0
      %s3786 = scalar_lea.vmem %s7, 2
      %v3787 = vld [vmem:[%s3786] sm:$0x1]
      %3788 = vrot.lane.b32.xlu0 %v3631, 15
      %v3789 = vpop.permute.xlu0 %3788
      %3790 = vrot.lane.b32.xlu0 %v3633, 15
      %v3791 = vpop.permute.xlu0 %3790
      %3792 = vrot.lane.b32.xlu0 %v3635, 15
      %v3793 = vpop.permute.xlu0 %3792
      %3794 = vrot.lane.b32.xlu0 %v3637, 15
      %v3795 = vpop.permute.xlu0 %3794
      %3796 = vrot.lane.b32.xlu0 %v3632, 15
      %v3797 = vpop.permute.xlu0 %3796
      %3798 = vrot.lane.b32.xlu0 %v3634, 15
      %v3799 = vpop.permute.xlu0 %3798
      %3800 = vrot.lane.b32.xlu0 %v3636, 15
      %v3801 = vpop.permute.xlu0 %3800
      %3802 = vrot.lane.b32.xlu0 %v3638, 15
      %v3803 = vpop.permute.xlu0 %3802
      %v3804 = vsel %vm511, %v3789, %v3797
      %v3805 = vsel %vm511, %v3791, %v3799
      %v3806 = vsel %vm511, %v3793, %v3801
      %v3807 = vsel %vm511, %v3795, %v3803
      %v3808 = vsel %vm511, %v3797, %v3789
      %v3809 = vsel %vm511, %v3799, %v3791
      %v3810 = vsel %vm511, %v3801, %v3793
      %v3811 = vsel %vm511, %v3803, %v3795
      %v3812 = vpack.c.bf16 %v3809, %v3808
      %v3813 = vpack.c.bf16 %v3805, %v3804
      %v3814 = vpack.c.bf16 %v3811, %v3810
      %v3815 = vpack.c.bf16 %v3807, %v3806
      %v3817 = vsel %vm1032, %v3787, 0
      %3819 = vmatprep.subr.bf16.mxu0 %v3813
      %3820 = vmatpush1.bf16.msra.mxu0 %v3812
      %3821 = vmatprep.subr.bf16.mxu0 %v3815
      %3822 = vmatpush1.bf16.msra.mxu0 %v3814
      %3823 = vmatprep.subr.bf16.mxu0 0
      %3824 = vmatpush1.bf16.msra.mxu0 0
      %3825 = vmatprep.subr.bf16.mxu0 0
      %3826 = vmatpush1.bf16.msra.mxu0 0
      %3827 = vmatprep.subr.bf16.mxu0 0
      %3828 = vmatpush1.bf16.msra.mxu0 0
      %3829 = vmatprep.subr.bf16.mxu0 0
      %3830 = vmatpush1.bf16.msra.mxu0 0
      %3831 = vmatprep.subr.bf16.mxu0 0
      %3832 = vmatpush1.bf16.msra.mxu0 0
      %3833 = vmatprep.subr.bf16.mxu0 0
      %3834 = vmatpush1.bf16.msra.mxu0 0
      %3835 = vmatprep.subr.bf16.mxu0 0
      %3836 = vmatpush1.bf16.msra.mxu0 0
      %3837 = vmatprep.subr.bf16.mxu0 0
      %3838 = vmatpush1.bf16.msra.mxu0 0
      %3839 = vmatprep.subr.bf16.mxu0 0
      %3840 = vmatpush1.bf16.msra.mxu0 0
      %3841 = vmatprep.subr.bf16.mxu0 0
      %3842 = vmatpush1.bf16.msra.mxu0 0
      %3843 = vmatprep.subr.bf16.mxu0 0
      %3844 = vmatpush1.bf16.msra.mxu0 0
      %3845 = vmatprep.subr.bf16.mxu0 0
      %3846 = vmatpush1.bf16.msra.mxu0 0
      %3847 = vmatprep.subr.bf16.mxu0 0
      %3848 = vmatpush1.bf16.msra.mxu0 0
      %3849 = vmatprep.subr.bf16.mxu0 0
      %3850 = vmatpush1.bf16.msra.mxu0 0
      %3851 = vmatprep.mubr.bf16.mxu0 0
      %3852 = vmatmul.mubr.bf16.gmra.mrb[0].mxu0 %v3817
      %v3853 = vpop.f32.mrb[0].mxu0
      %v3854 = vadd.f32 0.0, %v3853
      %v3855 = vpop.f32.mrb[0].mxu0
      %v3856 = vadd.f32 0.0, %v3855
      %v3857 = vpop.f32.mrb[0].mxu0
      %v3858 = vpop.f32.mrb[0].mxu0
      %3859 = vdwg.mxu0
      %v3860 = vadd.f32 %v3780, %v3854
      %v3861 = vadd.f32 %v3782, %v3856
      %s3862 = scalar_lea.vmem %s7, 3
      %v3863 = vld [vmem:[%s3862] sm:$0x1]
      %3864 = vrot.lane.b32.xlu0 %v3631, 1
      %v3865 = vpop.permute.xlu0 %3864
      %3866 = vrot.lane.b32.xlu0 %v3633, 1
      %v3867 = vpop.permute.xlu0 %3866
      %3868 = vrot.lane.b32.xlu0 %v3635, 1
      %v3869 = vpop.permute.xlu0 %3868
      %3870 = vrot.lane.b32.xlu0 %v3637, 1
      %v3871 = vpop.permute.xlu0 %3870
      %3872 = vrot.lane.b32.xlu0 %v3632, 1
      %v3873 = vpop.permute.xlu0 %3872
      %3874 = vrot.lane.b32.xlu0 %v3634, 1
      %v3875 = vpop.permute.xlu0 %3874
      %3876 = vrot.lane.b32.xlu0 %v3636, 1
      %v3877 = vpop.permute.xlu0 %3876
      %3878 = vrot.lane.b32.xlu0 %v3638, 1
      %v3879 = vpop.permute.xlu0 %3878
      %v3880 = vsel %vm567, %v3865, %v3873
      %v3881 = vsel %vm567, %v3867, %v3875
      %v3882 = vsel %vm567, %v3869, %v3877
      %v3883 = vsel %vm567, %v3871, %v3879
      %v3884 = vsel %vm567, %v3873, %v3865
      %v3885 = vsel %vm567, %v3875, %v3867
      %v3886 = vsel %vm567, %v3877, %v3869
      %v3887 = vsel %vm567, %v3879, %v3871
      %v3888 = vpack.c.bf16 %v3885, %v3884
      %v3889 = vpack.c.bf16 %v3881, %v3880
      %v3890 = vpack.c.bf16 %v3887, %v3886
      %v3891 = vpack.c.bf16 %v3883, %v3882
      %v3893 = vsel %vm1032, %v3863, 0
      %3895 = vmatprep.subr.bf16.mxu0 %v3889
      %3896 = vmatpush1.bf16.msra.mxu0 %v3888
      %3897 = vmatprep.subr.bf16.mxu0 %v3891
      %3898 = vmatpush1.bf16.msra.mxu0 %v3890
      %3899 = vmatprep.subr.bf16.mxu0 0
      %3900 = vmatpush1.bf16.msra.mxu0 0
      %3901 = vmatprep.subr.bf16.mxu0 0
      %3902 = vmatpush1.bf16.msra.mxu0 0
      %3903 = vmatprep.subr.bf16.mxu0 0
      %3904 = vmatpush1.bf16.msra.mxu0 0
      %3905 = vmatprep.subr.bf16.mxu0 0
      %3906 = vmatpush1.bf16.msra.mxu0 0
      %3907 = vmatprep.subr.bf16.mxu0 0
      %3908 = vmatpush1.bf16.msra.mxu0 0
      %3909 = vmatprep.subr.bf16.mxu0 0
      %3910 = vmatpush1.bf16.msra.mxu0 0
      %3911 = vmatprep.subr.bf16.mxu0 0
      %3912 = vmatpush1.bf16.msra.mxu0 0
      %3913 = vmatprep.subr.bf16.mxu0 0
      %3914 = vmatpush1.bf16.msra.mxu0 0
      %3915 = vmatprep.subr.bf16.mxu0 0
      %3916 = vmatpush1.bf16.msra.mxu0 0
      %3917 = vmatprep.subr.bf16.mxu0 0
      %3918 = vmatpush1.bf16.msra.mxu0 0
      %3919 = vmatprep.subr.bf16.mxu0 0
      %3920 = vmatpush1.bf16.msra.mxu0 0
      %3921 = vmatprep.subr.bf16.mxu0 0
      %3922 = vmatpush1.bf16.msra.mxu0 0
      %3923 = vmatprep.subr.bf16.mxu0 0
      %3924 = vmatpush1.bf16.msra.mxu0 0
      %3925 = vmatprep.subr.bf16.mxu0 0
      %3926 = vmatpush1.bf16.msra.mxu0 0
      %3927 = vmatprep.mubr.bf16.mxu0 0
      %3928 = vmatmul.mubr.bf16.gmra.mrb[0].mxu0 %v3893
      %v3929 = vpop.f32.mrb[0].mxu0
      %v3930 = vadd.f32 0.0, %v3929
      %v3931 = vpop.f32.mrb[0].mxu0
      %v3932 = vadd.f32 0.0, %v3931
      %v3933 = vpop.f32.mrb[0].mxu0
      %v3934 = vpop.f32.mrb[0].mxu0
      %3935 = vdwg.mxu0
      %v3936 = vadd.f32 %v3860, %v3930
      %v3937 = vadd.f32 %v3861, %v3932
      %s3938 = scalar_lea.vmem %s7, 4
      %v3939 = vld [vmem:[%s3938] sm:$0x1]
      %v3940 = vpack.c.bf16 %v3633, %v3631
      %v3941 = vpack.c.bf16 %v3634, %v3632
      %v3942 = vpack.c.bf16 %v3637, %v3635
      %v3943 = vpack.c.bf16 %v3638, %v3636
      %v3945 = vsel %vm1032, %v3939, 0
      %3947 = vmatprep.subr.bf16.mxu0 %v3941
      %3948 = vmatpush1.bf16.msra.mxu0 %v3940
      %3949 = vmatprep.subr.bf16.mxu0 %v3943
      %3950 = vmatpush1.bf16.msra.mxu0 %v3942
      %3951 = vmatprep.subr.bf16.mxu0 0
      %3952 = vmatpush1.bf16.msra.mxu0 0
      %3953 = vmatprep.subr.bf16.mxu0 0
      %3954 = vmatpush1.bf16.msra.mxu0 0
      %3955 = vmatprep.subr.bf16.mxu0 0
      %3956 = vmatpush1.bf16.msra.mxu0 0
      %3957 = vmatprep.subr.bf16.mxu0 0
      %3958 = vmatpush1.bf16.msra.mxu0 0
      %3959 = vmatprep.subr.bf16.mxu0 0
      %3960 = vmatpush1.bf16.msra.mxu0 0
      %3961 = vmatprep.subr.bf16.mxu0 0
      %3962 = vmatpush1.bf16.msra.mxu0 0
      %3963 = vmatprep.subr.bf16.mxu0 0
      %3964 = vmatpush1.bf16.msra.mxu0 0
      %3965 = vmatprep.subr.bf16.mxu0 0
      %3966 = vmatpush1.bf16.msra.mxu0 0
      %3967 = vmatprep.subr.bf16.mxu0 0
      %3968 = vmatpush1.bf16.msra.mxu0 0
      %3969 = vmatprep.subr.bf16.mxu0 0
      %3970 = vmatpush1.bf16.msra.mxu0 0
      %3971 = vmatprep.subr.bf16.mxu0 0
      %3972 = vmatpush1.bf16.msra.mxu0 0
      %3973 = vmatprep.subr.bf16.mxu0 0
      %3974 = vmatpush1.bf16.msra.mxu0 0
      %3975 = vmatprep.subr.bf16.mxu0 0
      %3976 = vmatpush1.bf16.msra.mxu0 0
      %3977 = vmatprep.subr.bf16.mxu0 0
      %3978 = vmatpush1.bf16.msra.mxu0 0
      %3979 = vmatprep.mubr.bf16.mxu0 0
      %3980 = vmatmul.mubr.bf16.gmra.mrb[0].mxu0 %v3945
      %v3981 = vpop.f32.mrb[0].mxu0
      %v3982 = vadd.f32 0.0, %v3981
      %v3983 = vpop.f32.mrb[0].mxu0
      %v3984 = vadd.f32 0.0, %v3983
      %v3985 = vpop.f32.mrb[0].mxu0
      %v3986 = vpop.f32.mrb[0].mxu0
      %3987 = vdwg.mxu0
      %v3988 = vadd.f32 %v3936, %v3982
      %v3989 = vadd.f32 %v3937, %v3984
      %s3990 = scalar_lea.vmem %s7, 5
      %v3991 = vld [vmem:[%s3990] sm:$0x1]
      %3992 = vrot.lane.b32.xlu0 %v3631, 127
      %v3993 = vpop.permute.xlu0 %3992
      %3994 = vrot.lane.b32.xlu0 %v3633, 127
      %v3995 = vpop.permute.xlu0 %3994
      %3996 = vrot.lane.b32.xlu0 %v3635, 127
      %v3997 = vpop.permute.xlu0 %3996
      %3998 = vrot.lane.b32.xlu0 %v3637, 127
      %v3999 = vpop.permute.xlu0 %3998
      %4000 = vrot.lane.b32.xlu0 %v3632, 127
      %v4001 = vpop.permute.xlu0 %4000
      %4002 = vrot.lane.b32.xlu0 %v3634, 127
      %v4003 = vpop.permute.xlu0 %4002
      %4004 = vrot.lane.b32.xlu0 %v3636, 127
      %v4005 = vpop.permute.xlu0 %4004
      %4006 = vrot.lane.b32.xlu0 %v3638, 127
      %v4007 = vpop.permute.xlu0 %4006
      %v4008 = vsel %vm664, %v3993, %v4001
      %v4009 = vsel %vm664, %v3995, %v4003
      %v4010 = vsel %vm664, %v3997, %v4005
      %v4011 = vsel %vm664, %v3999, %v4007
      %v4012 = vsel %vm664, %v4001, %v3993
      %v4013 = vsel %vm664, %v4003, %v3995
      %v4014 = vsel %vm664, %v4005, %v3997
      %v4015 = vsel %vm664, %v4007, %v3999
      %v4016 = vpack.c.bf16 %v4009, %v4008
      %v4017 = vpack.c.bf16 %v4013, %v4012
      %v4018 = vpack.c.bf16 %v4011, %v4010
      %v4019 = vpack.c.bf16 %v4015, %v4014
      %v4021 = vsel %vm1032, %v3991, 0
      %4023 = vmatprep.subr.bf16.mxu0 %v4017
      %4024 = vmatpush1.bf16.msra.mxu0 %v4016
      %4025 = vmatprep.subr.bf16.mxu0 %v4019
      %4026 = vmatpush1.bf16.msra.mxu0 %v4018
      %4027 = vmatprep.subr.bf16.mxu0 0
      %4028 = vmatpush1.bf16.msra.mxu0 0
      %4029 = vmatprep.subr.bf16.mxu0 0
      %4030 = vmatpush1.bf16.msra.mxu0 0
      %4031 = vmatprep.subr.bf16.mxu0 0
      %4032 = vmatpush1.bf16.msra.mxu0 0
      %4033 = vmatprep.subr.bf16.mxu0 0
      %4034 = vmatpush1.bf16.msra.mxu0 0
      %4035 = vmatprep.subr.bf16.mxu0 0
      %4036 = vmatpush1.bf16.msra.mxu0 0
      %4037 = vmatprep.subr.bf16.mxu0 0
      %4038 = vmatpush1.bf16.msra.mxu0 0
      %4039 = vmatprep.subr.bf16.mxu0 0
      %4040 = vmatpush1.bf16.msra.mxu0 0
      %4041 = vmatprep.subr.bf16.mxu0 0
      %4042 = vmatpush1.bf16.msra.mxu0 0
      %4043 = vmatprep.subr.bf16.mxu0 0
      %4044 = vmatpush1.bf16.msra.mxu0 0
      %4045 = vmatprep.subr.bf16.mxu0 0
      %4046 = vmatpush1.bf16.msra.mxu0 0
      %4047 = vmatprep.subr.bf16.mxu0 0
      %4048 = vmatpush1.bf16.msra.mxu0 0
      %4049 = vmatprep.subr.bf16.mxu0 0
      %4050 = vmatpush1.bf16.msra.mxu0 0
      %4051 = vmatprep.subr.bf16.mxu0 0
      %4052 = vmatpush1.bf16.msra.mxu0 0
      %4053 = vmatprep.subr.bf16.mxu0 0
      %4054 = vmatpush1.bf16.msra.mxu0 0
      %4055 = vmatprep.mubr.bf16.mxu0 0
      %4056 = vmatmul.mubr.bf16.gmra.mrb[0].mxu0 %v4021
      %v4057 = vpop.f32.mrb[0].mxu0
      %v4058 = vadd.f32 0.0, %v4057
      %v4059 = vpop.f32.mrb[0].mxu0
      %v4060 = vadd.f32 0.0, %v4059
      %v4061 = vpop.f32.mrb[0].mxu0
      %v4062 = vpop.f32.mrb[0].mxu0
      %4063 = vdwg.mxu0
      %v4064 = vadd.f32 %v3988, %v4058
      %v4065 = vadd.f32 %v3989, %v4060
      %s4066 = scalar_lea.vmem %s7, 6
      %v4067 = vld [vmem:[%s4066] sm:$0x1]
      %4068 = vrot.lane.b32.xlu0 %v3631, 113
      %v4069 = vpop.permute.xlu0 %4068
      %4070 = vrot.lane.b32.xlu0 %v3633, 113
      %v4071 = vpop.permute.xlu0 %4070
      %4072 = vrot.lane.b32.xlu0 %v3635, 113
      %v4073 = vpop.permute.xlu0 %4072
      %4074 = vrot.lane.b32.xlu0 %v3637, 113
      %v4075 = vpop.permute.xlu0 %4074
      %4076 = vrot.lane.b32.xlu0 %v3632, 113
      %v4077 = vpop.permute.xlu0 %4076
      %4078 = vrot.lane.b32.xlu0 %v3634, 113
      %v4079 = vpop.permute.xlu0 %4078
      %4080 = vrot.lane.b32.xlu0 %v3636, 113
      %v4081 = vpop.permute.xlu0 %4080
      %4082 = vrot.lane.b32.xlu0 %v3638, 113
      %v4083 = vpop.permute.xlu0 %4082
      %v4084 = vsel %vm720, %v4069, %v4077
      %v4085 = vsel %vm720, %v4071, %v4079
      %v4086 = vsel %vm720, %v4073, %v4081
      %v4087 = vsel %vm720, %v4075, %v4083
      %v4088 = vsel %vm720, %v4077, %v4069
      %v4089 = vsel %vm720, %v4079, %v4071
      %v4090 = vsel %vm720, %v4081, %v4073
      %v4091 = vsel %vm720, %v4083, %v4075
      %v4092 = vpack.c.bf16 %v4085, %v4084
      %v4093 = vpack.c.bf16 %v4089, %v4088
      %v4094 = vpack.c.bf16 %v4087, %v4086
      %v4095 = vpack.c.bf16 %v4091, %v4090
      %v4097 = vsel %vm1032, %v4067, 0
      %4099 = vmatprep.subr.bf16.mxu0 %v4093
      %4100 = vmatpush1.bf16.msra.mxu0 %v4092
      %4101 = vmatprep.subr.bf16.mxu0 %v4095
      %4102 = vmatpush1.bf16.msra.mxu0 %v4094
      %4103 = vmatprep.subr.bf16.mxu0 0
      %4104 = vmatpush1.bf16.msra.mxu0 0
      %4105 = vmatprep.subr.bf16.mxu0 0
      %4106 = vmatpush1.bf16.msra.mxu0 0
      %4107 = vmatprep.subr.bf16.mxu0 0
      %4108 = vmatpush1.bf16.msra.mxu0 0
      %4109 = vmatprep.subr.bf16.mxu0 0
      %4110 = vmatpush1.bf16.msra.mxu0 0
      %4111 = vmatprep.subr.bf16.mxu0 0
      %4112 = vmatpush1.bf16.msra.mxu0 0
      %4113 = vmatprep.subr.bf16.mxu0 0
      %4114 = vmatpush1.bf16.msra.mxu0 0
      %4115 = vmatprep.subr.bf16.mxu0 0
      %4116 = vmatpush1.bf16.msra.mxu0 0
      %4117 = vmatprep.subr.bf16.mxu0 0
      %4118 = vmatpush1.bf16.msra.mxu0 0
      %4119 = vmatprep.subr.bf16.mxu0 0
      %4120 = vmatpush1.bf16.msra.mxu0 0
      %4121 = vmatprep.subr.bf16.mxu0 0
      %4122 = vmatpush1.bf16.msra.mxu0 0
      %4123 = vmatprep.subr.bf16.mxu0 0
      %4124 = vmatpush1.bf16.msra.mxu0 0
      %4125 = vmatprep.subr.bf16.mxu0 0
      %4126 = vmatpush1.bf16.msra.mxu0 0
      %4127 = vmatprep.subr.bf16.mxu0 0
      %4128 = vmatpush1.bf16.msra.mxu0 0
      %4129 = vmatprep.subr.bf16.mxu0 0
      %4130 = vmatpush1.bf16.msra.mxu0 0
      %4131 = vmatprep.mubr.bf16.mxu0 0
      %4132 = vmatmul.mubr.bf16.gmra.mrb[0].mxu0 %v4097
      %v4133 = vpop.f32.mrb[0].mxu0
      %v4134 = vadd.f32 0.0, %v4133
      %v4135 = vpop.f32.mrb[0].mxu0
      %v4136 = vadd.f32 0.0, %v4135
      %v4137 = vpop.f32.mrb[0].mxu0
      %v4138 = vpop.f32.mrb[0].mxu0
      %4139 = vdwg.mxu0
      %v4140 = vadd.f32 %v4064, %v4134
      %v4141 = vadd.f32 %v4065, %v4136
      %s4142 = scalar_lea.vmem %s7, 7
      %v4143 = vld [vmem:[%s4142] sm:$0x1]
      %4144 = vrot.lane.b32.xlu0 %v3631, 112
      %v4145 = vpop.permute.xlu0 %4144
      %4146 = vrot.lane.b32.xlu0 %v3633, 112
      %v4147 = vpop.permute.xlu0 %4146
      %4148 = vrot.lane.b32.xlu0 %v3635, 112
      %v4149 = vpop.permute.xlu0 %4148
      %4150 = vrot.lane.b32.xlu0 %v3637, 112
      %v4151 = vpop.permute.xlu0 %4150
      %4152 = vrot.lane.b32.xlu0 %v3632, 112
      %v4153 = vpop.permute.xlu0 %4152
      %4154 = vrot.lane.b32.xlu0 %v3634, 112
      %v4155 = vpop.permute.xlu0 %4154
      %4156 = vrot.lane.b32.xlu0 %v3636, 112
      %v4157 = vpop.permute.xlu0 %4156
      %4158 = vrot.lane.b32.xlu0 %v3638, 112
      %v4159 = vpop.permute.xlu0 %4158
      %v4160 = vsel %vm776, %v4145, %v4153
      %v4161 = vsel %vm776, %v4147, %v4155
      %v4162 = vsel %vm776, %v4149, %v4157
      %v4163 = vsel %vm776, %v4151, %v4159
      %v4164 = vsel %vm776, %v4153, %v4145
      %v4165 = vsel %vm776, %v4155, %v4147
      %v4166 = vsel %vm776, %v4157, %v4149
      %v4167 = vsel %vm776, %v4159, %v4151
      %v4168 = vpack.c.bf16 %v4161, %v4160
      %v4169 = vpack.c.bf16 %v4165, %v4164
      %v4170 = vpack.c.bf16 %v4163, %v4162
      %v4171 = vpack.c.bf16 %v4167, %v4166
      %v4173 = vsel %vm1032, %v4143, 0
      %4175 = vmatprep.subr.bf16.mxu0 %v4169
      %4176 = vmatpush1.bf16.msra.mxu0 %v4168
      %4177 = vmatprep.subr.bf16.mxu0 %v4171
      %4178 = vmatpush1.bf16.msra.mxu0 %v4170
      %4179 = vmatprep.subr.bf16.mxu0 0
      %4180 = vmatpush1.bf16.msra.mxu0 0
      %4181 = vmatprep.subr.bf16.mxu0 0
      %4182 = vmatpush1.bf16.msra.mxu0 0
      %4183 = vmatprep.subr.bf16.mxu0 0
      %4184 = vmatpush1.bf16.msra.mxu0 0
      %4185 = vmatprep.subr.bf16.mxu0 0
      %4186 = vmatpush1.bf16.msra.mxu0 0
      %4187 = vmatprep.subr.bf16.mxu0 0
      %4188 = vmatpush1.bf16.msra.mxu0 0
      %4189 = vmatprep.subr.bf16.mxu0 0
      %4190 = vmatpush1.bf16.msra.mxu0 0
      %4191 = vmatprep.subr.bf16.mxu0 0
      %4192 = vmatpush1.bf16.msra.mxu0 0
      %4193 = vmatprep.subr.bf16.mxu0 0
      %4194 = vmatpush1.bf16.msra.mxu0 0
      %4195 = vmatprep.subr.bf16.mxu0 0
      %4196 = vmatpush1.bf16.msra.mxu0 0
      %4197 = vmatprep.subr.bf16.mxu0 0
      %4198 = vmatpush1.bf16.msra.mxu0 0
      %4199 = vmatprep.subr.bf16.mxu0 0
      %4200 = vmatpush1.bf16.msra.mxu0 0
      %4201 = vmatprep.subr.bf16.mxu0 0
      %4202 = vmatpush1.bf16.msra.mxu0 0
      %4203 = vmatprep.subr.bf16.mxu0 0
      %4204 = vmatpush1.bf16.msra.mxu0 0
      %4205 = vmatprep.subr.bf16.mxu0 0
      %4206 = vmatpush1.bf16.msra.mxu0 0
      %4207 = vmatprep.mubr.bf16.mxu0 0
      %4208 = vmatmul.mubr.bf16.gmra.mrb[0].mxu0 %v4173
      %v4209 = vpop.f32.mrb[0].mxu0
      %v4210 = vadd.f32 0.0, %v4209
      %v4211 = vpop.f32.mrb[0].mxu0
      %v4212 = vadd.f32 0.0, %v4211
      %v4213 = vpop.f32.mrb[0].mxu0
      %v4214 = vpop.f32.mrb[0].mxu0
      %4215 = vdwg.mxu0
      %v4216 = vadd.f32 %v4140, %v4210
      %v4217 = vadd.f32 %v4141, %v4212
      %s4218 = scalar_lea.vmem %s7, 8
      %v4219 = vld [vmem:[%s4218] sm:$0x1]
      %4220 = vrot.lane.b32.xlu0 %v3631, 111
      %v4221 = vpop.permute.xlu0 %4220
      %4222 = vrot.lane.b32.xlu0 %v3633, 111
      %v4223 = vpop.permute.xlu0 %4222
      %4224 = vrot.lane.b32.xlu0 %v3635, 111
      %v4225 = vpop.permute.xlu0 %4224
      %4226 = vrot.lane.b32.xlu0 %v3637, 111
      %v4227 = vpop.permute.xlu0 %4226
      %4228 = vrot.lane.b32.xlu0 %v3632, 111
      %v4229 = vpop.permute.xlu0 %4228
      %4230 = vrot.lane.b32.xlu0 %v3634, 111
      %v4231 = vpop.permute.xlu0 %4230
      %4232 = vrot.lane.b32.xlu0 %v3636, 111
      %v4233 = vpop.permute.xlu0 %4232
      %4234 = vrot.lane.b32.xlu0 %v3638, 111
      %v4235 = vpop.permute.xlu0 %4234
      %v4236 = vsel %vm832, %v4221, %v4229
      %v4237 = vsel %vm832, %v4223, %v4231
      %v4238 = vsel %vm832, %v4225, %v4233
      %v4239 = vsel %vm832, %v4227, %v4235
      %v4240 = vsel %vm832, %v4229, %v4221
      %v4241 = vsel %vm832, %v4231, %v4223
      %v4242 = vsel %vm832, %v4233, %v4225
      %v4243 = vsel %vm832, %v4235, %v4227
      %v4244 = vpack.c.bf16 %v4237, %v4236
      %v4245 = vpack.c.bf16 %v4241, %v4240
      %v4246 = vpack.c.bf16 %v4239, %v4238
      %v4247 = vpack.c.bf16 %v4243, %v4242
      %v4249 = vsel %vm1032, %v4219, 0
      %4251 = vmatprep.subr.bf16.mxu0 %v4245
      %4252 = vmatpush1.bf16.msra.mxu0 %v4244
      %4253 = vmatprep.subr.bf16.mxu0 %v4247
      %4254 = vmatpush1.bf16.msra.mxu0 %v4246
      %4255 = vmatprep.subr.bf16.mxu0 0
      %4256 = vmatpush1.bf16.msra.mxu0 0
      %4257 = vmatprep.subr.bf16.mxu0 0
      %4258 = vmatpush1.bf16.msra.mxu0 0
      %4259 = vmatprep.subr.bf16.mxu0 0
      %4260 = vmatpush1.bf16.msra.mxu0 0
      %4261 = vmatprep.subr.bf16.mxu0 0
      %4262 = vmatpush1.bf16.msra.mxu0 0
      %4263 = vmatprep.subr.bf16.mxu0 0
      %4264 = vmatpush1.bf16.msra.mxu0 0
      %4265 = vmatprep.subr.bf16.mxu0 0
      %4266 = vmatpush1.bf16.msra.mxu0 0
      %4267 = vmatprep.subr.bf16.mxu0 0
      %4268 = vmatpush1.bf16.msra.mxu0 0
      %4269 = vmatprep.subr.bf16.mxu0 0
      %4270 = vmatpush1.bf16.msra.mxu0 0
      %4271 = vmatprep.subr.bf16.mxu0 0
      %4272 = vmatpush1.bf16.msra.mxu0 0
      %4273 = vmatprep.subr.bf16.mxu0 0
      %4274 = vmatpush1.bf16.msra.mxu0 0
      %4275 = vmatprep.subr.bf16.mxu0 0
      %4276 = vmatpush1.bf16.msra.mxu0 0
      %4277 = vmatprep.subr.bf16.mxu0 0
      %4278 = vmatpush1.bf16.msra.mxu0 0
      %4279 = vmatprep.subr.bf16.mxu0 0
      %4280 = vmatpush1.bf16.msra.mxu0 0
      %4281 = vmatprep.subr.bf16.mxu0 0
      %4282 = vmatpush1.bf16.msra.mxu0 0
      %4283 = vmatprep.mubr.bf16.mxu0 0
      %4284 = vmatmul.mubr.bf16.gmra.mrb[0].mxu0 %v4249
      %v4285 = vpop.f32.mrb[0].mxu0
      %v4286 = vadd.f32 0.0, %v4285
      %v4287 = vpop.f32.mrb[0].mxu0
      %v4288 = vadd.f32 0.0, %v4287
      %v4289 = vpop.f32.mrb[0].mxu0
      %v4290 = vpop.f32.mrb[0].mxu0
      %4291 = vdwg.mxu0
      %v4292 = vadd.f32 %v4216, %v4286
      %v4293 = vadd.f32 %v4217, %v4288
      %v4294 = vld [vmem:[%s8] sm:$0x3]
      %4296 = vset.pattern.permute.xlu0 0
      %4297 = vperm.xlu0 %4296, %v4294
      %v4298 = vpop.permute.xlu0 %4297
      %v4300 = vadd.f32 %v4292, %v4298
      %v4301 = vadd.f32 %v4293, %v4298
      %v4302 = vmax.f32 %v4300, 0.0
      %v4303 = vmax.f32 %v4301, 0.0
      %v4306 = vrot.slane %v4302, 7
      %v4307 = vrot.slane %v4303, 7
      %v4310 = vsub.f32 %v4302, %v4306
      %v4311 = vsub.f32 %v4303, %v4307
      %v4312 = vand.u32 2147483647, %v4310
      %v4313 = vand.u32 2147483647, %v4311
      %v4314 = vsub.f32 0.0, %v4312
      %v4315 = vsub.f32 0.0, %v4313
      %v4316 = vmul.f32 %v4314, 1.442695
      %v4317 = vpow.pop %v4316
      %v4318 = vmul.f32 %v4315, 1.442695
      %v4319 = vpow.pop %v4318
      %v4320 = vadd.f32 %v4317, 1.0
      %v4321 = vadd.f32 %v4319, 1.0
      %v4322 = vrcp.pop %v4320
      %v4323 = vrcp.pop %v4321
      %vm4324 = vcmp.ge.f32.partialorder %v4310, 0.0
      %vm4325 = vcmp.ge.f32.partialorder %v4311, 0.0
      %v4326 = vmul.f32 %v4317, %v4322
      %v4327 = vmul.f32 %v4319, %v4323
      %v4328 = vsel %vm4324, %v4322, %v4326
      %v4329 = vsel %vm4325, %v4323, %v4327
      %v4330 = vsub.f32 1.0, %v4328
      %v4331 = vsub.f32 1.0, %v4329
      %v4334 = vrot.slane %v4330, 1
      %v4335 = vrot.slane %v4331, 1
      %vm4338 = vcmask 1040384
      %v4339 = vsel %vm4338, %v4334, %v4328
      %v4340 = vsel %vm4338, %v4335, %v4329
      %v4343 = vcombine.low %v4339, %v4340
      %v4345 = vunpack.c.l.s4 1983009808
      %v4346 = vunpack.c.0.s8 %v4345
      %v4347 = vlaneseq
      %v4348 = vshrl.u32 %v4347, 7
      %v4349 = vsub.s32 %v4346, %v4348
      %v4350 = vrot.slane %v4343, %v4349
      %4352 = vst [vmem:[%s383] sm:$0xf] %v4350
      %p4353 = scmp.lt.s32.totalorder %s22, 1
      %s4354 = scalar_select %p4353, %s22, 1
      %s4355 = smul.addr %s4354, 2
      %s4356 = smul.addr %s4355, 2
      %s4357 = scalar_lea.vmem %s11, %s4356
      // Predicated region
      $region65: #{generator_forward.1} parent=63 // pred_check
        %p4358 = pneg %p276
      $region66: #{generator_forward.1} parent=63 // pred_check_branch
        %4360 = sbr.rel (%p4358) target = $region68
      $region67: #{generator_forward.1} parent=63 // pred_region
        _
      $region68: #{generator_forward.1} parent=63 // pred_fallthru
        _
    $region64: #{generator_forward.1} parent=5 // pred_fallthru
      _
    %p4361 = scmp.le.s32.totalorder 2, %s17
    // Predicated region
    $region69: #{generator_forward.1} parent=5 // pred_check
      %p4362 = pneg %p4361
    $region70: #{generator_forward.1} parent=5 // pred_check_branch
      %4364 = sbr.rel (%p4362) target = $region72
    $region71: #{generator_forward.1} parent=5 // pred_region
      %s4365 = ssub.s32 %s17, 2
      // Predicated region
      $region73: #{generator_forward.1} parent=71 // pred_check
        %p4366 = pneg %p282
      $region74: #{generator_forward.1} parent=71 // pred_check_branch
        %4368 = sbr.rel (%p4366) target = $region76
      $region75: #{generator_forward.1} parent=71 // pred_region
        %p4369 = scmp.lt.s32.totalorder %s23, 1
        %s4370 = scalar_select %p4369, %s23, 1
        %s4371 = smul.addr %s4370, 2
        %s4372 = smul.addr %s4371, 2
        %s4373 = scalar_lea.vmem %s11, %s4372
      $region76: #{generator_forward.1} parent=71 // pred_fallthru
        _
    $region72: #{generator_forward.1} parent=5 // pred_fallthru
      _
  $region6: #{generator_forward.1} parent=0 // loop_footer
    %s21 = sadd.s32 1, %s17
  $region7: #{generator_forward.1} parent=0 // loop_footer_branch
    %16 = sbr.rel target = $region3
  $region8: #{generator_forward.1} parent=0 // loop_exit
    _

</llo_original>
